<compile_context>
chip_gen: v5e
topology: v5e:2x2
jax: 0.10.0
libtpu: 0.0.40
codegen_flags: <defaults>
</compile_context>

<pallas_src>
import math

import jax
import jax.numpy as jnp
from jax.experimental import pallas as pl
from jax.experimental.pallas import tpu as pltpu  # noqa: F401 (not needed at this size)

D_MODEL = 32
N_HEADS = 4
D_K = D_MODEL // N_HEADS
D_FF = 64
N_LAYERS = 2
LN_EPS = 1e-5  # torch.nn.LayerNorm default


# ------------------------------ in-kernel math ------------------------------

def _layernorm(x, g, b):
    mu = jnp.mean(x, axis=-1, keepdims=True)
    var = jnp.mean((x - mu) ** 2, axis=-1, keepdims=True)
    return (x - mu) * jax.lax.rsqrt(var + LN_EPS) * g + b


def _encoder_kernel(x_ref, bias_ref,
                    ln1g_ref, ln1b_ref,
                    wq_ref, bq_ref, wk_ref, bk_ref, wv_ref, bv_ref,
                    wo_ref, bo_ref,
                    lnfg_ref, lnfb_ref,
                    w1_ref, b1_ref, w2_ref, b2_ref,
                    gn_ref, bn_ref,
                    o_ref):
    B, S, D = x_ref.shape
    G = bias_ref.shape[0]          # G = B * N_HEADS  (fused batch*head axis)
    H = G // B

    x = x_ref[...].reshape(B * S, D)      # (B*S, D) activation, VMEM resident
    bias = bias_ref[...]                  # (G, S, S) additive attention mask

    for l in range(N_LAYERS):             # static unroll over layers
        # ---- pre-norm multi-head self-attention + residual ------------------
        z = _layernorm(x, ln1g_ref[l], ln1b_ref[l])                 # (B*S, D)
        zg = jnp.broadcast_to(z.reshape(B, 1, S, D),
                              (B, H, S, D)).reshape(G, S, D)        # (G, S, D)
        # Wq/bq are pre-scaled by 1/sqrt(d_k) on the host.
        q = jnp.einsum('gsd,gdk->gsk', zg, wq_ref[l],
                       preferred_element_type=jnp.float32) + bq_ref[l]
        k = jnp.einsum('gsd,gdk->gsk', zg, wk_ref[l],
                       preferred_element_type=jnp.float32) + bk_ref[l]
        v = jnp.einsum('gsd,gdk->gsk', zg, wv_ref[l],
                       preferred_element_type=jnp.float32) + bv_ref[l]
        s = jnp.einsum('gqd,gkd->gqk', q, k,
                       preferred_element_type=jnp.float32) + bias   # (G, S, S)
        s = s - jnp.max(s, axis=-1, keepdims=True)
        p = jnp.exp(s)
        p = p * pl.reciprocal(jnp.sum(p, axis=-1, keepdims=True), approx=True)
        ctx = jnp.einsum('gqk,gkd->gqd', p, v,
                         preferred_element_type=jnp.float32)        # (G, S, d_k)
        heads = jnp.einsum('gsk,gkd->gsd', ctx, wo_ref[l],
                           preferred_element_type=jnp.float32)      # (G, S, D)
        # Unrolled head-sum: leading-axis slices + VPU adds (no XLU concat).
        heads = heads.reshape(B, H, S, D)
        attn = heads[:, 0]
        for hh in range(1, H):
            attn = attn + heads[:, hh]
        x = x + attn.reshape(B * S, D) + bo_ref[l]

        # ---- pre-norm feed-forward + residual --------------------------------
        z = _layernorm(x, lnfg_ref[l], lnfb_ref[l])
        h1 = jnp.maximum(
            jnp.dot(z, w1_ref[l], preferred_element_type=jnp.float32) + b1_ref[l],
            0.0)
        x = x + jnp.dot(h1, w2_ref[l], preferred_element_type=jnp.float32) + b2_ref[l]

    # ---- final LayerNorm ------------------------------------------------------
    o_ref[...] = _layernorm(x, gn_ref[...], bn_ref[...]).reshape(B, S, D)


# -------------------------- host-side weight packing ------------------------

def _pack_params(params, batch):
    """Stack per-layer params, split heads and replicate over batch so the
    kernel only needs batched (G = batch*heads) einsums."""
    D, H, dk = D_MODEL, N_HEADS, D_K
    scale = 1.0 / math.sqrt(dk)
    layers = params["layers"]

    def split_in(w):   # (D, D) -> (B*H, D, d_k): per-head column blocks
        return jnp.tile(jnp.transpose(w.reshape(D, H, dk), (1, 0, 2)), (batch, 1, 1))

    def split_bias(b):  # (1, D) -> (B*H, 1, d_k)
        return jnp.tile(b.reshape(H, 1, dk), (batch, 1, 1))

    def split_out(w):  # (D, D) -> (B*H, d_k, D): per-head row blocks
        return jnp.tile(w.reshape(H, dk, D), (batch, 1, 1))

    def stack(name, fn=lambda a: a):
        return jnp.stack([fn(lp[name]) for lp in layers])

    return [
        stack("ln1_g"), stack("ln1_b"),
        stack("wq", lambda w: split_in(w) * scale),
        stack("bq", lambda b: split_bias(b) * scale),
        stack("wk", split_in), stack("bk", split_bias),
        stack("wv", split_in), stack("bv", split_bias),
        stack("wo", split_out), stack("bo"),
        stack("lnf_g"), stack("lnf_b"),
        stack("w1"), stack("b1"), stack("w2"), stack("b2"),
        params["norm_g"], params["norm_b"],
    ]


# --------------------------------- forward ----------------------------------

@jax.jit
def encoder_forward(params, x, mask):
    """Encoder.forward(x, mask): x (B,S,D) float32, mask (B,S,S) 1.0=attend."""
    B, S, D = x.shape
    packed = _pack_params(params, B)
    # Additive mask bias, broadcast over heads: 0 where attend, -1e9 where masked.
    bias = (mask.astype(jnp.float32) - 1.0) * 1e9
    bias = jnp.broadcast_to(bias[:, None], (B, N_HEADS, S, S)).reshape(B * N_HEADS, S, S)

    return pl.pallas_call(
        _encoder_kernel,
        out_shape=jax.ShapeDtypeStruct((B, S, D), jnp.float32),
        # No grid / no BlockSpecs: single invocation, every operand mapped
        # whole into VMEM (total ~105 KB, far under any generation's VMEM).
    )(x.astype(jnp.float32), bias, *packed)


# ------------------------------- parameters ---------------------------------

def _xavier(key, shape):
    fan_in, fan_out = shape[0], shape[1]
    limit = math.sqrt(6.0 / (fan_in + fan_out))
    return jax.random.uniform(key, shape, jnp.float32, -limit, limit)


def init_layer_params(key):
    ks = jax.random.split(key, 6)
    D, F = D_MODEL, D_FF
    zeros = lambda *s: jnp.zeros(s, jnp.float32)
    ones = lambda *s: jnp.ones(s, jnp.float32)
    return {
        "ln1_g": ones(1, D), "ln1_b": zeros(1, D),
        "wq": _xavier(ks[0], (D, D)), "bq": zeros(1, D),
        "wk": _xavier(ks[1], (D, D)), "bk": zeros(1, D),
        "wv": _xavier(ks[2], (D, D)), "bv": zeros(1, D),
        "wo": _xavier(ks[3], (D, D)), "bo": zeros(1, D),
        "lnf_g": ones(1, D), "lnf_b": zeros(1, D),
        "w1": _xavier(ks[4], (D, F)), "b1": zeros(1, F),
        "w2": _xavier(ks[5], (F, D)), "b2": zeros(1, D),
    }


def init_params(key):
    keys = jax.random.split(key, N_LAYERS)
    return {
        "layers": [init_layer_params(k) for k in keys],
        "norm_g": jnp.ones((1, D_MODEL), jnp.float32),
        "norm_b": jnp.zeros((1, D_MODEL), jnp.float32),
    }


# ----------------------------------- main ------------------------------------

if __name__ == "__main__":
    key = jax.random.PRNGKey(0)
    pkey, xkey = jax.random.split(key)
    params = init_params(pkey)

    B, S = 2, 8
    x = jax.random.normal(xkey, (B, S, D_MODEL), jnp.float32)
    mask = jnp.ones((B, S, S), jnp.float32)
    mask = mask.at[1, :, 6:].set(0.0)   # padding mask for batch 1 (keys 6,7 masked)

    out = encoder_forward(params, x, mask)
    jax.block_until_ready(out)
    assert out.shape == (B, S, D_MODEL) and out.dtype == jnp.float32
    print("KERNEL_OK")
</pallas_src>

<mosaic_0001>
module attributes {stable_mosaic.version = 11 : i64} {
  func.func @_encoder_kernel(%arg0: memref<2x8x32xf32, #tpu.memory_space<vmem>>, %arg1: memref<8x8x8xf32, #tpu.memory_space<vmem>>, %arg2: memref<2x1x32xf32, #tpu.memory_space<vmem>>, %arg3: memref<2x1x32xf32, #tpu.memory_space<vmem>>, %arg4: memref<2x8x32x8xf32, #tpu.memory_space<vmem>>, %arg5: memref<2x8x1x8xf32, #tpu.memory_space<vmem>>, %arg6: memref<2x8x32x8xf32, #tpu.memory_space<vmem>>, %arg7: memref<2x8x1x8xf32, #tpu.memory_space<vmem>>, %arg8: memref<2x8x32x8xf32, #tpu.memory_space<vmem>>, %arg9: memref<2x8x1x8xf32, #tpu.memory_space<vmem>>, %arg10: memref<2x8x8x32xf32, #tpu.memory_space<vmem>>, %arg11: memref<2x1x32xf32, #tpu.memory_space<vmem>>, %arg12: memref<2x1x32xf32, #tpu.memory_space<vmem>>, %arg13: memref<2x1x32xf32, #tpu.memory_space<vmem>>, %arg14: memref<2x32x64xf32, #tpu.memory_space<vmem>>, %arg15: memref<2x1x64xf32, #tpu.memory_space<vmem>>, %arg16: memref<2x64x32xf32, #tpu.memory_space<vmem>>, %arg17: memref<2x1x32xf32, #tpu.memory_space<vmem>>, %arg18: memref<1x32xf32, #tpu.memory_space<vmem>>, %arg19: memref<1x32xf32, #tpu.memory_space<vmem>>, %arg20: memref<2x8x32xf32, #tpu.memory_space<vmem>>) attributes {dimension_semantics = [], scalar_prefetch = 0 : i64, scratch_operands = 0 : i64, tpu.core_type = #tpu.core_type<tc>} {
    %c0 = arith.constant 0 : index
    %c0_0 = arith.constant 0 : index
    %c0_1 = arith.constant 0 : index
    %0 = vector.load %arg0[%c0, %c0_0, %c0_1] : memref<2x8x32xf32, #tpu.memory_space<vmem>>, vector<2x8x32xf32>
    %1 = vector.shape_cast %0 : vector<2x8x32xf32> to vector<16x32xf32>
    %c0_2 = arith.constant 0 : index
    %c0_3 = arith.constant 0 : index
    %c0_4 = arith.constant 0 : index
    %2 = vector.load %arg1[%c0_2, %c0_3, %c0_4] : memref<8x8x8xf32, #tpu.memory_space<vmem>>, vector<8x8x8xf32>
    %c0_5 = arith.constant 0 : index
    %c0_6 = arith.constant 0 : index
    %c0_7 = arith.constant 0 : index
    %3 = vector.load %arg2[%c0_5, %c0_6, %c0_7] : memref<2x1x32xf32, #tpu.memory_space<vmem>>, vector<1x1x32xf32>
    %4 = vector.shape_cast %3 : vector<1x1x32xf32> to vector<1x32xf32>
    %c0_8 = arith.constant 0 : index
    %c0_9 = arith.constant 0 : index
    %c0_10 = arith.constant 0 : index
    %5 = vector.load %arg3[%c0_8, %c0_9, %c0_10] : memref<2x1x32xf32, #tpu.memory_space<vmem>>, vector<1x1x32xf32>
    %6 = vector.shape_cast %5 : vector<1x1x32xf32> to vector<1x32xf32>
    %cst = arith.constant dense<0.000000e+00> : vector<16xf32>
    %7 = vector.multi_reduction <add>, %1, %cst [1] : vector<16x32xf32> to vector<16xf32>
    %8 = vector.shape_cast %7 : vector<16xf32> to vector<16x1xf32>
    %cst_11 = arith.constant 3.200000e+01 : f32
    %9 = vector.broadcast %cst_11 : f32 to vector<16x1xf32>
    %10 = arith.divf %8, %9 : vector<16x1xf32>
    %11 = vector.broadcast %10 : vector<16x1xf32> to vector<16x32xf32>
    %12 = arith.subf %1, %11 : vector<16x32xf32>
    %13 = arith.mulf %12, %12 : vector<16x32xf32>
    %cst_12 = arith.constant dense<0.000000e+00> : vector<16xf32>
    %14 = vector.multi_reduction <add>, %13, %cst_12 [1] : vector<16x32xf32> to vector<16xf32>
    %15 = vector.shape_cast %14 : vector<16xf32> to vector<16x1xf32>
    %cst_13 = arith.constant 3.200000e+01 : f32
    %16 = vector.broadcast %cst_13 : f32 to vector<16x1xf32>
    %17 = arith.divf %15, %16 : vector<16x1xf32>
    %18 = vector.broadcast %10 : vector<16x1xf32> to vector<16x32xf32>
    %19 = arith.subf %1, %18 : vector<16x32xf32>
    %cst_14 = arith.constant 9.99999974E-6 : f32
    %20 = vector.broadcast %cst_14 : f32 to vector<16x1xf32>
    %21 = arith.addf %17, %20 : vector<16x1xf32>
    %22 = math.rsqrt %21 : vector<16x1xf32>
    %23 = vector.broadcast %22 : vector<16x1xf32> to vector<16x32xf32>
    %24 = arith.mulf %19, %23 : vector<16x32xf32>
    %25 = vector.broadcast %4 : vector<1x32xf32> to vector<16x32xf32>
    %26 = arith.mulf %24, %25 : vector<16x32xf32>
    %27 = vector.broadcast %6 : vector<1x32xf32> to vector<16x32xf32>
    %28 = arith.addf %26, %27 : vector<16x32xf32>
    %29 = vector.shape_cast %28 : vector<16x32xf32> to vector<2x1x8x32xf32>
    %30 = vector.shape_cast %29 : vector<2x1x8x32xf32> to vector<2x1x8x32xf32>
    %31 = vector.broadcast %30 : vector<2x1x8x32xf32> to vector<2x4x8x32xf32>
    %32 = vector.shape_cast %31 : vector<2x4x8x32xf32> to vector<8x8x32xf32>
    %c0_15 = arith.constant 0 : index
    %c0_16 = arith.constant 0 : index
    %c0_17 = arith.constant 0 : index
    %c0_18 = arith.constant 0 : index
    %33 = vector.load %arg4[%c0_15, %c0_16, %c0_17, %c0_18] : memref<2x8x32x8xf32, #tpu.memory_space<vmem>>, vector<1x8x32x8xf32>
    %34 = vector.shape_cast %33 : vector<1x8x32x8xf32> to vector<8x32x8xf32>
    "tpu.trace_start"() <{level = 10 : i32, message = "gsd,gdk->gsk"}> : () -> ()
    %cst_19 = arith.constant dense<0.000000e+00> : vector<8x8x8xf32>
    %35 = tpu.matmul %32, %34, %cst_19 {dimension_numbers = #tpu.dot_dimension_numbers<[2], [1], [1], [2], [0, 0, 0, 1, 1, 2], [0], [0]>} : vector<8x8x32xf32>, vector<8x32x8xf32>, vector<8x8x8xf32> -> vector<8x8x8xf32>
    "tpu.trace_stop"() : () -> ()
    %c0_20 = arith.constant 0 : index
    %c0_21 = arith.constant 0 : index
    %c0_22 = arith.constant 0 : index
    %c0_23 = arith.constant 0 : index
    %36 = vector.load %arg5[%c0_20, %c0_21, %c0_22, %c0_23] : memref<2x8x1x8xf32, #tpu.memory_space<vmem>>, vector<1x8x1x8xf32>
    %37 = vector.shape_cast %36 : vector<1x8x1x8xf32> to vector<8x1x8xf32>
    %38 = vector.broadcast %37 : vector<8x1x8xf32> to vector<8x8x8xf32>
    %39 = arith.addf %35, %38 : vector<8x8x8xf32>
    %c0_24 = arith.constant 0 : index
    %c0_25 = arith.constant 0 : index
    %c0_26 = arith.constant 0 : index
    %c0_27 = arith.constant 0 : index
    %40 = vector.load %arg6[%c0_24, %c0_25, %c0_26, %c0_27] : memref<2x8x32x8xf32, #tpu.memory_space<vmem>>, vector<1x8x32x8xf32>
    %41 = vector.shape_cast %40 : vector<1x8x32x8xf32> to vector<8x32x8xf32>
    "tpu.trace_start"() <{level = 10 : i32, message = "gsd,gdk->gsk"}> : () -> ()
    %cst_28 = arith.constant dense<0.000000e+00> : vector<8x8x8xf32>
    %42 = tpu.matmul %32, %41, %cst_28 {dimension_numbers = #tpu.dot_dimension_numbers<[2], [1], [1], [2], [0, 0, 0, 1, 1, 2], [0], [0]>} : vector<8x8x32xf32>, vector<8x32x8xf32>, vector<8x8x8xf32> -> vector<8x8x8xf32>
    "tpu.trace_stop"() : () -> ()
    %c0_29 = arith.constant 0 : index
    %c0_30 = arith.constant 0 : index
    %c0_31 = arith.constant 0 : index
    %c0_32 = arith.constant 0 : index
    %43 = vector.load %arg7[%c0_29, %c0_30, %c0_31, %c0_32] : memref<2x8x1x8xf32, #tpu.memory_space<vmem>>, vector<1x8x1x8xf32>
    %44 = vector.shape_cast %43 : vector<1x8x1x8xf32> to vector<8x1x8xf32>
    %45 = vector.broadcast %44 : vector<8x1x8xf32> to vector<8x8x8xf32>
    %46 = arith.addf %42, %45 : vector<8x8x8xf32>
    %c0_33 = arith.constant 0 : index
    %c0_34 = arith.constant 0 : index
    %c0_35 = arith.constant 0 : index
    %c0_36 = arith.constant 0 : index
    %47 = vector.load %arg8[%c0_33, %c0_34, %c0_35, %c0_36] : memref<2x8x32x8xf32, #tpu.memory_space<vmem>>, vector<1x8x32x8xf32>
    %48 = vector.shape_cast %47 : vector<1x8x32x8xf32> to vector<8x32x8xf32>
    "tpu.trace_start"() <{level = 10 : i32, message = "gsd,gdk->gsk"}> : () -> ()
    %cst_37 = arith.constant dense<0.000000e+00> : vector<8x8x8xf32>
    %49 = tpu.matmul %32, %48, %cst_37 {dimension_numbers = #tpu.dot_dimension_numbers<[2], [1], [1], [2], [0, 0, 0, 1, 1, 2], [0], [0]>} : vector<8x8x32xf32>, vector<8x32x8xf32>, vector<8x8x8xf32> -> vector<8x8x8xf32>
    "tpu.trace_stop"() : () -> ()
    %c0_38 = arith.constant 0 : index
    %c0_39 = arith.constant 0 : index
    %c0_40 = arith.constant 0 : index
    %c0_41 = arith.constant 0 : index
    %50 = vector.load %arg9[%c0_38, %c0_39, %c0_40, %c0_41] : memref<2x8x1x8xf32, #tpu.memory_space<vmem>>, vector<1x8x1x8xf32>
    %51 = vector.shape_cast %50 : vector<1x8x1x8xf32> to vector<8x1x8xf32>
    %52 = vector.broadcast %51 : vector<8x1x8xf32> to vector<8x8x8xf32>
    %53 = arith.addf %49, %52 : vector<8x8x8xf32>
    "tpu.trace_start"() <{level = 10 : i32, message = "gqd,gkd->gqk"}> : () -> ()
    %cst_42 = arith.constant dense<0.000000e+00> : vector<8x8x8xf32>
    %54 = tpu.matmul %39, %46, %cst_42 {dimension_numbers = #tpu.dot_dimension_numbers<[2], [2], [1], [1], [0, 0, 0, 1, 1, 1], [0], [0]>} : vector<8x8x8xf32>, vector<8x8x8xf32>, vector<8x8x8xf32> -> vector<8x8x8xf32>
    "tpu.trace_stop"() : () -> ()
    %55 = arith.addf %54, %2 : vector<8x8x8xf32>
    %cst_43 = arith.constant dense<0xFF800000> : vector<8x8xf32>
    %56 = vector.multi_reduction <maximumf>, %55, %cst_43 [2] : vector<8x8x8xf32> to vector<8x8xf32>
    %57 = vector.shape_cast %56 : vector<8x8xf32> to vector<8x8x1xf32>
    %58 = vector.broadcast %57 : vector<8x8x1xf32> to vector<8x8x8xf32>
    %59 = arith.subf %55, %58 : vector<8x8x8xf32>
    %60 = math.exp %59 : vector<8x8x8xf32>
    %cst_44 = arith.constant dense<0.000000e+00> : vector<8x8xf32>
    %61 = vector.multi_reduction <add>, %60, %cst_44 [2] : vector<8x8x8xf32> to vector<8x8xf32>
    %62 = vector.shape_cast %61 : vector<8x8xf32> to vector<8x8x1xf32>
    %63 = tpu.reciprocal %62 {approx = true} : vector<8x8x1xf32> -> vector<8x8x1xf32>
    %64 = vector.broadcast %63 : vector<8x8x1xf32> to vector<8x8x8xf32>
    %65 = arith.mulf %60, %64 : vector<8x8x8xf32>
    "tpu.trace_start"() <{level = 10 : i32, message = "gqk,gkd->gqd"}> : () -> ()
    %cst_45 = arith.constant dense<0.000000e+00> : vector<8x8x8xf32>
    %66 = tpu.matmul %65, %53, %cst_45 {dimension_numbers = #tpu.dot_dimension_numbers<[2], [1], [1], [2], [0, 0, 0, 1, 1, 2], [0], [0]>} : vector<8x8x8xf32>, vector<8x8x8xf32>, vector<8x8x8xf32> -> vector<8x8x8xf32>
    "tpu.trace_stop"() : () -> ()
    %c0_46 = arith.constant 0 : index
    %c0_47 = arith.constant 0 : index
    %c0_48 = arith.constant 0 : index
    %c0_49 = arith.constant 0 : index
    %67 = vector.load %arg10[%c0_46, %c0_47, %c0_48, %c0_49] : memref<2x8x8x32xf32, #tpu.memory_space<vmem>>, vector<1x8x8x32xf32>
    %68 = vector.shape_cast %67 : vector<1x8x8x32xf32> to vector<8x8x32xf32>
    "tpu.trace_start"() <{level = 10 : i32, message = "gsk,gkd->gsd"}> : () -> ()
    %cst_50 = arith.constant dense<0.000000e+00> : vector<8x8x32xf32>
    %69 = tpu.matmul %66, %68, %cst_50 {dimension_numbers = #tpu.dot_dimension_numbers<[2], [1], [1], [2], [0, 0, 0, 1, 1, 2], [0], [0]>} : vector<8x8x8xf32>, vector<8x8x32xf32>, vector<8x8x32xf32> -> vector<8x8x32xf32>
    "tpu.trace_stop"() : () -> ()
    %70 = vector.shape_cast %69 : vector<8x8x32xf32> to vector<2x4x8x32xf32>
    %71 = vector.extract_strided_slice %70 {offsets = [0, 0, 0, 0], sizes = [2, 1, 8, 32], strides = [1, 1, 1, 1]} : vector<2x4x8x32xf32> to vector<2x1x8x32xf32>
    %72 = vector.shape_cast %71 : vector<2x1x8x32xf32> to vector<2x8x32xf32>
    %73 = vector.extract_strided_slice %70 {offsets = [0, 1, 0, 0], sizes = [2, 1, 8, 32], strides = [1, 1, 1, 1]} : vector<2x4x8x32xf32> to vector<2x1x8x32xf32>
    %74 = vector.shape_cast %73 : vector<2x1x8x32xf32> to vector<2x8x32xf32>
    %75 = arith.addf %72, %74 : vector<2x8x32xf32>
    %76 = vector.extract_strided_slice %70 {offsets = [0, 2, 0, 0], sizes = [2, 1, 8, 32], strides = [1, 1, 1, 1]} : vector<2x4x8x32xf32> to vector<2x1x8x32xf32>
    %77 = vector.shape_cast %76 : vector<2x1x8x32xf32> to vector<2x8x32xf32>
    %78 = arith.addf %75, %77 : vector<2x8x32xf32>
    %79 = vector.extract_strided_slice %70 {offsets = [0, 3, 0, 0], sizes = [2, 1, 8, 32], strides = [1, 1, 1, 1]} : vector<2x4x8x32xf32> to vector<2x1x8x32xf32>
    %80 = vector.shape_cast %79 : vector<2x1x8x32xf32> to vector<2x8x32xf32>
    %81 = arith.addf %78, %80 : vector<2x8x32xf32>
    %82 = vector.shape_cast %81 : vector<2x8x32xf32> to vector<16x32xf32>
    %83 = arith.addf %1, %82 : vector<16x32xf32>
    %c0_51 = arith.constant 0 : index
    %c0_52 = arith.constant 0 : index
    %c0_53 = arith.constant 0 : index
    %84 = vector.load %arg11[%c0_51, %c0_52, %c0_53] : memref<2x1x32xf32, #tpu.memory_space<vmem>>, vector<1x1x32xf32>
    %85 = vector.shape_cast %84 : vector<1x1x32xf32> to vector<1x32xf32>
    %86 = vector.broadcast %85 : vector<1x32xf32> to vector<16x32xf32>
    %87 = arith.addf %83, %86 : vector<16x32xf32>
    %c0_54 = arith.constant 0 : index
    %c0_55 = arith.constant 0 : index
    %c0_56 = arith.constant 0 : index
    %88 = vector.load %arg12[%c0_54, %c0_55, %c0_56] : memref<2x1x32xf32, #tpu.memory_space<vmem>>, vector<1x1x32xf32>
    %89 = vector.shape_cast %88 : vector<1x1x32xf32> to vector<1x32xf32>
    %c0_57 = arith.constant 0 : index
    %c0_58 = arith.constant 0 : index
    %c0_59 = arith.constant 0 : index
    %90 = vector.load %arg13[%c0_57, %c0_58, %c0_59] : memref<2x1x32xf32, #tpu.memory_space<vmem>>, vector<1x1x32xf32>
    %91 = vector.shape_cast %90 : vector<1x1x32xf32> to vector<1x32xf32>
    %cst_60 = arith.constant dense<0.000000e+00> : vector<16xf32>
    %92 = vector.multi_reduction <add>, %87, %cst_60 [1] : vector<16x32xf32> to vector<16xf32>
    %93 = vector.shape_cast %92 : vector<16xf32> to vector<16x1xf32>
    %cst_61 = arith.constant 3.200000e+01 : f32
    %94 = vector.broadcast %cst_61 : f32 to vector<16x1xf32>
    %95 = arith.divf %93, %94 : vector<16x1xf32>
    %96 = vector.broadcast %95 : vector<16x1xf32> to vector<16x32xf32>
    %97 = arith.subf %87, %96 : vector<16x32xf32>
    %98 = arith.mulf %97, %97 : vector<16x32xf32>
    %cst_62 = arith.constant dense<0.000000e+00> : vector<16xf32>
    %99 = vector.multi_reduction <add>, %98, %cst_62 [1] : vector<16x32xf32> to vector<16xf32>
    %100 = vector.shape_cast %99 : vector<16xf32> to vector<16x1xf32>
    %cst_63 = arith.constant 3.200000e+01 : f32
    %101 = vector.broadcast %cst_63 : f32 to vector<16x1xf32>
    %102 = arith.divf %100, %101 : vector<16x1xf32>
    %103 = vector.broadcast %95 : vector<16x1xf32> to vector<16x32xf32>
    %104 = arith.subf %87, %103 : vector<16x32xf32>
    %cst_64 = arith.constant 9.99999974E-6 : f32
    %105 = vector.broadcast %cst_64 : f32 to vector<16x1xf32>
    %106 = arith.addf %102, %105 : vector<16x1xf32>
    %107 = math.rsqrt %106 : vector<16x1xf32>
    %108 = vector.broadcast %107 : vector<16x1xf32> to vector<16x32xf32>
    %109 = arith.mulf %104, %108 : vector<16x32xf32>
    %110 = vector.broadcast %89 : vector<1x32xf32> to vector<16x32xf32>
    %111 = arith.mulf %109, %110 : vector<16x32xf32>
    %112 = vector.broadcast %91 : vector<1x32xf32> to vector<16x32xf32>
    %113 = arith.addf %111, %112 : vector<16x32xf32>
    %c0_65 = arith.constant 0 : index
    %c0_66 = arith.constant 0 : index
    %c0_67 = arith.constant 0 : index
    %114 = vector.load %arg14[%c0_65, %c0_66, %c0_67] : memref<2x32x64xf32, #tpu.memory_space<vmem>>, vector<1x32x64xf32>
    %115 = vector.shape_cast %114 : vector<1x32x64xf32> to vector<32x64xf32>
    %cst_68 = arith.constant dense<0.000000e+00> : vector<16x64xf32>
    %116 = tpu.matmul %113, %115, %cst_68 {dimension_numbers = #tpu.dot_dimension_numbers<[1], [0], [0], [1], [0, 0, 1, 1], [], []>} : vector<16x32xf32>, vector<32x64xf32>, vector<16x64xf32> -> vector<16x64xf32>
    %c0_69 = arith.constant 0 : index
    %c0_70 = arith.constant 0 : index
    %c0_71 = arith.constant 0 : index
    %117 = vector.load %arg15[%c0_69, %c0_70, %c0_71] : memref<2x1x64xf32, #tpu.memory_space<vmem>>, vector<1x1x64xf32>
    %118 = vector.shape_cast %117 : vector<1x1x64xf32> to vector<1x64xf32>
    %119 = vector.broadcast %118 : vector<1x64xf32> to vector<16x64xf32>
    %120 = arith.addf %116, %119 : vector<16x64xf32>
    %cst_72 = arith.constant 0.000000e+00 : f32
    %121 = vector.broadcast %cst_72 : f32 to vector<16x64xf32>
    %122 = arith.maximumf %120, %121 : vector<16x64xf32>
    %c0_73 = arith.constant 0 : index
    %c0_74 = arith.constant 0 : index
    %c0_75 = arith.constant 0 : index
    %123 = vector.load %arg16[%c0_73, %c0_74, %c0_75] : memref<2x64x32xf32, #tpu.memory_space<vmem>>, vector<1x64x32xf32>
    %124 = vector.shape_cast %123 : vector<1x64x32xf32> to vector<64x32xf32>
    %cst_76 = arith.constant dense<0.000000e+00> : vector<16x32xf32>
    %125 = tpu.matmul %122, %124, %cst_76 {dimension_numbers = #tpu.dot_dimension_numbers<[1], [0], [0], [1], [0, 0, 1, 1], [], []>} : vector<16x64xf32>, vector<64x32xf32>, vector<16x32xf32> -> vector<16x32xf32>
    %126 = arith.addf %87, %125 : vector<16x32xf32>
    %c0_77 = arith.constant 0 : index
    %c0_78 = arith.constant 0 : index
    %c0_79 = arith.constant 0 : index
    %127 = vector.load %arg17[%c0_77, %c0_78, %c0_79] : memref<2x1x32xf32, #tpu.memory_space<vmem>>, vector<1x1x32xf32>
    %128 = vector.shape_cast %127 : vector<1x1x32xf32> to vector<1x32xf32>
    %129 = vector.broadcast %128 : vector<1x32xf32> to vector<16x32xf32>
    %130 = arith.addf %126, %129 : vector<16x32xf32>
    %c1 = arith.constant 1 : index
    %c0_80 = arith.constant 0 : index
    %c0_81 = arith.constant 0 : index
    %131 = vector.load %arg2[%c1, %c0_80, %c0_81] : memref<2x1x32xf32, #tpu.memory_space<vmem>>, vector<1x1x32xf32>
    %132 = vector.shape_cast %131 : vector<1x1x32xf32> to vector<1x32xf32>
    %c1_82 = arith.constant 1 : index
    %c0_83 = arith.constant 0 : index
    %c0_84 = arith.constant 0 : index
    %133 = vector.load %arg3[%c1_82, %c0_83, %c0_84] : memref<2x1x32xf32, #tpu.memory_space<vmem>>, vector<1x1x32xf32>
    %134 = vector.shape_cast %133 : vector<1x1x32xf32> to vector<1x32xf32>
    %cst_85 = arith.constant dense<0.000000e+00> : vector<16xf32>
    %135 = vector.multi_reduction <add>, %130, %cst_85 [1] : vector<16x32xf32> to vector<16xf32>
    %136 = vector.shape_cast %135 : vector<16xf32> to vector<16x1xf32>
    %cst_86 = arith.constant 3.200000e+01 : f32
    %137 = vector.broadcast %cst_86 : f32 to vector<16x1xf32>
    %138 = arith.divf %136, %137 : vector<16x1xf32>
    %139 = vector.broadcast %138 : vector<16x1xf32> to vector<16x32xf32>
    %140 = arith.subf %130, %139 : vector<16x32xf32>
    %141 = arith.mulf %140, %140 : vector<16x32xf32>
    %cst_87 = arith.constant dense<0.000000e+00> : vector<16xf32>
    %142 = vector.multi_reduction <add>, %141, %cst_87 [1] : vector<16x32xf32> to vector<16xf32>
    %143 = vector.shape_cast %142 : vector<16xf32> to vector<16x1xf32>
    %cst_88 = arith.constant 3.200000e+01 : f32
    %144 = vector.broadcast %cst_88 : f32 to vector<16x1xf32>
    %145 = arith.divf %143, %144 : vector<16x1xf32>
    %146 = vector.broadcast %138 : vector<16x1xf32> to vector<16x32xf32>
    %147 = arith.subf %130, %146 : vector<16x32xf32>
    %cst_89 = arith.constant 9.99999974E-6 : f32
    %148 = vector.broadcast %cst_89 : f32 to vector<16x1xf32>
    %149 = arith.addf %145, %148 : vector<16x1xf32>
    %150 = math.rsqrt %149 : vector<16x1xf32>
    %151 = vector.broadcast %150 : vector<16x1xf32> to vector<16x32xf32>
    %152 = arith.mulf %147, %151 : vector<16x32xf32>
    %153 = vector.broadcast %132 : vector<1x32xf32> to vector<16x32xf32>
    %154 = arith.mulf %152, %153 : vector<16x32xf32>
    %155 = vector.broadcast %134 : vector<1x32xf32> to vector<16x32xf32>
    %156 = arith.addf %154, %155 : vector<16x32xf32>
    %157 = vector.shape_cast %156 : vector<16x32xf32> to vector<2x1x8x32xf32>
    %158 = vector.shape_cast %157 : vector<2x1x8x32xf32> to vector<2x1x8x32xf32>
    %159 = vector.broadcast %158 : vector<2x1x8x32xf32> to vector<2x4x8x32xf32>
    %160 = vector.shape_cast %159 : vector<2x4x8x32xf32> to vector<8x8x32xf32>
    %c1_90 = arith.constant 1 : index
    %c0_91 = arith.constant 0 : index
    %c0_92 = arith.constant 0 : index
    %c0_93 = arith.constant 0 : index
    %161 = vector.load %arg4[%c1_90, %c0_91, %c0_92, %c0_93] : memref<2x8x32x8xf32, #tpu.memory_space<vmem>>, vector<1x8x32x8xf32>
    %162 = vector.shape_cast %161 : vector<1x8x32x8xf32> to vector<8x32x8xf32>
    "tpu.trace_start"() <{level = 10 : i32, message = "gsd,gdk->gsk"}> : () -> ()
    %cst_94 = arith.constant dense<0.000000e+00> : vector<8x8x8xf32>
    %163 = tpu.matmul %160, %162, %cst_94 {dimension_numbers = #tpu.dot_dimension_numbers<[2], [1], [1], [2], [0, 0, 0, 1, 1, 2], [0], [0]>} : vector<8x8x32xf32>, vector<8x32x8xf32>, vector<8x8x8xf32> -> vector<8x8x8xf32>
    "tpu.trace_stop"() : () -> ()
    %c1_95 = arith.constant 1 : index
    %c0_96 = arith.constant 0 : index
    %c0_97 = arith.constant 0 : index
    %c0_98 = arith.constant 0 : index
    %164 = vector.load %arg5[%c1_95, %c0_96, %c0_97, %c0_98] : memref<2x8x1x8xf32, #tpu.memory_space<vmem>>, vector<1x8x1x8xf32>
    %165 = vector.shape_cast %164 : vector<1x8x1x8xf32> to vector<8x1x8xf32>
    %166 = vector.broadcast %165 : vector<8x1x8xf32> to vector<8x8x8xf32>
    %167 = arith.addf %163, %166 : vector<8x8x8xf32>
    %c1_99 = arith.constant 1 : index
    %c0_100 = arith.constant 0 : index
    %c0_101 = arith.constant 0 : index
    %c0_102 = arith.constant 0 : index
    %168 = vector.load %arg6[%c1_99, %c0_100, %c0_101, %c0_102] : memref<2x8x32x8xf32, #tpu.memory_space<vmem>>, vector<1x8x32x8xf32>
    %169 = vector.shape_cast %168 : vector<1x8x32x8xf32> to vector<8x32x8xf32>
    "tpu.trace_start"() <{level = 10 : i32, message = "gsd,gdk->gsk"}> : () -> ()
    %cst_103 = arith.constant dense<0.000000e+00> : vector<8x8x8xf32>
    %170 = tpu.matmul %160, %169, %cst_103 {dimension_numbers = #tpu.dot_dimension_numbers<[2], [1], [1], [2], [0, 0, 0, 1, 1, 2], [0], [0]>} : vector<8x8x32xf32>, vector<8x32x8xf32>, vector<8x8x8xf32> -> vector<8x8x8xf32>
    "tpu.trace_stop"() : () -> ()
    %c1_104 = arith.constant 1 : index
    %c0_105 = arith.constant 0 : index
    %c0_106 = arith.constant 0 : index
    %c0_107 = arith.constant 0 : index
    %171 = vector.load %arg7[%c1_104, %c0_105, %c0_106, %c0_107] : memref<2x8x1x8xf32, #tpu.memory_space<vmem>>, vector<1x8x1x8xf32>
    %172 = vector.shape_cast %171 : vector<1x8x1x8xf32> to vector<8x1x8xf32>
    %173 = vector.broadcast %172 : vector<8x1x8xf32> to vector<8x8x8xf32>
    %174 = arith.addf %170, %173 : vector<8x8x8xf32>
    %c1_108 = arith.constant 1 : index
    %c0_109 = arith.constant 0 : index
    %c0_110 = arith.constant 0 : index
    %c0_111 = arith.constant 0 : index
    %175 = vector.load %arg8[%c1_108, %c0_109, %c0_110, %c0_111] : memref<2x8x32x8xf32, #tpu.memory_space<vmem>>, vector<1x8x32x8xf32>
    %176 = vector.shape_cast %175 : vector<1x8x32x8xf32> to vector<8x32x8xf32>
    "tpu.trace_start"() <{level = 10 : i32, message = "gsd,gdk->gsk"}> : () -> ()
    %cst_112 = arith.constant dense<0.000000e+00> : vector<8x8x8xf32>
    %177 = tpu.matmul %160, %176, %cst_112 {dimension_numbers = #tpu.dot_dimension_numbers<[2], [1], [1], [2], [0, 0, 0, 1, 1, 2], [0], [0]>} : vector<8x8x32xf32>, vector<8x32x8xf32>, vector<8x8x8xf32> -> vector<8x8x8xf32>
    "tpu.trace_stop"() : () -> ()
    %c1_113 = arith.constant 1 : index
    %c0_114 = arith.constant 0 : index
    %c0_115 = arith.constant 0 : index
    %c0_116 = arith.constant 0 : index
    %178 = vector.load %arg9[%c1_113, %c0_114, %c0_115, %c0_116] : memref<2x8x1x8xf32, #tpu.memory_space<vmem>>, vector<1x8x1x8xf32>
    %179 = vector.shape_cast %178 : vector<1x8x1x8xf32> to vector<8x1x8xf32>
    %180 = vector.broadcast %179 : vector<8x1x8xf32> to vector<8x8x8xf32>
    %181 = arith.addf %177, %180 : vector<8x8x8xf32>
    "tpu.trace_start"() <{level = 10 : i32, message = "gqd,gkd->gqk"}> : () -> ()
    %cst_117 = arith.constant dense<0.000000e+00> : vector<8x8x8xf32>
    %182 = tpu.matmul %167, %174, %cst_117 {dimension_numbers = #tpu.dot_dimension_numbers<[2], [2], [1], [1], [0, 0, 0, 1, 1, 1], [0], [0]>} : vector<8x8x8xf32>, vector<8x8x8xf32>, vector<8x8x8xf32> -> vector<8x8x8xf32>
    "tpu.trace_stop"() : () -> ()
    %183 = arith.addf %182, %2 : vector<8x8x8xf32>
    %cst_118 = arith.constant dense<0xFF800000> : vector<8x8xf32>
    %184 = vector.multi_reduction <maximumf>, %183, %cst_118 [2] : vector<8x8x8xf32> to vector<8x8xf32>
    %185 = vector.shape_cast %184 : vector<8x8xf32> to vector<8x8x1xf32>
    %186 = vector.broadcast %185 : vector<8x8x1xf32> to vector<8x8x8xf32>
    %187 = arith.subf %183, %186 : vector<8x8x8xf32>
    %188 = math.exp %187 : vector<8x8x8xf32>
    %cst_119 = arith.constant dense<0.000000e+00> : vector<8x8xf32>
    %189 = vector.multi_reduction <add>, %188, %cst_119 [2] : vector<8x8x8xf32> to vector<8x8xf32>
    %190 = vector.shape_cast %189 : vector<8x8xf32> to vector<8x8x1xf32>
    %191 = tpu.reciprocal %190 {approx = true} : vector<8x8x1xf32> -> vector<8x8x1xf32>
    %192 = vector.broadcast %191 : vector<8x8x1xf32> to vector<8x8x8xf32>
    %193 = arith.mulf %188, %192 : vector<8x8x8xf32>
    "tpu.trace_start"() <{level = 10 : i32, message = "gqk,gkd->gqd"}> : () -> ()
    %cst_120 = arith.constant dense<0.000000e+00> : vector<8x8x8xf32>
    %194 = tpu.matmul %193, %181, %cst_120 {dimension_numbers = #tpu.dot_dimension_numbers<[2], [1], [1], [2], [0, 0, 0, 1, 1, 2], [0], [0]>} : vector<8x8x8xf32>, vector<8x8x8xf32>, vector<8x8x8xf32> -> vector<8x8x8xf32>
    "tpu.trace_stop"() : () -> ()
    %c1_121 = arith.constant 1 : index
    %c0_122 = arith.constant 0 : index
    %c0_123 = arith.constant 0 : index
    %c0_124 = arith.constant 0 : index
    %195 = vector.load %arg10[%c1_121, %c0_122, %c0_123, %c0_124] : memref<2x8x8x32xf32, #tpu.memory_space<vmem>>, vector<1x8x8x32xf32>
    %196 = vector.shape_cast %195 : vector<1x8x8x32xf32> to vector<8x8x32xf32>
    "tpu.trace_start"() <{level = 10 : i32, message = "gsk,gkd->gsd"}> : () -> ()
    %cst_125 = arith.constant dense<0.000000e+00> : vector<8x8x32xf32>
    %197 = tpu.matmul %194, %196, %cst_125 {dimension_numbers = #tpu.dot_dimension_numbers<[2], [1], [1], [2], [0, 0, 0, 1, 1, 2], [0], [0]>} : vector<8x8x8xf32>, vector<8x8x32xf32>, vector<8x8x32xf32> -> vector<8x8x32xf32>
    "tpu.trace_stop"() : () -> ()
    %198 = vector.shape_cast %197 : vector<8x8x32xf32> to vector<2x4x8x32xf32>
    %199 = vector.extract_strided_slice %198 {offsets = [0, 0, 0, 0], sizes = [2, 1, 8, 32], strides = [1, 1, 1, 1]} : vector<2x4x8x32xf32> to vector<2x1x8x32xf32>
    %200 = vector.shape_cast %199 : vector<2x1x8x32xf32> to vector<2x8x32xf32>
    %201 = vector.extract_strided_slice %198 {offsets = [0, 1, 0, 0], sizes = [2, 1, 8, 32], strides = [1, 1, 1, 1]} : vector<2x4x8x32xf32> to vector<2x1x8x32xf32>
    %202 = vector.shape_cast %201 : vector<2x1x8x32xf32> to vector<2x8x32xf32>
    %203 = arith.addf %200, %202 : vector<2x8x32xf32>
    %204 = vector.extract_strided_slice %198 {offsets = [0, 2, 0, 0], sizes = [2, 1, 8, 32], strides = [1, 1, 1, 1]} : vector<2x4x8x32xf32> to vector<2x1x8x32xf32>
    %205 = vector.shape_cast %204 : vector<2x1x8x32xf32> to vector<2x8x32xf32>
    %206 = arith.addf %203, %205 : vector<2x8x32xf32>
    %207 = vector.extract_strided_slice %198 {offsets = [0, 3, 0, 0], sizes = [2, 1, 8, 32], strides = [1, 1, 1, 1]} : vector<2x4x8x32xf32> to vector<2x1x8x32xf32>
    %208 = vector.shape_cast %207 : vector<2x1x8x32xf32> to vector<2x8x32xf32>
    %209 = arith.addf %206, %208 : vector<2x8x32xf32>
    %210 = vector.shape_cast %209 : vector<2x8x32xf32> to vector<16x32xf32>
    %211 = arith.addf %130, %210 : vector<16x32xf32>
    %c1_126 = arith.constant 1 : index
    %c0_127 = arith.constant 0 : index
    %c0_128 = arith.constant 0 : index
    %212 = vector.load %arg11[%c1_126, %c0_127, %c0_128] : memref<2x1x32xf32, #tpu.memory_space<vmem>>, vector<1x1x32xf32>
    %213 = vector.shape_cast %212 : vector<1x1x32xf32> to vector<1x32xf32>
    %214 = vector.broadcast %213 : vector<1x32xf32> to vector<16x32xf32>
    %215 = arith.addf %211, %214 : vector<16x32xf32>
    %c1_129 = arith.constant 1 : index
    %c0_130 = arith.constant 0 : index
    %c0_131 = arith.constant 0 : index
    %216 = vector.load %arg12[%c1_129, %c0_130, %c0_131] : memref<2x1x32xf32, #tpu.memory_space<vmem>>, vector<1x1x32xf32>
    %217 = vector.shape_cast %216 : vector<1x1x32xf32> to vector<1x32xf32>
    %c1_132 = arith.constant 1 : index
    %c0_133 = arith.constant 0 : index
    %c0_134 = arith.constant 0 : index
    %218 = vector.load %arg13[%c1_132, %c0_133, %c0_134] : memref<2x1x32xf32, #tpu.memory_space<vmem>>, vector<1x1x32xf32>
    %219 = vector.shape_cast %218 : vector<1x1x32xf32> to vector<1x32xf32>
    %cst_135 = arith.constant dense<0.000000e+00> : vector<16xf32>
    %220 = vector.multi_reduction <add>, %215, %cst_135 [1] : vector<16x32xf32> to vector<16xf32>
    %221 = vector.shape_cast %220 : vector<16xf32> to vector<16x1xf32>
    %cst_136 = arith.constant 3.200000e+01 : f32
    %222 = vector.broadcast %cst_136 : f32 to vector<16x1xf32>
    %223 = arith.divf %221, %222 : vector<16x1xf32>
    %224 = vector.broadcast %223 : vector<16x1xf32> to vector<16x32xf32>
    %225 = arith.subf %215, %224 : vector<16x32xf32>
    %226 = arith.mulf %225, %225 : vector<16x32xf32>
    %cst_137 = arith.constant dense<0.000000e+00> : vector<16xf32>
    %227 = vector.multi_reduction <add>, %226, %cst_137 [1] : vector<16x32xf32> to vector<16xf32>
    %228 = vector.shape_cast %227 : vector<16xf32> to vector<16x1xf32>
    %cst_138 = arith.constant 3.200000e+01 : f32
    %229 = vector.broadcast %cst_138 : f32 to vector<16x1xf32>
    %230 = arith.divf %228, %229 : vector<16x1xf32>
    %231 = vector.broadcast %223 : vector<16x1xf32> to vector<16x32xf32>
    %232 = arith.subf %215, %231 : vector<16x32xf32>
    %cst_139 = arith.constant 9.99999974E-6 : f32
    %233 = vector.broadcast %cst_139 : f32 to vector<16x1xf32>
    %234 = arith.addf %230, %233 : vector<16x1xf32>
    %235 = math.rsqrt %234 : vector<16x1xf32>
    %236 = vector.broadcast %235 : vector<16x1xf32> to vector<16x32xf32>
    %237 = arith.mulf %232, %236 : vector<16x32xf32>
    %238 = vector.broadcast %217 : vector<1x32xf32> to vector<16x32xf32>
    %239 = arith.mulf %237, %238 : vector<16x32xf32>
    %240 = vector.broadcast %219 : vector<1x32xf32> to vector<16x32xf32>
    %241 = arith.addf %239, %240 : vector<16x32xf32>
    %c1_140 = arith.constant 1 : index
    %c0_141 = arith.constant 0 : index
    %c0_142 = arith.constant 0 : index
    %242 = vector.load %arg14[%c1_140, %c0_141, %c0_142] : memref<2x32x64xf32, #tpu.memory_space<vmem>>, vector<1x32x64xf32>
    %243 = vector.shape_cast %242 : vector<1x32x64xf32> to vector<32x64xf32>
    %cst_143 = arith.constant dense<0.000000e+00> : vector<16x64xf32>
    %244 = tpu.matmul %241, %243, %cst_143 {dimension_numbers = #tpu.dot_dimension_numbers<[1], [0], [0], [1], [0, 0, 1, 1], [], []>} : vector<16x32xf32>, vector<32x64xf32>, vector<16x64xf32> -> vector<16x64xf32>
    %c1_144 = arith.constant 1 : index
    %c0_145 = arith.constant 0 : index
    %c0_146 = arith.constant 0 : index
    %245 = vector.load %arg15[%c1_144, %c0_145, %c0_146] : memref<2x1x64xf32, #tpu.memory_space<vmem>>, vector<1x1x64xf32>
    %246 = vector.shape_cast %245 : vector<1x1x64xf32> to vector<1x64xf32>
    %247 = vector.broadcast %246 : vector<1x64xf32> to vector<16x64xf32>
    %248 = arith.addf %244, %247 : vector<16x64xf32>
    %cst_147 = arith.constant 0.000000e+00 : f32
    %249 = vector.broadcast %cst_147 : f32 to vector<16x64xf32>
    %250 = arith.maximumf %248, %249 : vector<16x64xf32>
    %c1_148 = arith.constant 1 : index
    %c0_149 = arith.constant 0 : index
    %c0_150 = arith.constant 0 : index
    %251 = vector.load %arg16[%c1_148, %c0_149, %c0_150] : memref<2x64x32xf32, #tpu.memory_space<vmem>>, vector<1x64x32xf32>
    %252 = vector.shape_cast %251 : vector<1x64x32xf32> to vector<64x32xf32>
    %cst_151 = arith.constant dense<0.000000e+00> : vector<16x32xf32>
    %253 = tpu.matmul %250, %252, %cst_151 {dimension_numbers = #tpu.dot_dimension_numbers<[1], [0], [0], [1], [0, 0, 1, 1], [], []>} : vector<16x64xf32>, vector<64x32xf32>, vector<16x32xf32> -> vector<16x32xf32>
    %254 = arith.addf %215, %253 : vector<16x32xf32>
    %c1_152 = arith.constant 1 : index
    %c0_153 = arith.constant 0 : index
    %c0_154 = arith.constant 0 : index
    %255 = vector.load %arg17[%c1_152, %c0_153, %c0_154] : memref<2x1x32xf32, #tpu.memory_space<vmem>>, vector<1x1x32xf32>
    %256 = vector.shape_cast %255 : vector<1x1x32xf32> to vector<1x32xf32>
    %257 = vector.broadcast %256 : vector<1x32xf32> to vector<16x32xf32>
    %258 = arith.addf %254, %257 : vector<16x32xf32>
    %c0_155 = arith.constant 0 : index
    %c0_156 = arith.constant 0 : index
    %259 = vector.load %arg18[%c0_155, %c0_156] : memref<1x32xf32, #tpu.memory_space<vmem>>, vector<1x32xf32>
    %c0_157 = arith.constant 0 : index
    %c0_158 = arith.constant 0 : index
    %260 = vector.load %arg19[%c0_157, %c0_158] : memref<1x32xf32, #tpu.memory_space<vmem>>, vector<1x32xf32>
    %cst_159 = arith.constant dense<0.000000e+00> : vector<16xf32>
    %261 = vector.multi_reduction <add>, %258, %cst_159 [1] : vector<16x32xf32> to vector<16xf32>
    %262 = vector.shape_cast %261 : vector<16xf32> to vector<16x1xf32>
    %cst_160 = arith.constant 3.200000e+01 : f32
    %263 = vector.broadcast %cst_160 : f32 to vector<16x1xf32>
    %264 = arith.divf %262, %263 : vector<16x1xf32>
    %265 = vector.broadcast %264 : vector<16x1xf32> to vector<16x32xf32>
    %266 = arith.subf %258, %265 : vector<16x32xf32>
    %267 = arith.mulf %266, %266 : vector<16x32xf32>
    %cst_161 = arith.constant dense<0.000000e+00> : vector<16xf32>
    %268 = vector.multi_reduction <add>, %267, %cst_161 [1] : vector<16x32xf32> to vector<16xf32>
    %269 = vector.shape_cast %268 : vector<16xf32> to vector<16x1xf32>
    %cst_162 = arith.constant 3.200000e+01 : f32
    %270 = vector.broadcast %cst_162 : f32 to vector<16x1xf32>
    %271 = arith.divf %269, %270 : vector<16x1xf32>
    %272 = vector.broadcast %264 : vector<16x1xf32> to vector<16x32xf32>
    %273 = arith.subf %258, %272 : vector<16x32xf32>
    %cst_163 = arith.constant 9.99999974E-6 : f32
    %274 = vector.broadcast %cst_163 : f32 to vector<16x1xf32>
    %275 = arith.addf %271, %274 : vector<16x1xf32>
    %276 = math.rsqrt %275 : vector<16x1xf32>
    %277 = vector.broadcast %276 : vector<16x1xf32> to vector<16x32xf32>
    %278 = arith.mulf %273, %277 : vector<16x32xf32>
    %279 = vector.broadcast %259 : vector<1x32xf32> to vector<16x32xf32>
    %280 = arith.mulf %278, %279 : vector<16x32xf32>
    %281 = vector.broadcast %260 : vector<1x32xf32> to vector<16x32xf32>
    %282 = arith.addf %280, %281 : vector<16x32xf32>
    %283 = vector.shape_cast %282 : vector<16x32xf32> to vector<2x8x32xf32>
    %c0_164 = arith.constant 0 : index
    %c0_165 = arith.constant 0 : index
    %c0_166 = arith.constant 0 : index
    %284 = vector.load %arg20[%c0_164, %c0_165, %c0_166] : memref<2x8x32xf32, #tpu.memory_space<vmem>>, vector<2x8x32xf32>
    tpu.vector_store %arg20[%c0_164, %c0_165, %c0_166], %283 {strides = array<i32>} : memref<2x8x32xf32, #tpu.memory_space<vmem>>, vector<2x8x32xf32>,
    return
  }
}

</mosaic_0001>

<llo_original>
// kernel: encoder_forward.1
$region0: #{encoder_forward.1}
  #allocation0 [shape = 'u32[]', space=smem, size = 0x4, offset = 0x4, fixed_abs, tag = 'smem constant byte address 0x4 - core index']
  #allocation1 [shape = 'u32[72,128]{1,0:T(1,128)}', space=vmem, size = 0x9000, scoped, tag = 'internal scratch']
  %s0 = inlined_call_operand.vmem [shape: f32[2,8,32], index: 0, kind: input, shape index: {}]
  %s1 = inlined_call_operand.vmem [shape: f32[8,8,8], index: 1, kind: input, shape index: {}]
  %s2 = inlined_call_operand.vmem [shape: f32[2,1,32], index: 2, kind: input, shape index: {}]
  %s3 = inlined_call_operand.vmem [shape: f32[2,1,32], index: 3, kind: input, shape index: {}]
  %s4 = inlined_call_operand.vmem [shape: f32[2,8,32,8], index: 4, kind: input, shape index: {}]
  %s5 = inlined_call_operand.vmem [shape: f32[2,8,1,8], index: 5, kind: input, shape index: {}]
  %s6 = inlined_call_operand.vmem [shape: f32[2,8,32,8], index: 6, kind: input, shape index: {}]
  %s7 = inlined_call_operand.vmem [shape: f32[2,8,1,8], index: 7, kind: input, shape index: {}]
  %s8 = inlined_call_operand.vmem [shape: f32[2,8,32,8], index: 8, kind: input, shape index: {}]
  %s9 = inlined_call_operand.vmem [shape: f32[2,8,1,8], index: 9, kind: input, shape index: {}]
  %s10 = inlined_call_operand.vmem [shape: f32[2,8,8,32], index: 10, kind: input, shape index: {}]
  %s11 = inlined_call_operand.vmem [shape: f32[2,1,32], index: 11, kind: input, shape index: {}]
  %s12 = inlined_call_operand.vmem [shape: f32[2,1,32], index: 12, kind: input, shape index: {}]
  %s13 = inlined_call_operand.vmem [shape: f32[2,1,32], index: 13, kind: input, shape index: {}]
  %s14 = inlined_call_operand.vmem [shape: f32[2,32,64], index: 14, kind: input, shape index: {}]
  %s15 = inlined_call_operand.vmem [shape: f32[2,1,64], index: 15, kind: input, shape index: {}]
  %s16 = inlined_call_operand.vmem [shape: f32[2,64,32], index: 16, kind: input, shape index: {}]
  %s17 = inlined_call_operand.vmem [shape: f32[2,1,32], index: 17, kind: input, shape index: {}]
  %s18 = inlined_call_operand.vmem [shape: f32[1,32], index: 18, kind: input, shape index: {}]
  %s19 = inlined_call_operand.vmem [shape: f32[1,32], index: 19, kind: input, shape index: {}]
  %s20 = inlined_call_operand.hbm [shape: f32[2,8,32], index: 20, kind: output, shape index: {}]
  %s21 = sld [smem:[#allocation0]]
  $region90: #{encoder_forward.1} parent=0
    _
  %s23 = ssub.s32 1, %s21
  %s24 = scalar_select 0, %s23, %s21
  $region1: #{encoder_forward.1} parent=0
    #allocation2 [shape = 'u8[8192]{0}', space=vmem, size = 0x2000, scoped, tag = 'output window, operand 0, single buffered']
    #allocation3 [shape = 's32[1]{0}', space=sflag, size = 0x4, scoped, tag = 'scoped memory for encoder_forward.1']
    %25 = vsyncpa [#allocation3], 0
    // Predicated region
    $region2: #{encoder_forward.1} parent=1 // pred_check
      _
    $region3: #{encoder_forward.1} parent=1 // pred_check_branch
      %27 = sbr.rel (0) target = $region5
    $region4: #{encoder_forward.1} parent=1 // pred_region
      _
    $region5: #{encoder_forward.1} parent=1 // pred_fallthru
      _
    // Predicated region
    $region6: #{encoder_forward.1} parent=1 // pred_check
      _
    $region7: #{encoder_forward.1} parent=1 // pred_check_branch
      %29 = sbr.rel (0) target = $region9
    $region8: #{encoder_forward.1} parent=1 // pred_region
      _
    $region9: #{encoder_forward.1} parent=1 // pred_fallthru
      _
    // Predicated region
    $region10: #{encoder_forward.1} parent=1 // pred_check
      _
    $region11: #{encoder_forward.1} parent=1 // pred_check_branch
      %31 = sbr.rel (0) target = $region13
    $region12: #{encoder_forward.1} parent=1 // pred_region
      _
    $region13: #{encoder_forward.1} parent=1 // pred_fallthru
      _
    // Predicated region
    $region14: #{encoder_forward.1} parent=1 // pred_check
      _
    $region15: #{encoder_forward.1} parent=1 // pred_check_branch
      %33 = sbr.rel (0) target = $region17
    $region16: #{encoder_forward.1} parent=1 // pred_region
      _
    $region17: #{encoder_forward.1} parent=1 // pred_fallthru
      _
    // Predicated region
    $region18: #{encoder_forward.1} parent=1 // pred_check
      _
    $region19: #{encoder_forward.1} parent=1 // pred_check_branch
      %35 = sbr.rel (0) target = $region21
    $region20: #{encoder_forward.1} parent=1 // pred_region
      _
    $region21: #{encoder_forward.1} parent=1 // pred_fallthru
      _
    // Predicated region
    $region22: #{encoder_forward.1} parent=1 // pred_check
      _
    $region23: #{encoder_forward.1} parent=1 // pred_check_branch
      %37 = sbr.rel (0) target = $region25
    $region24: #{encoder_forward.1} parent=1 // pred_region
      _
    $region25: #{encoder_forward.1} parent=1 // pred_fallthru
      _
    // Predicated region
    $region26: #{encoder_forward.1} parent=1 // pred_check
      _
    $region27: #{encoder_forward.1} parent=1 // pred_check_branch
      %39 = sbr.rel (0) target = $region29
    $region28: #{encoder_forward.1} parent=1 // pred_region
      _
    $region29: #{encoder_forward.1} parent=1 // pred_fallthru
      _
    // Predicated region
    $region30: #{encoder_forward.1} parent=1 // pred_check
      _
    $region31: #{encoder_forward.1} parent=1 // pred_check_branch
      %41 = sbr.rel (0) target = $region33
    $region32: #{encoder_forward.1} parent=1 // pred_region
      _
    $region33: #{encoder_forward.1} parent=1 // pred_fallthru
      _
    // Predicated region
    $region34: #{encoder_forward.1} parent=1 // pred_check
      _
    $region35: #{encoder_forward.1} parent=1 // pred_check_branch
      %43 = sbr.rel (0) target = $region37
    $region36: #{encoder_forward.1} parent=1 // pred_region
      _
    $region37: #{encoder_forward.1} parent=1 // pred_fallthru
      _
    // Predicated region
    $region38: #{encoder_forward.1} parent=1 // pred_check
      _
    $region39: #{encoder_forward.1} parent=1 // pred_check_branch
      %45 = sbr.rel (0) target = $region41
    $region40: #{encoder_forward.1} parent=1 // pred_region
      _
    $region41: #{encoder_forward.1} parent=1 // pred_fallthru
      _
    // Predicated region
    $region42: #{encoder_forward.1} parent=1 // pred_check
      _
    $region43: #{encoder_forward.1} parent=1 // pred_check_branch
      %47 = sbr.rel (0) target = $region45
    $region44: #{encoder_forward.1} parent=1 // pred_region
      _
    $region45: #{encoder_forward.1} parent=1 // pred_fallthru
      _
    // Predicated region
    $region46: #{encoder_forward.1} parent=1 // pred_check
      _
    $region47: #{encoder_forward.1} parent=1 // pred_check_branch
      %49 = sbr.rel (0) target = $region49
    $region48: #{encoder_forward.1} parent=1 // pred_region
      _
    $region49: #{encoder_forward.1} parent=1 // pred_fallthru
      _
    // Predicated region
    $region50: #{encoder_forward.1} parent=1 // pred_check
      _
    $region51: #{encoder_forward.1} parent=1 // pred_check_branch
      %51 = sbr.rel (0) target = $region53
    $region52: #{encoder_forward.1} parent=1 // pred_region
      _
    $region53: #{encoder_forward.1} parent=1 // pred_fallthru
      _
    // Predicated region
    $region54: #{encoder_forward.1} parent=1 // pred_check
      _
    $region55: #{encoder_forward.1} parent=1 // pred_check_branch
      %53 = sbr.rel (0) target = $region57
    $region56: #{encoder_forward.1} parent=1 // pred_region
      _
    $region57: #{encoder_forward.1} parent=1 // pred_fallthru
      _
    // Predicated region
    $region58: #{encoder_forward.1} parent=1 // pred_check
      _
    $region59: #{encoder_forward.1} parent=1 // pred_check_branch
      %55 = sbr.rel (0) target = $region61
    $region60: #{encoder_forward.1} parent=1 // pred_region
      _
    $region61: #{encoder_forward.1} parent=1 // pred_fallthru
      _
    // Predicated region
    $region62: #{encoder_forward.1} parent=1 // pred_check
      _
    $region63: #{encoder_forward.1} parent=1 // pred_check_branch
      %57 = sbr.rel (0) target = $region65
    $region64: #{encoder_forward.1} parent=1 // pred_region
      _
    $region65: #{encoder_forward.1} parent=1 // pred_fallthru
      _
    // Predicated region
    $region66: #{encoder_forward.1} parent=1 // pred_check
      _
    $region67: #{encoder_forward.1} parent=1 // pred_check_branch
      %59 = sbr.rel (0) target = $region69
    $region68: #{encoder_forward.1} parent=1 // pred_region
      _
    $region69: #{encoder_forward.1} parent=1 // pred_fallthru
      _
    // Predicated region
    $region70: #{encoder_forward.1} parent=1 // pred_check
      _
    $region71: #{encoder_forward.1} parent=1 // pred_check_branch
      %61 = sbr.rel (0) target = $region73
    $region72: #{encoder_forward.1} parent=1 // pred_region
      _
    $region73: #{encoder_forward.1} parent=1 // pred_fallthru
      _
    // Predicated region
    $region74: #{encoder_forward.1} parent=1 // pred_check
      _
    $region75: #{encoder_forward.1} parent=1 // pred_check_branch
      %63 = sbr.rel (0) target = $region77
    $region76: #{encoder_forward.1} parent=1 // pred_region
      _
    $region77: #{encoder_forward.1} parent=1 // pred_fallthru
      _
    // Predicated region
    $region78: #{encoder_forward.1} parent=1 // pred_check
      _
    $region79: #{encoder_forward.1} parent=1 // pred_check_branch
      %65 = sbr.rel (0) target = $region81
    $region80: #{encoder_forward.1} parent=1 // pred_region
      _
    $region81: #{encoder_forward.1} parent=1 // pred_fallthru
      _
    %v66 = vld [vmem:[%s0] sm:$0xff]
    %v67 = vld [vmem:[%s0 + $0x8] sm:$0xff]
    %v68 = vld [vmem:[%s1] sm:$0xff]
    %v69 = vld [vmem:[%s1 + $0x8] sm:$0xff]
    %v70 = vld [vmem:[%s1 + $0x10] sm:$0xff]
    %v71 = vld [vmem:[%s1 + $0x18] sm:$0xff]
    %v72 = vld [vmem:[%s1 + $0x20] sm:$0xff]
    %v73 = vld [vmem:[%s1 + $0x28] sm:$0xff]
    %v74 = vld [vmem:[%s1 + $0x30] sm:$0xff]
    %v75 = vld [vmem:[%s1 + $0x38] sm:$0xff]
    %v76 = vld [vmem:[%s2] sm:$0x1]
    %v77 = vld [vmem:[%s3] sm:$0x1]
    %vm78 = vcmask 261120
    %v79 = vsel %vm78, %v66, 0.0
    %80 = vadd.xlane.f32.xlu0 %v79
    %v81 = vpop.xlane.xlu0 %80
    %v82 = vsel %vm78, %v67, 0.0
    %83 = vadd.xlane.f32.xlu0 %v82
    %v84 = vpop.xlane.xlu0 %83
    %v85 = vrcp.pop 32.0
    %v86 = vmul.f32 32.0, %v85
    %v87 = vsub.f32 1.0, %v86
    %v88 = vmul.f32 %v85, %v87
    %v89 = vadd.f32 %v85, %v88
    %vm90 = vweird.f32 %v85
    %v91 = vsel %vm90, %v85, %v89
    %v92 = vmul.f32 %v81, %v91
    %v93 = vmul.f32 %v84, %v91
    %v94 = vsub.f32 %v66, %v92
    %v95 = vsub.f32 %v67, %v93
    %v96 = vmul.f32 %v94, %v94
    %v97 = vmul.f32 %v95, %v95
    %v98 = vsel %vm78, %v96, 0.0
    %99 = vadd.xlane.f32.xlu0 %v98
    %v100 = vpop.xlane.xlu0 %99
    %v101 = vsel %vm78, %v97, 0.0
    %102 = vadd.xlane.f32.xlu0 %v101
    %v103 = vpop.xlane.xlu0 %102
    %v104 = vmul.f32 %v100, %v91
    %v105 = vmul.f32 %v103, %v91
    %v106 = vadd.f32 %v104, 1e-05
    %v107 = vadd.f32 %v105, 1e-05
    %v108 = vrsqrt.pop %v106
    %v109 = vmul.f32 %v108, %v106
    %v110 = vmul.f32 %v109, %v108
    %v111 = vmul.f32 0.5, %v110
    %v112 = vsub.f32 1.5, %v111
    %v113 = vmul.f32 %v108, %v112
    %vm114 = vweird.f32 %v106
    %vm115 = vweird.f32 %v108
    %vm116 = vmor %vm114, %vm115
    %v117 = vsel %vm116, %v108, %v113
    %v118 = vrsqrt.pop %v107
    %v119 = vmul.f32 %v118, %v107
    %v120 = vmul.f32 %v119, %v118
    %v121 = vmul.f32 0.5, %v120
    %v122 = vsub.f32 1.5, %v121
    %v123 = vmul.f32 %v118, %v122
    %vm124 = vweird.f32 %v107
    %vm125 = vweird.f32 %v118
    %vm126 = vmor %vm124, %vm125
    %v127 = vsel %vm126, %v118, %v123
    %v128 = vmul.f32 %v94, %v117
    %v129 = vmul.f32 %v95, %v127
    %v131 = vperm.slane %v76, 0
    %v133 = vmul.f32 %v128, %v131
    %v134 = vmul.f32 %v129, %v131
    %v136 = vperm.slane %v77, 0
    %v138 = vadd.f32 %v133, %v136
    %v139 = vadd.f32 %v134, %v136
    %v140 = vld [vmem:[%s4] sm:$0xff]
    %v141 = vld [vmem:[%s4 + $0x8] sm:$0xff]
    %v142 = vld [vmem:[%s4 + $0x10] sm:$0xff]
    %v143 = vld [vmem:[%s4 + $0x18] sm:$0xff]
    %v144 = vld [vmem:[%s4 + $0x20] sm:$0xff]
    %v145 = vld [vmem:[%s4 + $0x28] sm:$0xff]
    %v146 = vld [vmem:[%s4 + $0x30] sm:$0xff]
    %v147 = vld [vmem:[%s4 + $0x38] sm:$0xff]
    %v148 = vld [vmem:[%s4 + $0x40] sm:$0xff]
    %v149 = vld [vmem:[%s4 + $0x48] sm:$0xff]
    %v150 = vld [vmem:[%s4 + $0x50] sm:$0xff]
    %v151 = vld [vmem:[%s4 + $0x58] sm:$0xff]
    %v152 = vld [vmem:[%s4 + $0x60] sm:$0xff]
    %v153 = vld [vmem:[%s4 + $0x68] sm:$0xff]
    %v154 = vld [vmem:[%s4 + $0x70] sm:$0xff]
    %v155 = vld [vmem:[%s4 + $0x78] sm:$0xff]
    %v156 = vld [vmem:[%s4 + $0x80] sm:$0xff]
    %v157 = vld [vmem:[%s4 + $0x88] sm:$0xff]
    %v158 = vld [vmem:[%s4 + $0x90] sm:$0xff]
    %v159 = vld [vmem:[%s4 + $0x98] sm:$0xff]
    %v160 = vld [vmem:[%s4 + $0xa0] sm:$0xff]
    %v161 = vld [vmem:[%s4 + $0xa8] sm:$0xff]
    %v162 = vld [vmem:[%s4 + $0xb0] sm:$0xff]
    %v163 = vld [vmem:[%s4 + $0xb8] sm:$0xff]
    %v164 = vld [vmem:[%s4 + $0xc0] sm:$0xff]
    %v165 = vld [vmem:[%s4 + $0xc8] sm:$0xff]
    %v166 = vld [vmem:[%s4 + $0xd0] sm:$0xff]
    %v167 = vld [vmem:[%s4 + $0xd8] sm:$0xff]
    %v168 = vld [vmem:[%s4 + $0xe0] sm:$0xff]
    %v169 = vld [vmem:[%s4 + $0xe8] sm:$0xff]
    %v170 = vld [vmem:[%s4 + $0xf0] sm:$0xff]
    %v171 = vld [vmem:[%s4 + $0xf8] sm:$0xff]
    %v172 = vld [vmem:[%s5] sm:$0x1]
    %v173 = vld [vmem:[%s5 + $0x1] sm:$0x1]
    %v174 = vld [vmem:[%s5 + $0x2] sm:$0x1]
    %v175 = vld [vmem:[%s5 + $0x3] sm:$0x1]
    %v176 = vld [vmem:[%s5 + $0x4] sm:$0x1]
    %v177 = vld [vmem:[%s5 + $0x5] sm:$0x1]
    %v178 = vld [vmem:[%s5 + $0x6] sm:$0x1]
    %v179 = vld [vmem:[%s5 + $0x7] sm:$0x1]
    %v188 = vperm.slane %v172, 0
    %v189 = vperm.slane %v173, 0
    %v190 = vperm.slane %v174, 0
    %v191 = vperm.slane %v175, 0
    %v192 = vperm.slane %v176, 0
    %v193 = vperm.slane %v177, 0
    %v194 = vperm.slane %v178, 0
    %v195 = vperm.slane %v179, 0
    %v205 = vsel %vm78, %v138, 0
    %207 = vmatpush.msra.mxu0 0.0
    %208 = vmatpush.msra.mxu0 0.0
    %209 = vmatpush.msra.mxu0 0.0
    %210 = vmatpush.msra.mxu0 0.0
    %211 = vmatpush.msra.mxu0 0.0
    %212 = vmatpush.msra.mxu0 0.0
    %213 = vmatpush.msra.mxu0 0.0
    %214 = vmatpush.msra.mxu0 0.0
    %215 = vmatpush.msra.mxu0 0.0
    %216 = vmatpush.msra.mxu0 0.0
    %217 = vmatpush.msra.mxu0 0.0
    %218 = vmatpush.msra.mxu0 0.0
    %219 = vmatpush.msra.mxu0 %v143
    %220 = vmatpush.msra.mxu0 %v142
    %221 = vmatpush.msra.mxu0 %v141
    %222 = vmatpush.msra.mxu0 %v140
    %223 = vmatmul.f32.gmra.mxu0 %v205
    %v224 = vpop.f32.mrf.mxu0
    %v225 = vadd.f32 %v188, %v224
    %226 = vdwg.mxu0
    %227 = vmatpush.msra.mxu0 0.0
    %228 = vmatpush.msra.mxu0 0.0
    %229 = vmatpush.msra.mxu0 0.0
    %230 = vmatpush.msra.mxu0 0.0
    %231 = vmatpush.msra.mxu0 0.0
    %232 = vmatpush.msra.mxu0 0.0
    %233 = vmatpush.msra.mxu0 0.0
    %234 = vmatpush.msra.mxu0 0.0
    %235 = vmatpush.msra.mxu0 0.0
    %236 = vmatpush.msra.mxu0 0.0
    %237 = vmatpush.msra.mxu0 0.0
    %238 = vmatpush.msra.mxu0 0.0
    %239 = vmatpush.msra.mxu0 %v147
    %240 = vmatpush.msra.mxu0 %v146
    %241 = vmatpush.msra.mxu0 %v145
    %242 = vmatpush.msra.mxu0 %v144
    %243 = vmatmul.f32.gmra.mxu0 %v205
    %v244 = vpop.f32.mrf.mxu0
    %v245 = vadd.f32 %v189, %v244
    %246 = vdwg.mxu0
    %247 = vmatpush.msra.mxu0 0.0
    %248 = vmatpush.msra.mxu0 0.0
    %249 = vmatpush.msra.mxu0 0.0
    %250 = vmatpush.msra.mxu0 0.0
    %251 = vmatpush.msra.mxu0 0.0
    %252 = vmatpush.msra.mxu0 0.0
    %253 = vmatpush.msra.mxu0 0.0
    %254 = vmatpush.msra.mxu0 0.0
    %255 = vmatpush.msra.mxu0 0.0
    %256 = vmatpush.msra.mxu0 0.0
    %257 = vmatpush.msra.mxu0 0.0
    %258 = vmatpush.msra.mxu0 0.0
    %259 = vmatpush.msra.mxu0 %v151
    %260 = vmatpush.msra.mxu0 %v150
    %261 = vmatpush.msra.mxu0 %v149
    %262 = vmatpush.msra.mxu0 %v148
    %263 = vmatmul.f32.gmra.mxu0 %v205
    %v264 = vpop.f32.mrf.mxu0
    %v265 = vadd.f32 %v190, %v264
    %266 = vdwg.mxu0
    %267 = vmatpush.msra.mxu0 0.0
    %268 = vmatpush.msra.mxu0 0.0
    %269 = vmatpush.msra.mxu0 0.0
    %270 = vmatpush.msra.mxu0 0.0
    %271 = vmatpush.msra.mxu0 0.0
    %272 = vmatpush.msra.mxu0 0.0
    %273 = vmatpush.msra.mxu0 0.0
    %274 = vmatpush.msra.mxu0 0.0
    %275 = vmatpush.msra.mxu0 0.0
    %276 = vmatpush.msra.mxu0 0.0
    %277 = vmatpush.msra.mxu0 0.0
    %278 = vmatpush.msra.mxu0 0.0
    %279 = vmatpush.msra.mxu0 %v155
    %280 = vmatpush.msra.mxu0 %v154
    %281 = vmatpush.msra.mxu0 %v153
    %282 = vmatpush.msra.mxu0 %v152
    %283 = vmatmul.f32.gmra.mxu0 %v205
    %v284 = vpop.f32.mrf.mxu0
    %v285 = vadd.f32 %v191, %v284
    %286 = vdwg.mxu0
    %v288 = vsel %vm78, %v139, 0
    %290 = vmatpush.msra.mxu0 0.0
    %291 = vmatpush.msra.mxu0 0.0
    %292 = vmatpush.msra.mxu0 0.0
    %293 = vmatpush.msra.mxu0 0.0
    %294 = vmatpush.msra.mxu0 0.0
    %295 = vmatpush.msra.mxu0 0.0
    %296 = vmatpush.msra.mxu0 0.0
    %297 = vmatpush.msra.mxu0 0.0
    %298 = vmatpush.msra.mxu0 0.0
    %299 = vmatpush.msra.mxu0 0.0
    %300 = vmatpush.msra.mxu0 0.0
    %301 = vmatpush.msra.mxu0 0.0
    %302 = vmatpush.msra.mxu0 %v159
    %303 = vmatpush.msra.mxu0 %v158
    %304 = vmatpush.msra.mxu0 %v157
    %305 = vmatpush.msra.mxu0 %v156
    %306 = vmatmul.f32.gmra.mxu0 %v288
    %v307 = vpop.f32.mrf.mxu0
    %v308 = vadd.f32 %v192, %v307
    %309 = vdwg.mxu0
    %310 = vmatpush.msra.mxu0 0.0
    %311 = vmatpush.msra.mxu0 0.0
    %312 = vmatpush.msra.mxu0 0.0
    %313 = vmatpush.msra.mxu0 0.0
    %314 = vmatpush.msra.mxu0 0.0
    %315 = vmatpush.msra.mxu0 0.0
    %316 = vmatpush.msra.mxu0 0.0
    %317 = vmatpush.msra.mxu0 0.0
    %318 = vmatpush.msra.mxu0 0.0
    %319 = vmatpush.msra.mxu0 0.0
    %320 = vmatpush.msra.mxu0 0.0
    %321 = vmatpush.msra.mxu0 0.0
    %322 = vmatpush.msra.mxu0 %v163
    %323 = vmatpush.msra.mxu0 %v162
    %324 = vmatpush.msra.mxu0 %v161
    %325 = vmatpush.msra.mxu0 %v160
    %326 = vmatmul.f32.gmra.mxu0 %v288
    %v327 = vpop.f32.mrf.mxu0
    %v328 = vadd.f32 %v193, %v327
    %329 = vdwg.mxu0
    %330 = vmatpush.msra.mxu0 0.0
    %331 = vmatpush.msra.mxu0 0.0
    %332 = vmatpush.msra.mxu0 0.0
    %333 = vmatpush.msra.mxu0 0.0
    %334 = vmatpush.msra.mxu0 0.0
    %335 = vmatpush.msra.mxu0 0.0
    %336 = vmatpush.msra.mxu0 0.0
    %337 = vmatpush.msra.mxu0 0.0
    %338 = vmatpush.msra.mxu0 0.0
    %339 = vmatpush.msra.mxu0 0.0
    %340 = vmatpush.msra.mxu0 0.0
    %341 = vmatpush.msra.mxu0 0.0
    %342 = vmatpush.msra.mxu0 %v167
    %343 = vmatpush.msra.mxu0 %v166
    %344 = vmatpush.msra.mxu0 %v165
    %345 = vmatpush.msra.mxu0 %v164
    %346 = vmatmul.f32.gmra.mxu0 %v288
    %v347 = vpop.f32.mrf.mxu0
    %v348 = vadd.f32 %v194, %v347
    %349 = vdwg.mxu0
    %350 = vmatpush.msra.mxu0 0.0
    %351 = vmatpush.msra.mxu0 0.0
    %352 = vmatpush.msra.mxu0 0.0
    %353 = vmatpush.msra.mxu0 0.0
    %354 = vmatpush.msra.mxu0 0.0
    %355 = vmatpush.msra.mxu0 0.0
    %356 = vmatpush.msra.mxu0 0.0
    %357 = vmatpush.msra.mxu0 0.0
    %358 = vmatpush.msra.mxu0 0.0
    %359 = vmatpush.msra.mxu0 0.0
    %360 = vmatpush.msra.mxu0 0.0
    %361 = vmatpush.msra.mxu0 0.0
    %362 = vmatpush.msra.mxu0 %v171
    %363 = vmatpush.msra.mxu0 %v170
    %364 = vmatpush.msra.mxu0 %v169
    %365 = vmatpush.msra.mxu0 %v168
    %366 = vmatmul.f32.gmra.mxu0 %v288
    %v367 = vpop.f32.mrf.mxu0
    %v368 = vadd.f32 %v195, %v367
    %369 = vdwg.mxu0
    %v370 = vld [vmem:[%s6] sm:$0xff]
    %v371 = vld [vmem:[%s6 + $0x8] sm:$0xff]
    %v372 = vld [vmem:[%s6 + $0x10] sm:$0xff]
    %v373 = vld [vmem:[%s6 + $0x18] sm:$0xff]
    %v374 = vld [vmem:[%s6 + $0x20] sm:$0xff]
    %v375 = vld [vmem:[%s6 + $0x28] sm:$0xff]
    %v376 = vld [vmem:[%s6 + $0x30] sm:$0xff]
    %v377 = vld [vmem:[%s6 + $0x38] sm:$0xff]
    %v378 = vld [vmem:[%s6 + $0x40] sm:$0xff]
    %v379 = vld [vmem:[%s6 + $0x48] sm:$0xff]
    %v380 = vld [vmem:[%s6 + $0x50] sm:$0xff]
    %v381 = vld [vmem:[%s6 + $0x58] sm:$0xff]
    %v382 = vld [vmem:[%s6 + $0x60] sm:$0xff]
    %v383 = vld [vmem:[%s6 + $0x68] sm:$0xff]
    %v384 = vld [vmem:[%s6 + $0x70] sm:$0xff]
    %v385 = vld [vmem:[%s6 + $0x78] sm:$0xff]
    %v386 = vld [vmem:[%s6 + $0x80] sm:$0xff]
    %v387 = vld [vmem:[%s6 + $0x88] sm:$0xff]
    %v388 = vld [vmem:[%s6 + $0x90] sm:$0xff]
    %v389 = vld [vmem:[%s6 + $0x98] sm:$0xff]
    %v390 = vld [vmem:[%s6 + $0xa0] sm:$0xff]
    %v391 = vld [vmem:[%s6 + $0xa8] sm:$0xff]
    %v392 = vld [vmem:[%s6 + $0xb0] sm:$0xff]
    %v393 = vld [vmem:[%s6 + $0xb8] sm:$0xff]
    %v394 = vld [vmem:[%s6 + $0xc0] sm:$0xff]
    %v395 = vld [vmem:[%s6 + $0xc8] sm:$0xff]
    %v396 = vld [vmem:[%s6 + $0xd0] sm:$0xff]
    %v397 = vld [vmem:[%s6 + $0xd8] sm:$0xff]
    %v398 = vld [vmem:[%s6 + $0xe0] sm:$0xff]
    %v399 = vld [vmem:[%s6 + $0xe8] sm:$0xff]
    %v400 = vld [vmem:[%s6 + $0xf0] sm:$0xff]
    %v401 = vld [vmem:[%s6 + $0xf8] sm:$0xff]
    %v402 = vld [vmem:[%s7] sm:$0x1]
    %v403 = vld [vmem:[%s7 + $0x1] sm:$0x1]
    %v404 = vld [vmem:[%s7 + $0x2] sm:$0x1]
    %v405 = vld [vmem:[%s7 + $0x3] sm:$0x1]
    %v406 = vld [vmem:[%s7 + $0x4] sm:$0x1]
    %v407 = vld [vmem:[%s7 + $0x5] sm:$0x1]
    %v408 = vld [vmem:[%s7 + $0x6] sm:$0x1]
    %v409 = vld [vmem:[%s7 + $0x7] sm:$0x1]
    %v418 = vperm.slane %v402, 0
    %v419 = vperm.slane %v403, 0
    %v420 = vperm.slane %v404, 0
    %v421 = vperm.slane %v405, 0
    %v422 = vperm.slane %v406, 0
    %v423 = vperm.slane %v407, 0
    %v424 = vperm.slane %v408, 0
    %v425 = vperm.slane %v409, 0
    %434 = vmatpush.msra.mxu0 0.0
    %435 = vmatpush.msra.mxu0 0.0
    %436 = vmatpush.msra.mxu0 0.0
    %437 = vmatpush.msra.mxu0 0.0
    %438 = vmatpush.msra.mxu0 0.0
    %439 = vmatpush.msra.mxu0 0.0
    %440 = vmatpush.msra.mxu0 0.0
    %441 = vmatpush.msra.mxu0 0.0
    %442 = vmatpush.msra.mxu0 0.0
    %443 = vmatpush.msra.mxu0 0.0
    %444 = vmatpush.msra.mxu0 0.0
    %445 = vmatpush.msra.mxu0 0.0
    %446 = vmatpush.msra.mxu0 %v373
    %447 = vmatpush.msra.mxu0 %v372
    %448 = vmatpush.msra.mxu0 %v371
    %449 = vmatpush.msra.mxu0 %v370
    %450 = vmatmul.f32.gmra.mxu0 %v205
    %v451 = vpop.f32.mrf.mxu0
    %v452 = vadd.f32 %v418, %v451
    %453 = vdwg.mxu0
    %454 = vmatpush.msra.mxu0 0.0
    %455 = vmatpush.msra.mxu0 0.0
    %456 = vmatpush.msra.mxu0 0.0
    %457 = vmatpush.msra.mxu0 0.0
    %458 = vmatpush.msra.mxu0 0.0
    %459 = vmatpush.msra.mxu0 0.0
    %460 = vmatpush.msra.mxu0 0.0
    %461 = vmatpush.msra.mxu0 0.0
    %462 = vmatpush.msra.mxu0 0.0
    %463 = vmatpush.msra.mxu0 0.0
    %464 = vmatpush.msra.mxu0 0.0
    %465 = vmatpush.msra.mxu0 0.0
    %466 = vmatpush.msra.mxu0 %v377
    %467 = vmatpush.msra.mxu0 %v376
    %468 = vmatpush.msra.mxu0 %v375
    %469 = vmatpush.msra.mxu0 %v374
    %470 = vmatmul.f32.gmra.mxu0 %v205
    %v471 = vpop.f32.mrf.mxu0
    %v472 = vadd.f32 %v419, %v471
    %473 = vdwg.mxu0
    %474 = vmatpush.msra.mxu0 0.0
    %475 = vmatpush.msra.mxu0 0.0
    %476 = vmatpush.msra.mxu0 0.0
    %477 = vmatpush.msra.mxu0 0.0
    %478 = vmatpush.msra.mxu0 0.0
    %479 = vmatpush.msra.mxu0 0.0
    %480 = vmatpush.msra.mxu0 0.0
    %481 = vmatpush.msra.mxu0 0.0
    %482 = vmatpush.msra.mxu0 0.0
    %483 = vmatpush.msra.mxu0 0.0
    %484 = vmatpush.msra.mxu0 0.0
    %485 = vmatpush.msra.mxu0 0.0
    %486 = vmatpush.msra.mxu0 %v381
    %487 = vmatpush.msra.mxu0 %v380
    %488 = vmatpush.msra.mxu0 %v379
    %489 = vmatpush.msra.mxu0 %v378
    %490 = vmatmul.f32.gmra.mxu0 %v205
    %v491 = vpop.f32.mrf.mxu0
    %v492 = vadd.f32 %v420, %v491
    %493 = vdwg.mxu0
    %494 = vmatpush.msra.mxu0 0.0
    %495 = vmatpush.msra.mxu0 0.0
    %496 = vmatpush.msra.mxu0 0.0
    %497 = vmatpush.msra.mxu0 0.0
    %498 = vmatpush.msra.mxu0 0.0
    %499 = vmatpush.msra.mxu0 0.0
    %500 = vmatpush.msra.mxu0 0.0
    %501 = vmatpush.msra.mxu0 0.0
    %502 = vmatpush.msra.mxu0 0.0
    %503 = vmatpush.msra.mxu0 0.0
    %504 = vmatpush.msra.mxu0 0.0
    %505 = vmatpush.msra.mxu0 0.0
    %506 = vmatpush.msra.mxu0 %v385
    %507 = vmatpush.msra.mxu0 %v384
    %508 = vmatpush.msra.mxu0 %v383
    %509 = vmatpush.msra.mxu0 %v382
    %510 = vmatmul.f32.gmra.mxu0 %v205
    %v511 = vpop.f32.mrf.mxu0
    %v512 = vadd.f32 %v421, %v511
    %513 = vdwg.mxu0
    %514 = vmatpush.msra.mxu0 0.0
    %515 = vmatpush.msra.mxu0 0.0
    %516 = vmatpush.msra.mxu0 0.0
    %517 = vmatpush.msra.mxu0 0.0
    %518 = vmatpush.msra.mxu0 0.0
    %519 = vmatpush.msra.mxu0 0.0
    %520 = vmatpush.msra.mxu0 0.0
    %521 = vmatpush.msra.mxu0 0.0
    %522 = vmatpush.msra.mxu0 0.0
    %523 = vmatpush.msra.mxu0 0.0
    %524 = vmatpush.msra.mxu0 0.0
    %525 = vmatpush.msra.mxu0 0.0
    %526 = vmatpush.msra.mxu0 %v389
    %527 = vmatpush.msra.mxu0 %v388
    %528 = vmatpush.msra.mxu0 %v387
    %529 = vmatpush.msra.mxu0 %v386
    %530 = vmatmul.f32.gmra.mxu0 %v288
    %v531 = vpop.f32.mrf.mxu0
    %v532 = vadd.f32 %v422, %v531
    %533 = vdwg.mxu0
    %534 = vmatpush.msra.mxu0 0.0
    %535 = vmatpush.msra.mxu0 0.0
    %536 = vmatpush.msra.mxu0 0.0
    %537 = vmatpush.msra.mxu0 0.0
    %538 = vmatpush.msra.mxu0 0.0
    %539 = vmatpush.msra.mxu0 0.0
    %540 = vmatpush.msra.mxu0 0.0
    %541 = vmatpush.msra.mxu0 0.0
    %542 = vmatpush.msra.mxu0 0.0
    %543 = vmatpush.msra.mxu0 0.0
    %544 = vmatpush.msra.mxu0 0.0
    %545 = vmatpush.msra.mxu0 0.0
    %546 = vmatpush.msra.mxu0 %v393
    %547 = vmatpush.msra.mxu0 %v392
    %548 = vmatpush.msra.mxu0 %v391
    %549 = vmatpush.msra.mxu0 %v390
    %550 = vmatmul.f32.gmra.mxu0 %v288
    %v551 = vpop.f32.mrf.mxu0
    %v552 = vadd.f32 %v423, %v551
    %553 = vdwg.mxu0
    %554 = vmatpush.msra.mxu0 0.0
    %555 = vmatpush.msra.mxu0 0.0
    %556 = vmatpush.msra.mxu0 0.0
    %557 = vmatpush.msra.mxu0 0.0
    %558 = vmatpush.msra.mxu0 0.0
    %559 = vmatpush.msra.mxu0 0.0
    %560 = vmatpush.msra.mxu0 0.0
    %561 = vmatpush.msra.mxu0 0.0
    %562 = vmatpush.msra.mxu0 0.0
    %563 = vmatpush.msra.mxu0 0.0
    %564 = vmatpush.msra.mxu0 0.0
    %565 = vmatpush.msra.mxu0 0.0
    %566 = vmatpush.msra.mxu0 %v397
    %567 = vmatpush.msra.mxu0 %v396
    %568 = vmatpush.msra.mxu0 %v395
    %569 = vmatpush.msra.mxu0 %v394
    %570 = vmatmul.f32.gmra.mxu0 %v288
    %v571 = vpop.f32.mrf.mxu0
    %v572 = vadd.f32 %v424, %v571
    %573 = vdwg.mxu0
    %574 = vmatpush.msra.mxu0 0.0
    %575 = vmatpush.msra.mxu0 0.0
    %576 = vmatpush.msra.mxu0 0.0
    %577 = vmatpush.msra.mxu0 0.0
    %578 = vmatpush.msra.mxu0 0.0
    %579 = vmatpush.msra.mxu0 0.0
    %580 = vmatpush.msra.mxu0 0.0
    %581 = vmatpush.msra.mxu0 0.0
    %582 = vmatpush.msra.mxu0 0.0
    %583 = vmatpush.msra.mxu0 0.0
    %584 = vmatpush.msra.mxu0 0.0
    %585 = vmatpush.msra.mxu0 0.0
    %586 = vmatpush.msra.mxu0 %v401
    %587 = vmatpush.msra.mxu0 %v400
    %588 = vmatpush.msra.mxu0 %v399
    %589 = vmatpush.msra.mxu0 %v398
    %590 = vmatmul.f32.gmra.mxu0 %v288
    %v591 = vpop.f32.mrf.mxu0
    %v592 = vadd.f32 %v425, %v591
    %593 = vdwg.mxu0
    %v594 = vld [vmem:[%s8] sm:$0xff]
    %v595 = vld [vmem:[%s8 + $0x8] sm:$0xff]
    %v596 = vld [vmem:[%s8 + $0x10] sm:$0xff]
    %v597 = vld [vmem:[%s8 + $0x18] sm:$0xff]
    %v598 = vld [vmem:[%s8 + $0x20] sm:$0xff]
    %v599 = vld [vmem:[%s8 + $0x28] sm:$0xff]
    %v600 = vld [vmem:[%s8 + $0x30] sm:$0xff]
    %v601 = vld [vmem:[%s8 + $0x38] sm:$0xff]
    %v602 = vld [vmem:[%s8 + $0x40] sm:$0xff]
    %v603 = vld [vmem:[%s8 + $0x48] sm:$0xff]
    %v604 = vld [vmem:[%s8 + $0x50] sm:$0xff]
    %v605 = vld [vmem:[%s8 + $0x58] sm:$0xff]
    %v606 = vld [vmem:[%s8 + $0x60] sm:$0xff]
    %v607 = vld [vmem:[%s8 + $0x68] sm:$0xff]
    %v608 = vld [vmem:[%s8 + $0x70] sm:$0xff]
    %v609 = vld [vmem:[%s8 + $0x78] sm:$0xff]
    %v610 = vld [vmem:[%s8 + $0x80] sm:$0xff]
    %v611 = vld [vmem:[%s8 + $0x88] sm:$0xff]
    %v612 = vld [vmem:[%s8 + $0x90] sm:$0xff]
    %v613 = vld [vmem:[%s8 + $0x98] sm:$0xff]
    %v614 = vld [vmem:[%s8 + $0xa0] sm:$0xff]
    %v615 = vld [vmem:[%s8 + $0xa8] sm:$0xff]
    %v616 = vld [vmem:[%s8 + $0xb0] sm:$0xff]
    %v617 = vld [vmem:[%s8 + $0xb8] sm:$0xff]
    %v618 = vld [vmem:[%s8 + $0xc0] sm:$0xff]
    %v619 = vld [vmem:[%s8 + $0xc8] sm:$0xff]
    %v620 = vld [vmem:[%s8 + $0xd0] sm:$0xff]
    %v621 = vld [vmem:[%s8 + $0xd8] sm:$0xff]
    %v622 = vld [vmem:[%s8 + $0xe0] sm:$0xff]
    %v623 = vld [vmem:[%s8 + $0xe8] sm:$0xff]
    %v624 = vld [vmem:[%s8 + $0xf0] sm:$0xff]
    %v625 = vld [vmem:[%s8 + $0xf8] sm:$0xff]
    %v626 = vld [vmem:[%s9] sm:$0x1]
    %v627 = vld [vmem:[%s9 + $0x1] sm:$0x1]
    %v628 = vld [vmem:[%s9 + $0x2] sm:$0x1]
    %v629 = vld [vmem:[%s9 + $0x3] sm:$0x1]
    %v630 = vld [vmem:[%s9 + $0x4] sm:$0x1]
    %v631 = vld [vmem:[%s9 + $0x5] sm:$0x1]
    %v632 = vld [vmem:[%s9 + $0x6] sm:$0x1]
    %v633 = vld [vmem:[%s9 + $0x7] sm:$0x1]
    %v642 = vperm.slane %v626, 0
    %v643 = vperm.slane %v627, 0
    %v644 = vperm.slane %v628, 0
    %v645 = vperm.slane %v629, 0
    %v646 = vperm.slane %v630, 0
    %v647 = vperm.slane %v631, 0
    %v648 = vperm.slane %v632, 0
    %v649 = vperm.slane %v633, 0
    %658 = vmatpush.msra.mxu0 0.0
    %659 = vmatpush.msra.mxu0 0.0
    %660 = vmatpush.msra.mxu0 0.0
    %661 = vmatpush.msra.mxu0 0.0
    %662 = vmatpush.msra.mxu0 0.0
    %663 = vmatpush.msra.mxu0 0.0
    %664 = vmatpush.msra.mxu0 0.0
    %665 = vmatpush.msra.mxu0 0.0
    %666 = vmatpush.msra.mxu0 0.0
    %667 = vmatpush.msra.mxu0 0.0
    %668 = vmatpush.msra.mxu0 0.0
    %669 = vmatpush.msra.mxu0 0.0
    %670 = vmatpush.msra.mxu0 %v597
    %671 = vmatpush.msra.mxu0 %v596
    %672 = vmatpush.msra.mxu0 %v595
    %673 = vmatpush.msra.mxu0 %v594
    %674 = vmatmul.f32.gmra.mxu0 %v205
    %v675 = vpop.f32.mrf.mxu0
    %v676 = vadd.f32 %v642, %v675
    %677 = vdwg.mxu0
    %678 = vmatpush.msra.mxu0 0.0
    %679 = vmatpush.msra.mxu0 0.0
    %680 = vmatpush.msra.mxu0 0.0
    %681 = vmatpush.msra.mxu0 0.0
    %682 = vmatpush.msra.mxu0 0.0
    %683 = vmatpush.msra.mxu0 0.0
    %684 = vmatpush.msra.mxu0 0.0
    %685 = vmatpush.msra.mxu0 0.0
    %686 = vmatpush.msra.mxu0 0.0
    %687 = vmatpush.msra.mxu0 0.0
    %688 = vmatpush.msra.mxu0 0.0
    %689 = vmatpush.msra.mxu0 0.0
    %690 = vmatpush.msra.mxu0 %v601
    %691 = vmatpush.msra.mxu0 %v600
    %692 = vmatpush.msra.mxu0 %v599
    %693 = vmatpush.msra.mxu0 %v598
    %694 = vmatmul.f32.gmra.mxu0 %v205
    %v695 = vpop.f32.mrf.mxu0
    %v696 = vadd.f32 %v643, %v695
    %697 = vdwg.mxu0
    %698 = vmatpush.msra.mxu0 0.0
    %699 = vmatpush.msra.mxu0 0.0
    %700 = vmatpush.msra.mxu0 0.0
    %701 = vmatpush.msra.mxu0 0.0
    %702 = vmatpush.msra.mxu0 0.0
    %703 = vmatpush.msra.mxu0 0.0
    %704 = vmatpush.msra.mxu0 0.0
    %705 = vmatpush.msra.mxu0 0.0
    %706 = vmatpush.msra.mxu0 0.0
    %707 = vmatpush.msra.mxu0 0.0
    %708 = vmatpush.msra.mxu0 0.0
    %709 = vmatpush.msra.mxu0 0.0
    %710 = vmatpush.msra.mxu0 %v605
    %711 = vmatpush.msra.mxu0 %v604
    %712 = vmatpush.msra.mxu0 %v603
    %713 = vmatpush.msra.mxu0 %v602
    %714 = vmatmul.f32.gmra.mxu0 %v205
    %v715 = vpop.f32.mrf.mxu0
    %v716 = vadd.f32 %v644, %v715
    %717 = vdwg.mxu0
    %718 = vmatpush.msra.mxu0 0.0
    %719 = vmatpush.msra.mxu0 0.0
    %720 = vmatpush.msra.mxu0 0.0
    %721 = vmatpush.msra.mxu0 0.0
    %722 = vmatpush.msra.mxu0 0.0
    %723 = vmatpush.msra.mxu0 0.0
    %724 = vmatpush.msra.mxu0 0.0
    %725 = vmatpush.msra.mxu0 0.0
    %726 = vmatpush.msra.mxu0 0.0
    %727 = vmatpush.msra.mxu0 0.0
    %728 = vmatpush.msra.mxu0 0.0
    %729 = vmatpush.msra.mxu0 0.0
    %730 = vmatpush.msra.mxu0 %v609
    %731 = vmatpush.msra.mxu0 %v608
    %732 = vmatpush.msra.mxu0 %v607
    %733 = vmatpush.msra.mxu0 %v606
    %734 = vmatmul.f32.gmra.mxu0 %v205
    %v735 = vpop.f32.mrf.mxu0
    %v736 = vadd.f32 %v645, %v735
    %737 = vdwg.mxu0
    %738 = vmatpush.msra.mxu0 0.0
    %739 = vmatpush.msra.mxu0 0.0
    %740 = vmatpush.msra.mxu0 0.0
    %741 = vmatpush.msra.mxu0 0.0
    %742 = vmatpush.msra.mxu0 0.0
    %743 = vmatpush.msra.mxu0 0.0
    %744 = vmatpush.msra.mxu0 0.0
    %745 = vmatpush.msra.mxu0 0.0
    %746 = vmatpush.msra.mxu0 0.0
    %747 = vmatpush.msra.mxu0 0.0
    %748 = vmatpush.msra.mxu0 0.0
    %749 = vmatpush.msra.mxu0 0.0
    %750 = vmatpush.msra.mxu0 %v613
    %751 = vmatpush.msra.mxu0 %v612
    %752 = vmatpush.msra.mxu0 %v611
    %753 = vmatpush.msra.mxu0 %v610
    %754 = vmatmul.f32.gmra.mxu0 %v288
    %v755 = vpop.f32.mrf.mxu0
    %v756 = vadd.f32 %v646, %v755
    %757 = vdwg.mxu0
    %758 = vmatpush.msra.mxu0 0.0
    %759 = vmatpush.msra.mxu0 0.0
    %760 = vmatpush.msra.mxu0 0.0
    %761 = vmatpush.msra.mxu0 0.0
    %762 = vmatpush.msra.mxu0 0.0
    %763 = vmatpush.msra.mxu0 0.0
    %764 = vmatpush.msra.mxu0 0.0
    %765 = vmatpush.msra.mxu0 0.0
    %766 = vmatpush.msra.mxu0 0.0
    %767 = vmatpush.msra.mxu0 0.0
    %768 = vmatpush.msra.mxu0 0.0
    %769 = vmatpush.msra.mxu0 0.0
    %770 = vmatpush.msra.mxu0 %v617
    %771 = vmatpush.msra.mxu0 %v616
    %772 = vmatpush.msra.mxu0 %v615
    %773 = vmatpush.msra.mxu0 %v614
    %774 = vmatmul.f32.gmra.mxu0 %v288
    %v775 = vpop.f32.mrf.mxu0
    %v776 = vadd.f32 %v647, %v775
    %777 = vdwg.mxu0
    %778 = vmatpush.msra.mxu0 0.0
    %779 = vmatpush.msra.mxu0 0.0
    %780 = vmatpush.msra.mxu0 0.0
    %781 = vmatpush.msra.mxu0 0.0
    %782 = vmatpush.msra.mxu0 0.0
    %783 = vmatpush.msra.mxu0 0.0
    %784 = vmatpush.msra.mxu0 0.0
    %785 = vmatpush.msra.mxu0 0.0
    %786 = vmatpush.msra.mxu0 0.0
    %787 = vmatpush.msra.mxu0 0.0
    %788 = vmatpush.msra.mxu0 0.0
    %789 = vmatpush.msra.mxu0 0.0
    %790 = vmatpush.msra.mxu0 %v621
    %791 = vmatpush.msra.mxu0 %v620
    %792 = vmatpush.msra.mxu0 %v619
    %793 = vmatpush.msra.mxu0 %v618
    %794 = vmatmul.f32.gmra.mxu0 %v288
    %v795 = vpop.f32.mrf.mxu0
    %v796 = vadd.f32 %v648, %v795
    %797 = vdwg.mxu0
    %798 = vmatpush.msra.mxu0 0.0
    %799 = vmatpush.msra.mxu0 0.0
    %800 = vmatpush.msra.mxu0 0.0
    %801 = vmatpush.msra.mxu0 0.0
    %802 = vmatpush.msra.mxu0 0.0
    %803 = vmatpush.msra.mxu0 0.0
    %804 = vmatpush.msra.mxu0 0.0
    %805 = vmatpush.msra.mxu0 0.0
    %806 = vmatpush.msra.mxu0 0.0
    %807 = vmatpush.msra.mxu0 0.0
    %808 = vmatpush.msra.mxu0 0.0
    %809 = vmatpush.msra.mxu0 0.0
    %810 = vmatpush.msra.mxu0 %v625
    %811 = vmatpush.msra.mxu0 %v624
    %812 = vmatpush.msra.mxu0 %v623
    %813 = vmatpush.msra.mxu0 %v622
    %814 = vmatmul.f32.gmra.mxu0 %v288
    %v815 = vpop.f32.mrf.mxu0
    %v816 = vadd.f32 %v649, %v815
    %817 = vdwg.mxu0
    %vm818 = vcmask 64512
    %v820 = vsel %vm818, %v225, 0
    %v823 = vsel %vm818, %v452, 0
    %825 = vmatpush.xpose.msra.mxu0 0.0
    %826 = vmatpush.xpose.msra.mxu0 0.0
    %827 = vmatpush.xpose.msra.mxu0 0.0
    %828 = vmatpush.xpose.msra.mxu0 0.0
    %829 = vmatpush.xpose.msra.mxu0 0.0
    %830 = vmatpush.xpose.msra.mxu0 0.0
    %831 = vmatpush.xpose.msra.mxu0 0.0
    %832 = vmatpush.xpose.msra.mxu0 0.0
    %833 = vmatpush.xpose.msra.mxu0 0.0
    %834 = vmatpush.xpose.msra.mxu0 0.0
    %835 = vmatpush.xpose.msra.mxu0 0.0
    %836 = vmatpush.xpose.msra.mxu0 0.0
    %837 = vmatpush.xpose.msra.mxu0 0.0
    %838 = vmatpush.xpose.msra.mxu0 0.0
    %839 = vmatpush.xpose.msra.mxu0 0.0
    %840 = vmatpush.xpose.msra.mxu0 %v823
    %841 = vmatmul.f32.gmra.mxu0 %v820
    %v842 = vpop.f32.mrf.mxu0
    %v843 = vadd.f32 %v68, %v842
    %844 = vdwg.mxu0
    %v846 = vsel %vm818, %v245, 0
    %v849 = vsel %vm818, %v472, 0
    %851 = vmatpush.xpose.msra.mxu0 0.0
    %852 = vmatpush.xpose.msra.mxu0 0.0
    %853 = vmatpush.xpose.msra.mxu0 0.0
    %854 = vmatpush.xpose.msra.mxu0 0.0
    %855 = vmatpush.xpose.msra.mxu0 0.0
    %856 = vmatpush.xpose.msra.mxu0 0.0
    %857 = vmatpush.xpose.msra.mxu0 0.0
    %858 = vmatpush.xpose.msra.mxu0 0.0
    %859 = vmatpush.xpose.msra.mxu0 0.0
    %860 = vmatpush.xpose.msra.mxu0 0.0
    %861 = vmatpush.xpose.msra.mxu0 0.0
    %862 = vmatpush.xpose.msra.mxu0 0.0
    %863 = vmatpush.xpose.msra.mxu0 0.0
    %864 = vmatpush.xpose.msra.mxu0 0.0
    %865 = vmatpush.xpose.msra.mxu0 0.0
    %866 = vmatpush.xpose.msra.mxu0 %v849
    %867 = vmatmul.f32.gmra.mxu0 %v846
    %v868 = vpop.f32.mrf.mxu0
    %v869 = vadd.f32 %v69, %v868
    %870 = vdwg.mxu0
    %v872 = vsel %vm818, %v265, 0
    %v875 = vsel %vm818, %v492, 0
    %877 = vmatpush.xpose.msra.mxu0 0.0
    %878 = vmatpush.xpose.msra.mxu0 0.0
    %879 = vmatpush.xpose.msra.mxu0 0.0
    %880 = vmatpush.xpose.msra.mxu0 0.0
    %881 = vmatpush.xpose.msra.mxu0 0.0
    %882 = vmatpush.xpose.msra.mxu0 0.0
    %883 = vmatpush.xpose.msra.mxu0 0.0
    %884 = vmatpush.xpose.msra.mxu0 0.0
    %885 = vmatpush.xpose.msra.mxu0 0.0
    %886 = vmatpush.xpose.msra.mxu0 0.0
    %887 = vmatpush.xpose.msra.mxu0 0.0
    %888 = vmatpush.xpose.msra.mxu0 0.0
    %889 = vmatpush.xpose.msra.mxu0 0.0
    %890 = vmatpush.xpose.msra.mxu0 0.0
    %891 = vmatpush.xpose.msra.mxu0 0.0
    %892 = vmatpush.xpose.msra.mxu0 %v875
    %893 = vmatmul.f32.gmra.mxu0 %v872
    %v894 = vpop.f32.mrf.mxu0
    %v895 = vadd.f32 %v70, %v894
    %896 = vdwg.mxu0
    %v898 = vsel %vm818, %v285, 0
    %v901 = vsel %vm818, %v512, 0
    %903 = vmatpush.xpose.msra.mxu0 0.0
    %904 = vmatpush.xpose.msra.mxu0 0.0
    %905 = vmatpush.xpose.msra.mxu0 0.0
    %906 = vmatpush.xpose.msra.mxu0 0.0
    %907 = vmatpush.xpose.msra.mxu0 0.0
    %908 = vmatpush.xpose.msra.mxu0 0.0
    %909 = vmatpush.xpose.msra.mxu0 0.0
    %910 = vmatpush.xpose.msra.mxu0 0.0
    %911 = vmatpush.xpose.msra.mxu0 0.0
    %912 = vmatpush.xpose.msra.mxu0 0.0
    %913 = vmatpush.xpose.msra.mxu0 0.0
    %914 = vmatpush.xpose.msra.mxu0 0.0
    %915 = vmatpush.xpose.msra.mxu0 0.0
    %916 = vmatpush.xpose.msra.mxu0 0.0
    %917 = vmatpush.xpose.msra.mxu0 0.0
    %918 = vmatpush.xpose.msra.mxu0 %v901
    %919 = vmatmul.f32.gmra.mxu0 %v898
    %v920 = vpop.f32.mrf.mxu0
    %v921 = vadd.f32 %v71, %v920
    %922 = vdwg.mxu0
    %v924 = vsel %vm818, %v308, 0
    %v927 = vsel %vm818, %v532, 0
    %929 = vmatpush.xpose.msra.mxu0 0.0
    %930 = vmatpush.xpose.msra.mxu0 0.0
    %931 = vmatpush.xpose.msra.mxu0 0.0
    %932 = vmatpush.xpose.msra.mxu0 0.0
    %933 = vmatpush.xpose.msra.mxu0 0.0
    %934 = vmatpush.xpose.msra.mxu0 0.0
    %935 = vmatpush.xpose.msra.mxu0 0.0
    %936 = vmatpush.xpose.msra.mxu0 0.0
    %937 = vmatpush.xpose.msra.mxu0 0.0
    %938 = vmatpush.xpose.msra.mxu0 0.0
    %939 = vmatpush.xpose.msra.mxu0 0.0
    %940 = vmatpush.xpose.msra.mxu0 0.0
    %941 = vmatpush.xpose.msra.mxu0 0.0
    %942 = vmatpush.xpose.msra.mxu0 0.0
    %943 = vmatpush.xpose.msra.mxu0 0.0
    %944 = vmatpush.xpose.msra.mxu0 %v927
    %945 = vmatmul.f32.gmra.mxu0 %v924
    %v946 = vpop.f32.mrf.mxu0
    %v947 = vadd.f32 %v72, %v946
    %948 = vdwg.mxu0
    %v950 = vsel %vm818, %v328, 0
    %v953 = vsel %vm818, %v552, 0
    %955 = vmatpush.xpose.msra.mxu0 0.0
    %956 = vmatpush.xpose.msra.mxu0 0.0
    %957 = vmatpush.xpose.msra.mxu0 0.0
    %958 = vmatpush.xpose.msra.mxu0 0.0
    %959 = vmatpush.xpose.msra.mxu0 0.0
    %960 = vmatpush.xpose.msra.mxu0 0.0
    %961 = vmatpush.xpose.msra.mxu0 0.0
    %962 = vmatpush.xpose.msra.mxu0 0.0
    %963 = vmatpush.xpose.msra.mxu0 0.0
    %964 = vmatpush.xpose.msra.mxu0 0.0
    %965 = vmatpush.xpose.msra.mxu0 0.0
    %966 = vmatpush.xpose.msra.mxu0 0.0
    %967 = vmatpush.xpose.msra.mxu0 0.0
    %968 = vmatpush.xpose.msra.mxu0 0.0
    %969 = vmatpush.xpose.msra.mxu0 0.0
    %970 = vmatpush.xpose.msra.mxu0 %v953
    %971 = vmatmul.f32.gmra.mxu0 %v950
    %v972 = vpop.f32.mrf.mxu0
    %v973 = vadd.f32 %v73, %v972
    %974 = vdwg.mxu0
    %v976 = vsel %vm818, %v348, 0
    %v979 = vsel %vm818, %v572, 0
    %981 = vmatpush.xpose.msra.mxu0 0.0
    %982 = vmatpush.xpose.msra.mxu0 0.0
    %983 = vmatpush.xpose.msra.mxu0 0.0
    %984 = vmatpush.xpose.msra.mxu0 0.0
    %985 = vmatpush.xpose.msra.mxu0 0.0
    %986 = vmatpush.xpose.msra.mxu0 0.0
    %987 = vmatpush.xpose.msra.mxu0 0.0
    %988 = vmatpush.xpose.msra.mxu0 0.0
    %989 = vmatpush.xpose.msra.mxu0 0.0
    %990 = vmatpush.xpose.msra.mxu0 0.0
    %991 = vmatpush.xpose.msra.mxu0 0.0
    %992 = vmatpush.xpose.msra.mxu0 0.0
    %993 = vmatpush.xpose.msra.mxu0 0.0
    %994 = vmatpush.xpose.msra.mxu0 0.0
    %995 = vmatpush.xpose.msra.mxu0 0.0
    %996 = vmatpush.xpose.msra.mxu0 %v979
    %997 = vmatmul.f32.gmra.mxu0 %v976
    %v998 = vpop.f32.mrf.mxu0
    %v999 = vadd.f32 %v74, %v998
    %1000 = vdwg.mxu0
    %v1002 = vsel %vm818, %v368, 0
    %v1005 = vsel %vm818, %v592, 0
    %1007 = vmatpush.xpose.msra.mxu0 0.0
    %1008 = vmatpush.xpose.msra.mxu0 0.0
    %1009 = vmatpush.xpose.msra.mxu0 0.0
    %1010 = vmatpush.xpose.msra.mxu0 0.0
    %1011 = vmatpush.xpose.msra.mxu0 0.0
    %1012 = vmatpush.xpose.msra.mxu0 0.0
    %1013 = vmatpush.xpose.msra.mxu0 0.0
    %1014 = vmatpush.xpose.msra.mxu0 0.0
    %1015 = vmatpush.xpose.msra.mxu0 0.0
    %1016 = vmatpush.xpose.msra.mxu0 0.0
    %1017 = vmatpush.xpose.msra.mxu0 0.0
    %1018 = vmatpush.xpose.msra.mxu0 0.0
    %1019 = vmatpush.xpose.msra.mxu0 0.0
    %1020 = vmatpush.xpose.msra.mxu0 0.0
    %1021 = vmatpush.xpose.msra.mxu0 0.0
    %1022 = vmatpush.xpose.msra.mxu0 %v1005
    %1023 = vmatmul.f32.gmra.mxu0 %v1002
    %v1024 = vpop.f32.mrf.mxu0
    %v1025 = vadd.f32 %v75, %v1024
    %1026 = vdwg.mxu0
    %v1027 = vsel %vm818, %v843, -inf
    %1028 = vmax.xlane.f32.xlu0 %v1027
    %v1029 = vpop.xlane.xlu0 %1028
    %v1030 = vsel %vm818, %v869, -inf
    %1031 = vmax.xlane.f32.xlu0 %v1030
    %v1032 = vpop.xlane.xlu0 %1031
    %v1033 = vsel %vm818, %v895, -inf
    %1034 = vmax.xlane.f32.xlu0 %v1033
    %v1035 = vpop.xlane.xlu0 %1034
    %v1036 = vsel %vm818, %v921, -inf
    %1037 = vmax.xlane.f32.xlu0 %v1036
    %v1038 = vpop.xlane.xlu0 %1037
    %v1039 = vsel %vm818, %v947, -inf
    %1040 = vmax.xlane.f32.xlu0 %v1039
    %v1041 = vpop.xlane.xlu0 %1040
    %v1042 = vsel %vm818, %v973, -inf
    %1043 = vmax.xlane.f32.xlu0 %v1042
    %v1044 = vpop.xlane.xlu0 %1043
    %v1045 = vsel %vm818, %v999, -inf
    %1046 = vmax.xlane.f32.xlu0 %v1045
    %v1047 = vpop.xlane.xlu0 %1046
    %v1048 = vsel %vm818, %v1025, -inf
    %1049 = vmax.xlane.f32.xlu0 %v1048
    %v1050 = vpop.xlane.xlu0 %1049
    %v1051 = vsub.f32 %v843, %v1029
    %v1052 = vsub.f32 %v869, %v1032
    %v1053 = vsub.f32 %v895, %v1035
    %v1054 = vsub.f32 %v921, %v1038
    %v1055 = vsub.f32 %v947, %v1041
    %v1056 = vsub.f32 %v973, %v1044
    %v1057 = vsub.f32 %v999, %v1047
    %v1058 = vsub.f32 %v1025, %v1050
    %v1059 = vmul.f32 %v1051, 1.442695
    %v1060 = vpow.pop %v1059
    %v1061 = vmul.f32 %v1052, 1.442695
    %v1062 = vpow.pop %v1061
    %v1063 = vmul.f32 %v1053, 1.442695
    %v1064 = vpow.pop %v1063
    %v1065 = vmul.f32 %v1054, 1.442695
    %v1066 = vpow.pop %v1065
    %v1067 = vmul.f32 %v1055, 1.442695
    %v1068 = vpow.pop %v1067
    %v1069 = vmul.f32 %v1056, 1.442695
    %v1070 = vpow.pop %v1069
    %v1071 = vmul.f32 %v1057, 1.442695
    %v1072 = vpow.pop %v1071
    %v1073 = vmul.f32 %v1058, 1.442695
    %v1074 = vpow.pop %v1073
    %v1075 = vsel %vm818, %v1060, 0.0
    %1076 = vadd.xlane.f32.xlu0 %v1075
    %v1077 = vpop.xlane.xlu0 %1076
    %v1078 = vsel %vm818, %v1062, 0.0
    %1079 = vadd.xlane.f32.xlu0 %v1078
    %v1080 = vpop.xlane.xlu0 %1079
    %v1081 = vsel %vm818, %v1064, 0.0
    %1082 = vadd.xlane.f32.xlu0 %v1081
    %v1083 = vpop.xlane.xlu0 %1082
    %v1084 = vsel %vm818, %v1066, 0.0
    %1085 = vadd.xlane.f32.xlu0 %v1084
    %v1086 = vpop.xlane.xlu0 %1085
    %v1087 = vsel %vm818, %v1068, 0.0
    %1088 = vadd.xlane.f32.xlu0 %v1087
    %v1089 = vpop.xlane.xlu0 %1088
    %v1090 = vsel %vm818, %v1070, 0.0
    %1091 = vadd.xlane.f32.xlu0 %v1090
    %v1092 = vpop.xlane.xlu0 %1091
    %v1093 = vsel %vm818, %v1072, 0.0
    %1094 = vadd.xlane.f32.xlu0 %v1093
    %v1095 = vpop.xlane.xlu0 %1094
    %v1096 = vsel %vm818, %v1074, 0.0
    %1097 = vadd.xlane.f32.xlu0 %v1096
    %v1098 = vpop.xlane.xlu0 %1097
    %v1099 = vrcp.pop %v1077
    %v1100 = vrcp.pop %v1080
    %v1101 = vrcp.pop %v1083
    %v1102 = vrcp.pop %v1086
    %v1103 = vrcp.pop %v1089
    %v1104 = vrcp.pop %v1092
    %v1105 = vrcp.pop %v1095
    %v1106 = vrcp.pop %v1098
    %v1107 = vmul.f32 %v1060, %v1099
    %v1108 = vmul.f32 %v1062, %v1100
    %v1109 = vmul.f32 %v1064, %v1101
    %v1110 = vmul.f32 %v1066, %v1102
    %v1111 = vmul.f32 %v1068, %v1103
    %v1112 = vmul.f32 %v1070, %v1104
    %v1113 = vmul.f32 %v1072, %v1105
    %v1114 = vmul.f32 %v1074, %v1106
    %v1116 = vsel %vm818, %v1107, 0
    %1118 = vmatpush.msra.mxu0 0.0
    %1119 = vmatpush.msra.mxu0 0.0
    %1120 = vmatpush.msra.mxu0 0.0
    %1121 = vmatpush.msra.mxu0 0.0
    %1122 = vmatpush.msra.mxu0 0.0
    %1123 = vmatpush.msra.mxu0 0.0
    %1124 = vmatpush.msra.mxu0 0.0
    %1125 = vmatpush.msra.mxu0 0.0
    %1126 = vmatpush.msra.mxu0 0.0
    %1127 = vmatpush.msra.mxu0 0.0
    %1128 = vmatpush.msra.mxu0 0.0
    %1129 = vmatpush.msra.mxu0 0.0
    %1130 = vmatpush.msra.mxu0 0.0
    %1131 = vmatpush.msra.mxu0 0.0
    %1132 = vmatpush.msra.mxu0 0.0
    %1133 = vmatpush.msra.mxu0 %v676
    %1134 = vmatmul.f32.gmra.mxu0 %v1116
    %v1135 = vpop.f32.mrf.mxu0
    %v1136 = vadd.f32 0.0, %v1135
    %1137 = vdwg.mxu0
    %v1139 = vsel %vm818, %v1108, 0
    %1141 = vmatpush.msra.mxu0 0.0
    %1142 = vmatpush.msra.mxu0 0.0
    %1143 = vmatpush.msra.mxu0 0.0
    %1144 = vmatpush.msra.mxu0 0.0
    %1145 = vmatpush.msra.mxu0 0.0
    %1146 = vmatpush.msra.mxu0 0.0
    %1147 = vmatpush.msra.mxu0 0.0
    %1148 = vmatpush.msra.mxu0 0.0
    %1149 = vmatpush.msra.mxu0 0.0
    %1150 = vmatpush.msra.mxu0 0.0
    %1151 = vmatpush.msra.mxu0 0.0
    %1152 = vmatpush.msra.mxu0 0.0
    %1153 = vmatpush.msra.mxu0 0.0
    %1154 = vmatpush.msra.mxu0 0.0
    %1155 = vmatpush.msra.mxu0 0.0
    %1156 = vmatpush.msra.mxu0 %v696
    %1157 = vmatmul.f32.gmra.mxu0 %v1139
    %v1158 = vpop.f32.mrf.mxu0
    %v1159 = vadd.f32 0.0, %v1158
    %1160 = vdwg.mxu0
    %v1162 = vsel %vm818, %v1109, 0
    %1164 = vmatpush.msra.mxu0 0.0
    %1165 = vmatpush.msra.mxu0 0.0
    %1166 = vmatpush.msra.mxu0 0.0
    %1167 = vmatpush.msra.mxu0 0.0
    %1168 = vmatpush.msra.mxu0 0.0
    %1169 = vmatpush.msra.mxu0 0.0
    %1170 = vmatpush.msra.mxu0 0.0
    %1171 = vmatpush.msra.mxu0 0.0
    %1172 = vmatpush.msra.mxu0 0.0
    %1173 = vmatpush.msra.mxu0 0.0
    %1174 = vmatpush.msra.mxu0 0.0
    %1175 = vmatpush.msra.mxu0 0.0
    %1176 = vmatpush.msra.mxu0 0.0
    %1177 = vmatpush.msra.mxu0 0.0
    %1178 = vmatpush.msra.mxu0 0.0
    %1179 = vmatpush.msra.mxu0 %v716
    %1180 = vmatmul.f32.gmra.mxu0 %v1162
    %v1181 = vpop.f32.mrf.mxu0
    %v1182 = vadd.f32 0.0, %v1181
    %1183 = vdwg.mxu0
    %v1185 = vsel %vm818, %v1110, 0
    %1187 = vmatpush.msra.mxu0 0.0
    %1188 = vmatpush.msra.mxu0 0.0
    %1189 = vmatpush.msra.mxu0 0.0
    %1190 = vmatpush.msra.mxu0 0.0
    %1191 = vmatpush.msra.mxu0 0.0
    %1192 = vmatpush.msra.mxu0 0.0
    %1193 = vmatpush.msra.mxu0 0.0
    %1194 = vmatpush.msra.mxu0 0.0
    %1195 = vmatpush.msra.mxu0 0.0
    %1196 = vmatpush.msra.mxu0 0.0
    %1197 = vmatpush.msra.mxu0 0.0
    %1198 = vmatpush.msra.mxu0 0.0
    %1199 = vmatpush.msra.mxu0 0.0
    %1200 = vmatpush.msra.mxu0 0.0
    %1201 = vmatpush.msra.mxu0 0.0
    %1202 = vmatpush.msra.mxu0 %v736
    %1203 = vmatmul.f32.gmra.mxu0 %v1185
    %v1204 = vpop.f32.mrf.mxu0
    %v1205 = vadd.f32 0.0, %v1204
    %1206 = vdwg.mxu0
    %v1208 = vsel %vm818, %v1111, 0
    %1210 = vmatpush.msra.mxu0 0.0
    %1211 = vmatpush.msra.mxu0 0.0
    %1212 = vmatpush.msra.mxu0 0.0
    %1213 = vmatpush.msra.mxu0 0.0
    %1214 = vmatpush.msra.mxu0 0.0
    %1215 = vmatpush.msra.mxu0 0.0
    %1216 = vmatpush.msra.mxu0 0.0
    %1217 = vmatpush.msra.mxu0 0.0
    %1218 = vmatpush.msra.mxu0 0.0
    %1219 = vmatpush.msra.mxu0 0.0
    %1220 = vmatpush.msra.mxu0 0.0
    %1221 = vmatpush.msra.mxu0 0.0
    %1222 = vmatpush.msra.mxu0 0.0
    %1223 = vmatpush.msra.mxu0 0.0
    %1224 = vmatpush.msra.mxu0 0.0
    %1225 = vmatpush.msra.mxu0 %v756
    %1226 = vmatmul.f32.gmra.mxu0 %v1208
    %v1227 = vpop.f32.mrf.mxu0
    %v1228 = vadd.f32 0.0, %v1227
    %1229 = vdwg.mxu0
    %v1231 = vsel %vm818, %v1112, 0
    %1233 = vmatpush.msra.mxu0 0.0
    %1234 = vmatpush.msra.mxu0 0.0
    %1235 = vmatpush.msra.mxu0 0.0
    %1236 = vmatpush.msra.mxu0 0.0
    %1237 = vmatpush.msra.mxu0 0.0
    %1238 = vmatpush.msra.mxu0 0.0
    %1239 = vmatpush.msra.mxu0 0.0
    %1240 = vmatpush.msra.mxu0 0.0
    %1241 = vmatpush.msra.mxu0 0.0
    %1242 = vmatpush.msra.mxu0 0.0
    %1243 = vmatpush.msra.mxu0 0.0
    %1244 = vmatpush.msra.mxu0 0.0
    %1245 = vmatpush.msra.mxu0 0.0
    %1246 = vmatpush.msra.mxu0 0.0
    %1247 = vmatpush.msra.mxu0 0.0
    %1248 = vmatpush.msra.mxu0 %v776
    %1249 = vmatmul.f32.gmra.mxu0 %v1231
    %v1250 = vpop.f32.mrf.mxu0
    %v1251 = vadd.f32 0.0, %v1250
    %1252 = vdwg.mxu0
    %v1254 = vsel %vm818, %v1113, 0
    %1256 = vmatpush.msra.mxu0 0.0
    %1257 = vmatpush.msra.mxu0 0.0
    %1258 = vmatpush.msra.mxu0 0.0
    %1259 = vmatpush.msra.mxu0 0.0
    %1260 = vmatpush.msra.mxu0 0.0
    %1261 = vmatpush.msra.mxu0 0.0
    %1262 = vmatpush.msra.mxu0 0.0
    %1263 = vmatpush.msra.mxu0 0.0
    %1264 = vmatpush.msra.mxu0 0.0
    %1265 = vmatpush.msra.mxu0 0.0
    %1266 = vmatpush.msra.mxu0 0.0
    %1267 = vmatpush.msra.mxu0 0.0
    %1268 = vmatpush.msra.mxu0 0.0
    %1269 = vmatpush.msra.mxu0 0.0
    %1270 = vmatpush.msra.mxu0 0.0
    %1271 = vmatpush.msra.mxu0 %v796
    %1272 = vmatmul.f32.gmra.mxu0 %v1254
    %v1273 = vpop.f32.mrf.mxu0
    %v1274 = vadd.f32 0.0, %v1273
    %1275 = vdwg.mxu0
    %v1277 = vsel %vm818, %v1114, 0
    %1279 = vmatpush.msra.mxu0 0.0
    %1280 = vmatpush.msra.mxu0 0.0
    %1281 = vmatpush.msra.mxu0 0.0
    %1282 = vmatpush.msra.mxu0 0.0
    %1283 = vmatpush.msra.mxu0 0.0
    %1284 = vmatpush.msra.mxu0 0.0
    %1285 = vmatpush.msra.mxu0 0.0
    %1286 = vmatpush.msra.mxu0 0.0
    %1287 = vmatpush.msra.mxu0 0.0
    %1288 = vmatpush.msra.mxu0 0.0
    %1289 = vmatpush.msra.mxu0 0.0
    %1290 = vmatpush.msra.mxu0 0.0
    %1291 = vmatpush.msra.mxu0 0.0
    %1292 = vmatpush.msra.mxu0 0.0
    %1293 = vmatpush.msra.mxu0 0.0
    %1294 = vmatpush.msra.mxu0 %v816
    %1295 = vmatmul.f32.gmra.mxu0 %v1277
    %v1296 = vpop.f32.mrf.mxu0
    %v1297 = vadd.f32 0.0, %v1296
    %1298 = vdwg.mxu0
    %v1299 = vld [vmem:[%s10] sm:$0xff]
    %v1300 = vld [vmem:[%s10 + $0x8] sm:$0xff]
    %v1301 = vld [vmem:[%s10 + $0x10] sm:$0xff]
    %v1302 = vld [vmem:[%s10 + $0x18] sm:$0xff]
    %v1303 = vld [vmem:[%s10 + $0x20] sm:$0xff]
    %v1304 = vld [vmem:[%s10 + $0x28] sm:$0xff]
    %v1305 = vld [vmem:[%s10 + $0x30] sm:$0xff]
    %v1306 = vld [vmem:[%s10 + $0x38] sm:$0xff]
    %v1308 = vsel %vm818, %v1136, 0
    %1310 = vmatpush.msra.mxu0 0.0
    %1311 = vmatpush.msra.mxu0 0.0
    %1312 = vmatpush.msra.mxu0 0.0
    %1313 = vmatpush.msra.mxu0 0.0
    %1314 = vmatpush.msra.mxu0 0.0
    %1315 = vmatpush.msra.mxu0 0.0
    %1316 = vmatpush.msra.mxu0 0.0
    %1317 = vmatpush.msra.mxu0 0.0
    %1318 = vmatpush.msra.mxu0 0.0
    %1319 = vmatpush.msra.mxu0 0.0
    %1320 = vmatpush.msra.mxu0 0.0
    %1321 = vmatpush.msra.mxu0 0.0
    %1322 = vmatpush.msra.mxu0 0.0
    %1323 = vmatpush.msra.mxu0 0.0
    %1324 = vmatpush.msra.mxu0 0.0
    %1325 = vmatpush.msra.mxu0 %v1299
    %1326 = vmatmul.f32.gmra.mxu0 %v1308
    %v1327 = vpop.f32.mrf.mxu0
    %v1328 = vadd.f32 0.0, %v1327
    %1329 = vdwg.mxu0
    %v1331 = vsel %vm818, %v1159, 0
    %1333 = vmatpush.msra.mxu0 0.0
    %1334 = vmatpush.msra.mxu0 0.0
    %1335 = vmatpush.msra.mxu0 0.0
    %1336 = vmatpush.msra.mxu0 0.0
    %1337 = vmatpush.msra.mxu0 0.0
    %1338 = vmatpush.msra.mxu0 0.0
    %1339 = vmatpush.msra.mxu0 0.0
    %1340 = vmatpush.msra.mxu0 0.0
    %1341 = vmatpush.msra.mxu0 0.0
    %1342 = vmatpush.msra.mxu0 0.0
    %1343 = vmatpush.msra.mxu0 0.0
    %1344 = vmatpush.msra.mxu0 0.0
    %1345 = vmatpush.msra.mxu0 0.0
    %1346 = vmatpush.msra.mxu0 0.0
    %1347 = vmatpush.msra.mxu0 0.0
    %1348 = vmatpush.msra.mxu0 %v1300
    %1349 = vmatmul.f32.gmra.mxu0 %v1331
    %v1350 = vpop.f32.mrf.mxu0
    %v1351 = vadd.f32 0.0, %v1350
    %1352 = vdwg.mxu0
    %v1354 = vsel %vm818, %v1182, 0
    %1356 = vmatpush.msra.mxu0 0.0
    %1357 = vmatpush.msra.mxu0 0.0
    %1358 = vmatpush.msra.mxu0 0.0
    %1359 = vmatpush.msra.mxu0 0.0
    %1360 = vmatpush.msra.mxu0 0.0
    %1361 = vmatpush.msra.mxu0 0.0
    %1362 = vmatpush.msra.mxu0 0.0
    %1363 = vmatpush.msra.mxu0 0.0
    %1364 = vmatpush.msra.mxu0 0.0
    %1365 = vmatpush.msra.mxu0 0.0
    %1366 = vmatpush.msra.mxu0 0.0
    %1367 = vmatpush.msra.mxu0 0.0
    %1368 = vmatpush.msra.mxu0 0.0
    %1369 = vmatpush.msra.mxu0 0.0
    %1370 = vmatpush.msra.mxu0 0.0
    %1371 = vmatpush.msra.mxu0 %v1301
    %1372 = vmatmul.f32.gmra.mxu0 %v1354
    %v1373 = vpop.f32.mrf.mxu0
    %v1374 = vadd.f32 0.0, %v1373
    %1375 = vdwg.mxu0
    %v1377 = vsel %vm818, %v1205, 0
    %1379 = vmatpush.msra.mxu0 0.0
    %1380 = vmatpush.msra.mxu0 0.0
    %1381 = vmatpush.msra.mxu0 0.0
    %1382 = vmatpush.msra.mxu0 0.0
    %1383 = vmatpush.msra.mxu0 0.0
    %1384 = vmatpush.msra.mxu0 0.0
    %1385 = vmatpush.msra.mxu0 0.0
    %1386 = vmatpush.msra.mxu0 0.0
    %1387 = vmatpush.msra.mxu0 0.0
    %1388 = vmatpush.msra.mxu0 0.0
    %1389 = vmatpush.msra.mxu0 0.0
    %1390 = vmatpush.msra.mxu0 0.0
    %1391 = vmatpush.msra.mxu0 0.0
    %1392 = vmatpush.msra.mxu0 0.0
    %1393 = vmatpush.msra.mxu0 0.0
    %1394 = vmatpush.msra.mxu0 %v1302
    %1395 = vmatmul.f32.gmra.mxu0 %v1377
    %v1396 = vpop.f32.mrf.mxu0
    %v1397 = vadd.f32 0.0, %v1396
    %1398 = vdwg.mxu0
    %v1400 = vsel %vm818, %v1228, 0
    %1402 = vmatpush.msra.mxu0 0.0
    %1403 = vmatpush.msra.mxu0 0.0
    %1404 = vmatpush.msra.mxu0 0.0
    %1405 = vmatpush.msra.mxu0 0.0
    %1406 = vmatpush.msra.mxu0 0.0
    %1407 = vmatpush.msra.mxu0 0.0
    %1408 = vmatpush.msra.mxu0 0.0
    %1409 = vmatpush.msra.mxu0 0.0
    %1410 = vmatpush.msra.mxu0 0.0
    %1411 = vmatpush.msra.mxu0 0.0
    %1412 = vmatpush.msra.mxu0 0.0
    %1413 = vmatpush.msra.mxu0 0.0
    %1414 = vmatpush.msra.mxu0 0.0
    %1415 = vmatpush.msra.mxu0 0.0
    %1416 = vmatpush.msra.mxu0 0.0
    %1417 = vmatpush.msra.mxu0 %v1303
    %1418 = vmatmul.f32.gmra.mxu0 %v1400
    %v1419 = vpop.f32.mrf.mxu0
    %v1420 = vadd.f32 0.0, %v1419
    %1421 = vdwg.mxu0
    %v1423 = vsel %vm818, %v1251, 0
    %1425 = vmatpush.msra.mxu0 0.0
    %1426 = vmatpush.msra.mxu0 0.0
    %1427 = vmatpush.msra.mxu0 0.0
    %1428 = vmatpush.msra.mxu0 0.0
    %1429 = vmatpush.msra.mxu0 0.0
    %1430 = vmatpush.msra.mxu0 0.0
    %1431 = vmatpush.msra.mxu0 0.0
    %1432 = vmatpush.msra.mxu0 0.0
    %1433 = vmatpush.msra.mxu0 0.0
    %1434 = vmatpush.msra.mxu0 0.0
    %1435 = vmatpush.msra.mxu0 0.0
    %1436 = vmatpush.msra.mxu0 0.0
    %1437 = vmatpush.msra.mxu0 0.0
    %1438 = vmatpush.msra.mxu0 0.0
    %1439 = vmatpush.msra.mxu0 0.0
    %1440 = vmatpush.msra.mxu0 %v1304
    %1441 = vmatmul.f32.gmra.mxu0 %v1423
    %v1442 = vpop.f32.mrf.mxu0
    %v1443 = vadd.f32 0.0, %v1442
    %1444 = vdwg.mxu0
    %v1446 = vsel %vm818, %v1274, 0
    %1448 = vmatpush.msra.mxu0 0.0
    %1449 = vmatpush.msra.mxu0 0.0
    %1450 = vmatpush.msra.mxu0 0.0
    %1451 = vmatpush.msra.mxu0 0.0
    %1452 = vmatpush.msra.mxu0 0.0
    %1453 = vmatpush.msra.mxu0 0.0
    %1454 = vmatpush.msra.mxu0 0.0
    %1455 = vmatpush.msra.mxu0 0.0
    %1456 = vmatpush.msra.mxu0 0.0
    %1457 = vmatpush.msra.mxu0 0.0
    %1458 = vmatpush.msra.mxu0 0.0
    %1459 = vmatpush.msra.mxu0 0.0
    %1460 = vmatpush.msra.mxu0 0.0
    %1461 = vmatpush.msra.mxu0 0.0
    %1462 = vmatpush.msra.mxu0 0.0
    %1463 = vmatpush.msra.mxu0 %v1305
    %1464 = vmatmul.f32.gmra.mxu0 %v1446
    %v1465 = vpop.f32.mrf.mxu0
    %v1466 = vadd.f32 0.0, %v1465
    %1467 = vdwg.mxu0
    %v1469 = vsel %vm818, %v1297, 0
    %1471 = vmatpush.msra.mxu0 0.0
    %1472 = vmatpush.msra.mxu0 0.0
    %1473 = vmatpush.msra.mxu0 0.0
    %1474 = vmatpush.msra.mxu0 0.0
    %1475 = vmatpush.msra.mxu0 0.0
    %1476 = vmatpush.msra.mxu0 0.0
    %1477 = vmatpush.msra.mxu0 0.0
    %1478 = vmatpush.msra.mxu0 0.0
    %1479 = vmatpush.msra.mxu0 0.0
    %1480 = vmatpush.msra.mxu0 0.0
    %1481 = vmatpush.msra.mxu0 0.0
    %1482 = vmatpush.msra.mxu0 0.0
    %1483 = vmatpush.msra.mxu0 0.0
    %1484 = vmatpush.msra.mxu0 0.0
    %1485 = vmatpush.msra.mxu0 0.0
    %1486 = vmatpush.msra.mxu0 %v1306
    %1487 = vmatmul.f32.gmra.mxu0 %v1469
    %v1488 = vpop.f32.mrf.mxu0
    %v1489 = vadd.f32 0.0, %v1488
    %1490 = vdwg.mxu0
    %v1491 = vadd.f32 %v1328, %v1351
    %v1492 = vadd.f32 %v1420, %v1443
    %v1493 = vadd.f32 %v1491, %v1374
    %v1494 = vadd.f32 %v1492, %v1466
    %v1495 = vadd.f32 %v1493, %v1397
    %v1496 = vadd.f32 %v1494, %v1489
    %v1497 = vadd.f32 %v66, %v1495
    %v1498 = vadd.f32 %v67, %v1496
    %v1499 = vld [vmem:[%s11] sm:$0x1]
    %v1501 = vperm.slane %v1499, 0
    %v1503 = vadd.f32 %v1497, %v1501
    %v1504 = vadd.f32 %v1498, %v1501
    %v1505 = vld [vmem:[%s12] sm:$0x1]
    %v1506 = vld [vmem:[%s13] sm:$0x1]
    %v1507 = vsel %vm78, %v1503, 0.0
    %1508 = vadd.xlane.f32.xlu0 %v1507
    %v1509 = vpop.xlane.xlu0 %1508
    %v1510 = vsel %vm78, %v1504, 0.0
    %1511 = vadd.xlane.f32.xlu0 %v1510
    %v1512 = vpop.xlane.xlu0 %1511
    %v1513 = vmul.f32 %v1509, %v91
    %v1514 = vmul.f32 %v1512, %v91
    %v1515 = vsub.f32 %v1503, %v1513
    %v1516 = vsub.f32 %v1504, %v1514
    %v1517 = vmul.f32 %v1515, %v1515
    %v1518 = vmul.f32 %v1516, %v1516
    %v1519 = vsel %vm78, %v1517, 0.0
    %1520 = vadd.xlane.f32.xlu0 %v1519
    %v1521 = vpop.xlane.xlu0 %1520
    %v1522 = vsel %vm78, %v1518, 0.0
    %1523 = vadd.xlane.f32.xlu0 %v1522
    %v1524 = vpop.xlane.xlu0 %1523
    %v1525 = vmul.f32 %v1521, %v91
    %v1526 = vmul.f32 %v1524, %v91
    %v1527 = vadd.f32 %v1525, 1e-05
    %v1528 = vadd.f32 %v1526, 1e-05
    %v1529 = vrsqrt.pop %v1527
    %v1530 = vmul.f32 %v1529, %v1527
    %v1531 = vmul.f32 %v1530, %v1529
    %v1532 = vmul.f32 0.5, %v1531
    %v1533 = vsub.f32 1.5, %v1532
    %v1534 = vmul.f32 %v1529, %v1533
    %vm1535 = vweird.f32 %v1527
    %vm1536 = vweird.f32 %v1529
    %vm1537 = vmor %vm1535, %vm1536
    %v1538 = vsel %vm1537, %v1529, %v1534
    %v1539 = vrsqrt.pop %v1528
    %v1540 = vmul.f32 %v1539, %v1528
    %v1541 = vmul.f32 %v1540, %v1539
    %v1542 = vmul.f32 0.5, %v1541
    %v1543 = vsub.f32 1.5, %v1542
    %v1544 = vmul.f32 %v1539, %v1543
    %vm1545 = vweird.f32 %v1528
    %vm1546 = vweird.f32 %v1539
    %vm1547 = vmor %vm1545, %vm1546
    %v1548 = vsel %vm1547, %v1539, %v1544
    %v1549 = vmul.f32 %v1515, %v1538
    %v1550 = vmul.f32 %v1516, %v1548
    %v1552 = vperm.slane %v1505, 0
    %v1554 = vmul.f32 %v1549, %v1552
    %v1555 = vmul.f32 %v1550, %v1552
    %v1557 = vperm.slane %v1506, 0
    %v1559 = vadd.f32 %v1554, %v1557
    %v1560 = vadd.f32 %v1555, %v1557
    %v1561 = vld [vmem:[%s14] sm:$0xff]
    %v1562 = vld [vmem:[%s14 + $0x8] sm:$0xff]
    %v1563 = vld [vmem:[%s14 + $0x10] sm:$0xff]
    %v1564 = vld [vmem:[%s14 + $0x18] sm:$0xff]
    %v1565 = vld [vmem:[%s15] sm:$0x1]
    %v1567 = vperm.slane %v1565, 0
    %v1570 = vsel %vm78, %v1559, 0
    %v1573 = vsel %vm78, %v1560, 0
    %1575 = vmatpush.msra.mxu0 0.0
    %1576 = vmatpush.msra.mxu0 0.0
    %1577 = vmatpush.msra.mxu0 0.0
    %1578 = vmatpush.msra.mxu0 0.0
    %1579 = vmatpush.msra.mxu0 0.0
    %1580 = vmatpush.msra.mxu0 0.0
    %1581 = vmatpush.msra.mxu0 0.0
    %1582 = vmatpush.msra.mxu0 0.0
    %1583 = vmatpush.msra.mxu0 0.0
    %1584 = vmatpush.msra.mxu0 0.0
    %1585 = vmatpush.msra.mxu0 0.0
    %1586 = vmatpush.msra.mxu0 0.0
    %1587 = vmatpush.msra.mxu0 %v1564
    %1588 = vmatpush.msra.mxu0 %v1563
    %1589 = vmatpush.msra.mxu0 %v1562
    %1590 = vmatpush.msra.mxu0 %v1561
    %1591 = vmatmul.f32.gmra.mxu0 %v1570
    %v1592 = vpop.f32.mrf.mxu0
    %v1593 = vadd.f32 %v1567, %v1592
    %1594 = vmatmul.f32.gmra.mxu0 %v1573
    %v1595 = vpop.f32.mrf.mxu0
    %v1596 = vadd.f32 %v1567, %v1595
    %1597 = vdwg.mxu0
    %v1598 = vmax.f32 %v1593, 0.0
    %v1599 = vmax.f32 %v1596, 0.0
    %v1600 = vld [vmem:[%s16] sm:$0xff]
    %v1601 = vld [vmem:[%s16 + $0x8] sm:$0xff]
    %v1602 = vld [vmem:[%s16 + $0x10] sm:$0xff]
    %v1603 = vld [vmem:[%s16 + $0x18] sm:$0xff]
    %v1604 = vld [vmem:[%s16 + $0x20] sm:$0xff]
    %v1605 = vld [vmem:[%s16 + $0x28] sm:$0xff]
    %v1606 = vld [vmem:[%s16 + $0x30] sm:$0xff]
    %v1607 = vld [vmem:[%s16 + $0x38] sm:$0xff]
    %vm1608 = vcmask 523264
    %v1610 = vsel %vm1608, %v1598, 0
    %v1613 = vsel %vm1608, %v1599, 0
    %1615 = vmatpush.msra.mxu0 0.0
    %1616 = vmatpush.msra.mxu0 0.0
    %1617 = vmatpush.msra.mxu0 0.0
    %1618 = vmatpush.msra.mxu0 0.0
    %1619 = vmatpush.msra.mxu0 0.0
    %1620 = vmatpush.msra.mxu0 0.0
    %1621 = vmatpush.msra.mxu0 0.0
    %1622 = vmatpush.msra.mxu0 0.0
    %1623 = vmatpush.msra.mxu0 %v1607
    %1624 = vmatpush.msra.mxu0 %v1606
    %1625 = vmatpush.msra.mxu0 %v1605
    %1626 = vmatpush.msra.mxu0 %v1604
    %1627 = vmatpush.msra.mxu0 %v1603
    %1628 = vmatpush.msra.mxu0 %v1602
    %1629 = vmatpush.msra.mxu0 %v1601
    %1630 = vmatpush.msra.mxu0 %v1600
    %1631 = vmatmul.f32.gmra.mxu0 %v1610
    %v1632 = vpop.f32.mrf.mxu0
    %v1633 = vadd.f32 0.0, %v1632
    %1634 = vmatmul.f32.gmra.mxu0 %v1613
    %v1635 = vpop.f32.mrf.mxu0
    %v1636 = vadd.f32 0.0, %v1635
    %1637 = vdwg.mxu0
    %v1638 = vadd.f32 %v1503, %v1633
    %v1639 = vadd.f32 %v1504, %v1636
    %v1640 = vld [vmem:[%s17] sm:$0x1]
    %v1642 = vperm.slane %v1640, 0
    %v1644 = vadd.f32 %v1638, %v1642
    %v1645 = vadd.f32 %v1639, %v1642
    %s1646 = scalar_lea.vmem %s2, 1
    %v1647 = vld [vmem:[%s1646] sm:$0x1]
    %s1648 = scalar_lea.vmem %s3, 1
    %v1649 = vld [vmem:[%s1648] sm:$0x1]
    %v1650 = vsel %vm78, %v1644, 0.0
    %1651 = vadd.xlane.f32.xlu0 %v1650
    %v1652 = vpop.xlane.xlu0 %1651
    %v1653 = vsel %vm78, %v1645, 0.0
    %1654 = vadd.xlane.f32.xlu0 %v1653
    %v1655 = vpop.xlane.xlu0 %1654
    %v1656 = vmul.f32 %v1652, %v91
    %v1657 = vmul.f32 %v1655, %v91
    %v1658 = vsub.f32 %v1644, %v1656
    %v1659 = vsub.f32 %v1645, %v1657
    %v1660 = vmul.f32 %v1658, %v1658
    %v1661 = vmul.f32 %v1659, %v1659
    %v1662 = vsel %vm78, %v1660, 0.0
    %1663 = vadd.xlane.f32.xlu0 %v1662
    %v1664 = vpop.xlane.xlu0 %1663
    %v1665 = vsel %vm78, %v1661, 0.0
    %1666 = vadd.xlane.f32.xlu0 %v1665
    %v1667 = vpop.xlane.xlu0 %1666
    %v1668 = vmul.f32 %v1664, %v91
    %v1669 = vmul.f32 %v1667, %v91
    %v1670 = vadd.f32 %v1668, 1e-05
    %v1671 = vadd.f32 %v1669, 1e-05
    %v1672 = vrsqrt.pop %v1670
    %v1673 = vmul.f32 %v1672, %v1670
    %v1674 = vmul.f32 %v1673, %v1672
    %v1675 = vmul.f32 0.5, %v1674
    %v1676 = vsub.f32 1.5, %v1675
    %v1677 = vmul.f32 %v1672, %v1676
    %vm1678 = vweird.f32 %v1670
    %vm1679 = vweird.f32 %v1672
    %vm1680 = vmor %vm1678, %vm1679
    %v1681 = vsel %vm1680, %v1672, %v1677
    %v1682 = vrsqrt.pop %v1671
    %v1683 = vmul.f32 %v1682, %v1671
    %v1684 = vmul.f32 %v1683, %v1682
    %v1685 = vmul.f32 0.5, %v1684
    %v1686 = vsub.f32 1.5, %v1685
    %v1687 = vmul.f32 %v1682, %v1686
    %vm1688 = vweird.f32 %v1671
    %vm1689 = vweird.f32 %v1682
    %vm1690 = vmor %vm1688, %vm1689
    %v1691 = vsel %vm1690, %v1682, %v1687
    %v1692 = vmul.f32 %v1658, %v1681
    %v1693 = vmul.f32 %v1659, %v1691
    %v1695 = vperm.slane %v1647, 0
    %v1697 = vmul.f32 %v1692, %v1695
    %v1698 = vmul.f32 %v1693, %v1695
    %v1700 = vperm.slane %v1649, 0
    %v1702 = vadd.f32 %v1697, %v1700
    %v1703 = vadd.f32 %v1698, %v1700
    %s1704 = scalar_lea.vmem %s4, 256
    %v1705 = vld [vmem:[%s1704] sm:$0xff]
    %v1706 = vld [vmem:[%s1704 + $0x8] sm:$0xff]
    %v1707 = vld [vmem:[%s1704 + $0x10] sm:$0xff]
    %v1708 = vld [vmem:[%s1704 + $0x18] sm:$0xff]
    %v1709 = vld [vmem:[%s1704 + $0x20] sm:$0xff]
    %v1710 = vld [vmem:[%s1704 + $0x28] sm:$0xff]
    %v1711 = vld [vmem:[%s1704 + $0x30] sm:$0xff]
    %v1712 = vld [vmem:[%s1704 + $0x38] sm:$0xff]
    %v1713 = vld [vmem:[%s1704 + $0x40] sm:$0xff]
    %v1714 = vld [vmem:[%s1704 + $0x48] sm:$0xff]
    %v1715 = vld [vmem:[%s1704 + $0x50] sm:$0xff]
    %v1716 = vld [vmem:[%s1704 + $0x58] sm:$0xff]
    %v1717 = vld [vmem:[%s1704 + $0x60] sm:$0xff]
    %v1718 = vld [vmem:[%s1704 + $0x68] sm:$0xff]
    %v1719 = vld [vmem:[%s1704 + $0x70] sm:$0xff]
    %v1720 = vld [vmem:[%s1704 + $0x78] sm:$0xff]
    %v1721 = vld [vmem:[%s1704 + $0x80] sm:$0xff]
    %v1722 = vld [vmem:[%s1704 + $0x88] sm:$0xff]
    %v1723 = vld [vmem:[%s1704 + $0x90] sm:$0xff]
    %v1724 = vld [vmem:[%s1704 + $0x98] sm:$0xff]
    %v1725 = vld [vmem:[%s1704 + $0xa0] sm:$0xff]
    %v1726 = vld [vmem:[%s1704 + $0xa8] sm:$0xff]
    %v1727 = vld [vmem:[%s1704 + $0xb0] sm:$0xff]
    %v1728 = vld [vmem:[%s1704 + $0xb8] sm:$0xff]
    %v1729 = vld [vmem:[%s1704 + $0xc0] sm:$0xff]
    %v1730 = vld [vmem:[%s1704 + $0xc8] sm:$0xff]
    %v1731 = vld [vmem:[%s1704 + $0xd0] sm:$0xff]
    %v1732 = vld [vmem:[%s1704 + $0xd8] sm:$0xff]
    %v1733 = vld [vmem:[%s1704 + $0xe0] sm:$0xff]
    %v1734 = vld [vmem:[%s1704 + $0xe8] sm:$0xff]
    %v1735 = vld [vmem:[%s1704 + $0xf0] sm:$0xff]
    %v1736 = vld [vmem:[%s1704 + $0xf8] sm:$0xff]
    %s1737 = scalar_lea.vmem %s5, 8
    %v1738 = vld [vmem:[%s1737] sm:$0x1]
    %v1739 = vld [vmem:[%s1737 + $0x1] sm:$0x1]
    %v1740 = vld [vmem:[%s1737 + $0x2] sm:$0x1]
    %v1741 = vld [vmem:[%s1737 + $0x3] sm:$0x1]
    %v1742 = vld [vmem:[%s1737 + $0x4] sm:$0x1]
    %v1743 = vld [vmem:[%s1737 + $0x5] sm:$0x1]
    %v1744 = vld [vmem:[%s1737 + $0x6] sm:$0x1]
    %v1745 = vld [vmem:[%s1737 + $0x7] sm:$0x1]
    %v1754 = vperm.slane %v1738, 0
    %v1755 = vperm.slane %v1739, 0
    %v1756 = vperm.slane %v1740, 0
    %v1757 = vperm.slane %v1741, 0
    %v1758 = vperm.slane %v1742, 0
    %v1759 = vperm.slane %v1743, 0
    %v1760 = vperm.slane %v1744, 0
    %v1761 = vperm.slane %v1745, 0
    %v1771 = vsel %vm78, %v1702, 0
    %1773 = vmatpush.msra.mxu0 0.0
    %1774 = vmatpush.msra.mxu0 0.0
    %1775 = vmatpush.msra.mxu0 0.0
    %1776 = vmatpush.msra.mxu0 0.0
    %1777 = vmatpush.msra.mxu0 0.0
    %1778 = vmatpush.msra.mxu0 0.0
    %1779 = vmatpush.msra.mxu0 0.0
    %1780 = vmatpush.msra.mxu0 0.0
    %1781 = vmatpush.msra.mxu0 0.0
    %1782 = vmatpush.msra.mxu0 0.0
    %1783 = vmatpush.msra.mxu0 0.0
    %1784 = vmatpush.msra.mxu0 0.0
    %1785 = vmatpush.msra.mxu0 %v1708
    %1786 = vmatpush.msra.mxu0 %v1707
    %1787 = vmatpush.msra.mxu0 %v1706
    %1788 = vmatpush.msra.mxu0 %v1705
    %1789 = vmatmul.f32.gmra.mxu0 %v1771
    %v1790 = vpop.f32.mrf.mxu0
    %v1791 = vadd.f32 %v1754, %v1790
    %1792 = vdwg.mxu0
    %1793 = vmatpush.msra.mxu0 0.0
    %1794 = vmatpush.msra.mxu0 0.0
    %1795 = vmatpush.msra.mxu0 0.0
    %1796 = vmatpush.msra.mxu0 0.0
    %1797 = vmatpush.msra.mxu0 0.0
    %1798 = vmatpush.msra.mxu0 0.0
    %1799 = vmatpush.msra.mxu0 0.0
    %1800 = vmatpush.msra.mxu0 0.0
    %1801 = vmatpush.msra.mxu0 0.0
    %1802 = vmatpush.msra.mxu0 0.0
    %1803 = vmatpush.msra.mxu0 0.0
    %1804 = vmatpush.msra.mxu0 0.0
    %1805 = vmatpush.msra.mxu0 %v1712
    %1806 = vmatpush.msra.mxu0 %v1711
    %1807 = vmatpush.msra.mxu0 %v1710
    %1808 = vmatpush.msra.mxu0 %v1709
    %1809 = vmatmul.f32.gmra.mxu0 %v1771
    %v1810 = vpop.f32.mrf.mxu0
    %v1811 = vadd.f32 %v1755, %v1810
    %1812 = vdwg.mxu0
    %1813 = vmatpush.msra.mxu0 0.0
    %1814 = vmatpush.msra.mxu0 0.0
    %1815 = vmatpush.msra.mxu0 0.0
    %1816 = vmatpush.msra.mxu0 0.0
    %1817 = vmatpush.msra.mxu0 0.0
    %1818 = vmatpush.msra.mxu0 0.0
    %1819 = vmatpush.msra.mxu0 0.0
    %1820 = vmatpush.msra.mxu0 0.0
    %1821 = vmatpush.msra.mxu0 0.0
    %1822 = vmatpush.msra.mxu0 0.0
    %1823 = vmatpush.msra.mxu0 0.0
    %1824 = vmatpush.msra.mxu0 0.0
    %1825 = vmatpush.msra.mxu0 %v1716
    %1826 = vmatpush.msra.mxu0 %v1715
    %1827 = vmatpush.msra.mxu0 %v1714
    %1828 = vmatpush.msra.mxu0 %v1713
    %1829 = vmatmul.f32.gmra.mxu0 %v1771
    %v1830 = vpop.f32.mrf.mxu0
    %v1831 = vadd.f32 %v1756, %v1830
    %1832 = vdwg.mxu0
    %1833 = vmatpush.msra.mxu0 0.0
    %1834 = vmatpush.msra.mxu0 0.0
    %1835 = vmatpush.msra.mxu0 0.0
    %1836 = vmatpush.msra.mxu0 0.0
    %1837 = vmatpush.msra.mxu0 0.0
    %1838 = vmatpush.msra.mxu0 0.0
    %1839 = vmatpush.msra.mxu0 0.0
    %1840 = vmatpush.msra.mxu0 0.0
    %1841 = vmatpush.msra.mxu0 0.0
    %1842 = vmatpush.msra.mxu0 0.0
    %1843 = vmatpush.msra.mxu0 0.0
    %1844 = vmatpush.msra.mxu0 0.0
    %1845 = vmatpush.msra.mxu0 %v1720
    %1846 = vmatpush.msra.mxu0 %v1719
    %1847 = vmatpush.msra.mxu0 %v1718
    %1848 = vmatpush.msra.mxu0 %v1717
    %1849 = vmatmul.f32.gmra.mxu0 %v1771
    %v1850 = vpop.f32.mrf.mxu0
    %v1851 = vadd.f32 %v1757, %v1850
    %1852 = vdwg.mxu0
    %v1854 = vsel %vm78, %v1703, 0
    %1856 = vmatpush.msra.mxu0 0.0
    %1857 = vmatpush.msra.mxu0 0.0
    %1858 = vmatpush.msra.mxu0 0.0
    %1859 = vmatpush.msra.mxu0 0.0
    %1860 = vmatpush.msra.mxu0 0.0
    %1861 = vmatpush.msra.mxu0 0.0
    %1862 = vmatpush.msra.mxu0 0.0
    %1863 = vmatpush.msra.mxu0 0.0
    %1864 = vmatpush.msra.mxu0 0.0
    %1865 = vmatpush.msra.mxu0 0.0
    %1866 = vmatpush.msra.mxu0 0.0
    %1867 = vmatpush.msra.mxu0 0.0
    %1868 = vmatpush.msra.mxu0 %v1724
    %1869 = vmatpush.msra.mxu0 %v1723
    %1870 = vmatpush.msra.mxu0 %v1722
    %1871 = vmatpush.msra.mxu0 %v1721
    %1872 = vmatmul.f32.gmra.mxu0 %v1854
    %v1873 = vpop.f32.mrf.mxu0
    %v1874 = vadd.f32 %v1758, %v1873
    %1875 = vdwg.mxu0
    %1876 = vmatpush.msra.mxu0 0.0
    %1877 = vmatpush.msra.mxu0 0.0
    %1878 = vmatpush.msra.mxu0 0.0
    %1879 = vmatpush.msra.mxu0 0.0
    %1880 = vmatpush.msra.mxu0 0.0
    %1881 = vmatpush.msra.mxu0 0.0
    %1882 = vmatpush.msra.mxu0 0.0
    %1883 = vmatpush.msra.mxu0 0.0
    %1884 = vmatpush.msra.mxu0 0.0
    %1885 = vmatpush.msra.mxu0 0.0
    %1886 = vmatpush.msra.mxu0 0.0
    %1887 = vmatpush.msra.mxu0 0.0
    %1888 = vmatpush.msra.mxu0 %v1728
    %1889 = vmatpush.msra.mxu0 %v1727
    %1890 = vmatpush.msra.mxu0 %v1726
    %1891 = vmatpush.msra.mxu0 %v1725
    %1892 = vmatmul.f32.gmra.mxu0 %v1854
    %v1893 = vpop.f32.mrf.mxu0
    %v1894 = vadd.f32 %v1759, %v1893
    %1895 = vdwg.mxu0
    %1896 = vmatpush.msra.mxu0 0.0
    %1897 = vmatpush.msra.mxu0 0.0
    %1898 = vmatpush.msra.mxu0 0.0
    %1899 = vmatpush.msra.mxu0 0.0
    %1900 = vmatpush.msra.mxu0 0.0
    %1901 = vmatpush.msra.mxu0 0.0
    %1902 = vmatpush.msra.mxu0 0.0
    %1903 = vmatpush.msra.mxu0 0.0
    %1904 = vmatpush.msra.mxu0 0.0
    %1905 = vmatpush.msra.mxu0 0.0
    %1906 = vmatpush.msra.mxu0 0.0
    %1907 = vmatpush.msra.mxu0 0.0
    %1908 = vmatpush.msra.mxu0 %v1732
    %1909 = vmatpush.msra.mxu0 %v1731
    %1910 = vmatpush.msra.mxu0 %v1730
    %1911 = vmatpush.msra.mxu0 %v1729
    %1912 = vmatmul.f32.gmra.mxu0 %v1854
    %v1913 = vpop.f32.mrf.mxu0
    %v1914 = vadd.f32 %v1760, %v1913
    %1915 = vdwg.mxu0
    %1916 = vmatpush.msra.mxu0 0.0
    %1917 = vmatpush.msra.mxu0 0.0
    %1918 = vmatpush.msra.mxu0 0.0
    %1919 = vmatpush.msra.mxu0 0.0
    %1920 = vmatpush.msra.mxu0 0.0
    %1921 = vmatpush.msra.mxu0 0.0
    %1922 = vmatpush.msra.mxu0 0.0
    %1923 = vmatpush.msra.mxu0 0.0
    %1924 = vmatpush.msra.mxu0 0.0
    %1925 = vmatpush.msra.mxu0 0.0
    %1926 = vmatpush.msra.mxu0 0.0
    %1927 = vmatpush.msra.mxu0 0.0
    %1928 = vmatpush.msra.mxu0 %v1736
    %1929 = vmatpush.msra.mxu0 %v1735
    %1930 = vmatpush.msra.mxu0 %v1734
    %1931 = vmatpush.msra.mxu0 %v1733
    %1932 = vmatmul.f32.gmra.mxu0 %v1854
    %v1933 = vpop.f32.mrf.mxu0
    %v1934 = vadd.f32 %v1761, %v1933
    %1935 = vdwg.mxu0
    %s1936 = scalar_lea.vmem %s6, 256
    %v1937 = vld [vmem:[%s1936] sm:$0xff]
    %v1938 = vld [vmem:[%s1936 + $0x8] sm:$0xff]
    %v1939 = vld [vmem:[%s1936 + $0x10] sm:$0xff]
    %v1940 = vld [vmem:[%s1936 + $0x18] sm:$0xff]
    %v1941 = vld [vmem:[%s1936 + $0x20] sm:$0xff]
    %v1942 = vld [vmem:[%s1936 + $0x28] sm:$0xff]
    %v1943 = vld [vmem:[%s1936 + $0x30] sm:$0xff]
    %v1944 = vld [vmem:[%s1936 + $0x38] sm:$0xff]
    %v1945 = vld [vmem:[%s1936 + $0x40] sm:$0xff]
    %v1946 = vld [vmem:[%s1936 + $0x48] sm:$0xff]
    %v1947 = vld [vmem:[%s1936 + $0x50] sm:$0xff]
    %v1948 = vld [vmem:[%s1936 + $0x58] sm:$0xff]
    %v1949 = vld [vmem:[%s1936 + $0x60] sm:$0xff]
    %v1950 = vld [vmem:[%s1936 + $0x68] sm:$0xff]
    %v1951 = vld [vmem:[%s1936 + $0x70] sm:$0xff]
    %v1952 = vld [vmem:[%s1936 + $0x78] sm:$0xff]
    %v1953 = vld [vmem:[%s1936 + $0x80] sm:$0xff]
    %v1954 = vld [vmem:[%s1936 + $0x88] sm:$0xff]
    %v1955 = vld [vmem:[%s1936 + $0x90] sm:$0xff]
    %v1956 = vld [vmem:[%s1936 + $0x98] sm:$0xff]
    %v1957 = vld [vmem:[%s1936 + $0xa0] sm:$0xff]
    %v1958 = vld [vmem:[%s1936 + $0xa8] sm:$0xff]
    %v1959 = vld [vmem:[%s1936 + $0xb0] sm:$0xff]
    %v1960 = vld [vmem:[%s1936 + $0xb8] sm:$0xff]
    %v1961 = vld [vmem:[%s1936 + $0xc0] sm:$0xff]
    %v1962 = vld [vmem:[%s1936 + $0xc8] sm:$0xff]
    %v1963 = vld [vmem:[%s1936 + $0xd0] sm:$0xff]
    %v1964 = vld [vmem:[%s1936 + $0xd8] sm:$0xff]
    %v1965 = vld [vmem:[%s1936 + $0xe0] sm:$0xff]
    %v1966 = vld [vmem:[%s1936 + $0xe8] sm:$0xff]
    %v1967 = vld [vmem:[%s1936 + $0xf0] sm:$0xff]
    %v1968 = vld [vmem:[%s1936 + $0xf8] sm:$0xff]
    %s1969 = scalar_lea.vmem %s7, 8
    %v1970 = vld [vmem:[%s1969] sm:$0x1]
    %v1971 = vld [vmem:[%s1969 + $0x1] sm:$0x1]
    %v1972 = vld [vmem:[%s1969 + $0x2] sm:$0x1]
    %v1973 = vld [vmem:[%s1969 + $0x3] sm:$0x1]
    %v1974 = vld [vmem:[%s1969 + $0x4] sm:$0x1]
    %v1975 = vld [vmem:[%s1969 + $0x5] sm:$0x1]
    %v1976 = vld [vmem:[%s1969 + $0x6] sm:$0x1]
    %v1977 = vld [vmem:[%s1969 + $0x7] sm:$0x1]
    %v1986 = vperm.slane %v1970, 0
    %v1987 = vperm.slane %v1971, 0
    %v1988 = vperm.slane %v1972, 0
    %v1989 = vperm.slane %v1973, 0
    %v1990 = vperm.slane %v1974, 0
    %v1991 = vperm.slane %v1975, 0
    %v1992 = vperm.slane %v1976, 0
    %v1993 = vperm.slane %v1977, 0
    %2002 = vmatpush.msra.mxu0 0.0
    %2003 = vmatpush.msra.mxu0 0.0
    %2004 = vmatpush.msra.mxu0 0.0
    %2005 = vmatpush.msra.mxu0 0.0
    %2006 = vmatpush.msra.mxu0 0.0
    %2007 = vmatpush.msra.mxu0 0.0
    %2008 = vmatpush.msra.mxu0 0.0
    %2009 = vmatpush.msra.mxu0 0.0
    %2010 = vmatpush.msra.mxu0 0.0
    %2011 = vmatpush.msra.mxu0 0.0
    %2012 = vmatpush.msra.mxu0 0.0
    %2013 = vmatpush.msra.mxu0 0.0
    %2014 = vmatpush.msra.mxu0 %v1940
    %2015 = vmatpush.msra.mxu0 %v1939
    %2016 = vmatpush.msra.mxu0 %v1938
    %2017 = vmatpush.msra.mxu0 %v1937
    %2018 = vmatmul.f32.gmra.mxu0 %v1771
    %v2019 = vpop.f32.mrf.mxu0
    %v2020 = vadd.f32 %v1986, %v2019
    %2021 = vdwg.mxu0
    %2022 = vmatpush.msra.mxu0 0.0
    %2023 = vmatpush.msra.mxu0 0.0
    %2024 = vmatpush.msra.mxu0 0.0
    %2025 = vmatpush.msra.mxu0 0.0
    %2026 = vmatpush.msra.mxu0 0.0
    %2027 = vmatpush.msra.mxu0 0.0
    %2028 = vmatpush.msra.mxu0 0.0
    %2029 = vmatpush.msra.mxu0 0.0
    %2030 = vmatpush.msra.mxu0 0.0
    %2031 = vmatpush.msra.mxu0 0.0
    %2032 = vmatpush.msra.mxu0 0.0
    %2033 = vmatpush.msra.mxu0 0.0
    %2034 = vmatpush.msra.mxu0 %v1944
    %2035 = vmatpush.msra.mxu0 %v1943
    %2036 = vmatpush.msra.mxu0 %v1942
    %2037 = vmatpush.msra.mxu0 %v1941
    %2038 = vmatmul.f32.gmra.mxu0 %v1771
    %v2039 = vpop.f32.mrf.mxu0
    %v2040 = vadd.f32 %v1987, %v2039
    %2041 = vdwg.mxu0
    %2042 = vmatpush.msra.mxu0 0.0
    %2043 = vmatpush.msra.mxu0 0.0
    %2044 = vmatpush.msra.mxu0 0.0
    %2045 = vmatpush.msra.mxu0 0.0
    %2046 = vmatpush.msra.mxu0 0.0
    %2047 = vmatpush.msra.mxu0 0.0
    %2048 = vmatpush.msra.mxu0 0.0
    %2049 = vmatpush.msra.mxu0 0.0
    %2050 = vmatpush.msra.mxu0 0.0
    %2051 = vmatpush.msra.mxu0 0.0
    %2052 = vmatpush.msra.mxu0 0.0
    %2053 = vmatpush.msra.mxu0 0.0
    %2054 = vmatpush.msra.mxu0 %v1948
    %2055 = vmatpush.msra.mxu0 %v1947
    %2056 = vmatpush.msra.mxu0 %v1946
    %2057 = vmatpush.msra.mxu0 %v1945
    %2058 = vmatmul.f32.gmra.mxu0 %v1771
    %v2059 = vpop.f32.mrf.mxu0
    %v2060 = vadd.f32 %v1988, %v2059
    %2061 = vdwg.mxu0
    %2062 = vmatpush.msra.mxu0 0.0
    %2063 = vmatpush.msra.mxu0 0.0
    %2064 = vmatpush.msra.mxu0 0.0
    %2065 = vmatpush.msra.mxu0 0.0
    %2066 = vmatpush.msra.mxu0 0.0
    %2067 = vmatpush.msra.mxu0 0.0
    %2068 = vmatpush.msra.mxu0 0.0
    %2069 = vmatpush.msra.mxu0 0.0
    %2070 = vmatpush.msra.mxu0 0.0
    %2071 = vmatpush.msra.mxu0 0.0
    %2072 = vmatpush.msra.mxu0 0.0
    %2073 = vmatpush.msra.mxu0 0.0
    %2074 = vmatpush.msra.mxu0 %v1952
    %2075 = vmatpush.msra.mxu0 %v1951
    %2076 = vmatpush.msra.mxu0 %v1950
    %2077 = vmatpush.msra.mxu0 %v1949
    %2078 = vmatmul.f32.gmra.mxu0 %v1771
    %v2079 = vpop.f32.mrf.mxu0
    %v2080 = vadd.f32 %v1989, %v2079
    %2081 = vdwg.mxu0
    %2082 = vmatpush.msra.mxu0 0.0
    %2083 = vmatpush.msra.mxu0 0.0
    %2084 = vmatpush.msra.mxu0 0.0
    %2085 = vmatpush.msra.mxu0 0.0
    %2086 = vmatpush.msra.mxu0 0.0
    %2087 = vmatpush.msra.mxu0 0.0
    %2088 = vmatpush.msra.mxu0 0.0
    %2089 = vmatpush.msra.mxu0 0.0
    %2090 = vmatpush.msra.mxu0 0.0
    %2091 = vmatpush.msra.mxu0 0.0
    %2092 = vmatpush.msra.mxu0 0.0
    %2093 = vmatpush.msra.mxu0 0.0
    %2094 = vmatpush.msra.mxu0 %v1956
    %2095 = vmatpush.msra.mxu0 %v1955
    %2096 = vmatpush.msra.mxu0 %v1954
    %2097 = vmatpush.msra.mxu0 %v1953
    %2098 = vmatmul.f32.gmra.mxu0 %v1854
    %v2099 = vpop.f32.mrf.mxu0
    %v2100 = vadd.f32 %v1990, %v2099
    %2101 = vdwg.mxu0
    %2102 = vmatpush.msra.mxu0 0.0
    %2103 = vmatpush.msra.mxu0 0.0
    %2104 = vmatpush.msra.mxu0 0.0
    %2105 = vmatpush.msra.mxu0 0.0
    %2106 = vmatpush.msra.mxu0 0.0
    %2107 = vmatpush.msra.mxu0 0.0
    %2108 = vmatpush.msra.mxu0 0.0
    %2109 = vmatpush.msra.mxu0 0.0
    %2110 = vmatpush.msra.mxu0 0.0
    %2111 = vmatpush.msra.mxu0 0.0
    %2112 = vmatpush.msra.mxu0 0.0
    %2113 = vmatpush.msra.mxu0 0.0
    %2114 = vmatpush.msra.mxu0 %v1960
    %2115 = vmatpush.msra.mxu0 %v1959
    %2116 = vmatpush.msra.mxu0 %v1958
    %2117 = vmatpush.msra.mxu0 %v1957
    %2118 = vmatmul.f32.gmra.mxu0 %v1854
    %v2119 = vpop.f32.mrf.mxu0
    %v2120 = vadd.f32 %v1991, %v2119
    %2121 = vdwg.mxu0
    %2122 = vmatpush.msra.mxu0 0.0
    %2123 = vmatpush.msra.mxu0 0.0
    %2124 = vmatpush.msra.mxu0 0.0
    %2125 = vmatpush.msra.mxu0 0.0
    %2126 = vmatpush.msra.mxu0 0.0
    %2127 = vmatpush.msra.mxu0 0.0
    %2128 = vmatpush.msra.mxu0 0.0
    %2129 = vmatpush.msra.mxu0 0.0
    %2130 = vmatpush.msra.mxu0 0.0
    %2131 = vmatpush.msra.mxu0 0.0
    %2132 = vmatpush.msra.mxu0 0.0
    %2133 = vmatpush.msra.mxu0 0.0
    %2134 = vmatpush.msra.mxu0 %v1964
    %2135 = vmatpush.msra.mxu0 %v1963
    %2136 = vmatpush.msra.mxu0 %v1962
    %2137 = vmatpush.msra.mxu0 %v1961
    %2138 = vmatmul.f32.gmra.mxu0 %v1854
    %v2139 = vpop.f32.mrf.mxu0
    %v2140 = vadd.f32 %v1992, %v2139
    %2141 = vdwg.mxu0
    %2142 = vmatpush.msra.mxu0 0.0
    %2143 = vmatpush.msra.mxu0 0.0
    %2144 = vmatpush.msra.mxu0 0.0
    %2145 = vmatpush.msra.mxu0 0.0
    %2146 = vmatpush.msra.mxu0 0.0
    %2147 = vmatpush.msra.mxu0 0.0
    %2148 = vmatpush.msra.mxu0 0.0
    %2149 = vmatpush.msra.mxu0 0.0
    %2150 = vmatpush.msra.mxu0 0.0
    %2151 = vmatpush.msra.mxu0 0.0
    %2152 = vmatpush.msra.mxu0 0.0
    %2153 = vmatpush.msra.mxu0 0.0
    %2154 = vmatpush.msra.mxu0 %v1968
    %2155 = vmatpush.msra.mxu0 %v1967
    %2156 = vmatpush.msra.mxu0 %v1966
    %2157 = vmatpush.msra.mxu0 %v1965
    %2158 = vmatmul.f32.gmra.mxu0 %v1854
    %v2159 = vpop.f32.mrf.mxu0
    %v2160 = vadd.f32 %v1993, %v2159
    %2161 = vdwg.mxu0
    %s2162 = scalar_lea.vmem %s8, 256
    %v2163 = vld [vmem:[%s2162] sm:$0xff]
    %v2164 = vld [vmem:[%s2162 + $0x8] sm:$0xff]
    %v2165 = vld [vmem:[%s2162 + $0x10] sm:$0xff]
    %v2166 = vld [vmem:[%s2162 + $0x18] sm:$0xff]
    %v2167 = vld [vmem:[%s2162 + $0x20] sm:$0xff]
    %v2168 = vld [vmem:[%s2162 + $0x28] sm:$0xff]
    %v2169 = vld [vmem:[%s2162 + $0x30] sm:$0xff]
    %v2170 = vld [vmem:[%s2162 + $0x38] sm:$0xff]
    %v2171 = vld [vmem:[%s2162 + $0x40] sm:$0xff]
    %v2172 = vld [vmem:[%s2162 + $0x48] sm:$0xff]
    %v2173 = vld [vmem:[%s2162 + $0x50] sm:$0xff]
    %v2174 = vld [vmem:[%s2162 + $0x58] sm:$0xff]
    %v2175 = vld [vmem:[%s2162 + $0x60] sm:$0xff]
    %v2176 = vld [vmem:[%s2162 + $0x68] sm:$0xff]
    %v2177 = vld [vmem:[%s2162 + $0x70] sm:$0xff]
    %v2178 = vld [vmem:[%s2162 + $0x78] sm:$0xff]
    %v2179 = vld [vmem:[%s2162 + $0x80] sm:$0xff]
    %v2180 = vld [vmem:[%s2162 + $0x88] sm:$0xff]
    %v2181 = vld [vmem:[%s2162 + $0x90] sm:$0xff]
    %v2182 = vld [vmem:[%s2162 + $0x98] sm:$0xff]
    %v2183 = vld [vmem:[%s2162 + $0xa0] sm:$0xff]
    %v2184 = vld [vmem:[%s2162 + $0xa8] sm:$0xff]
    %v2185 = vld [vmem:[%s2162 + $0xb0] sm:$0xff]
    %v2186 = vld [vmem:[%s2162 + $0xb8] sm:$0xff]
    %v2187 = vld [vmem:[%s2162 + $0xc0] sm:$0xff]
    %v2188 = vld [vmem:[%s2162 + $0xc8] sm:$0xff]
    %v2189 = vld [vmem:[%s2162 + $0xd0] sm:$0xff]
    %v2190 = vld [vmem:[%s2162 + $0xd8] sm:$0xff]
    %v2191 = vld [vmem:[%s2162 + $0xe0] sm:$0xff]
    %v2192 = vld [vmem:[%s2162 + $0xe8] sm:$0xff]
    %v2193 = vld [vmem:[%s2162 + $0xf0] sm:$0xff]
    %v2194 = vld [vmem:[%s2162 + $0xf8] sm:$0xff]
    %s2195 = scalar_lea.vmem %s9, 8
    %v2196 = vld [vmem:[%s2195] sm:$0x1]
    %v2197 = vld [vmem:[%s2195 + $0x1] sm:$0x1]
    %v2198 = vld [vmem:[%s2195 + $0x2] sm:$0x1]
    %v2199 = vld [vmem:[%s2195 + $0x3] sm:$0x1]
    %v2200 = vld [vmem:[%s2195 + $0x4] sm:$0x1]
    %v2201 = vld [vmem:[%s2195 + $0x5] sm:$0x1]
    %v2202 = vld [vmem:[%s2195 + $0x6] sm:$0x1]
    %v2203 = vld [vmem:[%s2195 + $0x7] sm:$0x1]
    %v2212 = vperm.slane %v2196, 0
    %v2213 = vperm.slane %v2197, 0
    %v2214 = vperm.slane %v2198, 0
    %v2215 = vperm.slane %v2199, 0
    %v2216 = vperm.slane %v2200, 0
    %v2217 = vperm.slane %v2201, 0
    %v2218 = vperm.slane %v2202, 0
    %v2219 = vperm.slane %v2203, 0
    %2228 = vmatpush.msra.mxu0 0.0
    %2229 = vmatpush.msra.mxu0 0.0
    %2230 = vmatpush.msra.mxu0 0.0
    %2231 = vmatpush.msra.mxu0 0.0
    %2232 = vmatpush.msra.mxu0 0.0
    %2233 = vmatpush.msra.mxu0 0.0
    %2234 = vmatpush.msra.mxu0 0.0
    %2235 = vmatpush.msra.mxu0 0.0
    %2236 = vmatpush.msra.mxu0 0.0
    %2237 = vmatpush.msra.mxu0 0.0
    %2238 = vmatpush.msra.mxu0 0.0
    %2239 = vmatpush.msra.mxu0 0.0
    %2240 = vmatpush.msra.mxu0 %v2166
    %2241 = vmatpush.msra.mxu0 %v2165
    %2242 = vmatpush.msra.mxu0 %v2164
    %2243 = vmatpush.msra.mxu0 %v2163
    %2244 = vmatmul.f32.gmra.mxu0 %v1771
    %v2245 = vpop.f32.mrf.mxu0
    %v2246 = vadd.f32 %v2212, %v2245
    %2247 = vdwg.mxu0
    %2248 = vmatpush.msra.mxu0 0.0
    %2249 = vmatpush.msra.mxu0 0.0
    %2250 = vmatpush.msra.mxu0 0.0
    %2251 = vmatpush.msra.mxu0 0.0
    %2252 = vmatpush.msra.mxu0 0.0
    %2253 = vmatpush.msra.mxu0 0.0
    %2254 = vmatpush.msra.mxu0 0.0
    %2255 = vmatpush.msra.mxu0 0.0
    %2256 = vmatpush.msra.mxu0 0.0
    %2257 = vmatpush.msra.mxu0 0.0
    %2258 = vmatpush.msra.mxu0 0.0
    %2259 = vmatpush.msra.mxu0 0.0
    %2260 = vmatpush.msra.mxu0 %v2170
    %2261 = vmatpush.msra.mxu0 %v2169
    %2262 = vmatpush.msra.mxu0 %v2168
    %2263 = vmatpush.msra.mxu0 %v2167
    %2264 = vmatmul.f32.gmra.mxu0 %v1771
    %v2265 = vpop.f32.mrf.mxu0
    %v2266 = vadd.f32 %v2213, %v2265
    %2267 = vdwg.mxu0
    %2268 = vmatpush.msra.mxu0 0.0
    %2269 = vmatpush.msra.mxu0 0.0
    %2270 = vmatpush.msra.mxu0 0.0
    %2271 = vmatpush.msra.mxu0 0.0
    %2272 = vmatpush.msra.mxu0 0.0
    %2273 = vmatpush.msra.mxu0 0.0
    %2274 = vmatpush.msra.mxu0 0.0
    %2275 = vmatpush.msra.mxu0 0.0
    %2276 = vmatpush.msra.mxu0 0.0
    %2277 = vmatpush.msra.mxu0 0.0
    %2278 = vmatpush.msra.mxu0 0.0
    %2279 = vmatpush.msra.mxu0 0.0
    %2280 = vmatpush.msra.mxu0 %v2174
    %2281 = vmatpush.msra.mxu0 %v2173
    %2282 = vmatpush.msra.mxu0 %v2172
    %2283 = vmatpush.msra.mxu0 %v2171
    %2284 = vmatmul.f32.gmra.mxu0 %v1771
    %v2285 = vpop.f32.mrf.mxu0
    %v2286 = vadd.f32 %v2214, %v2285
    %2287 = vdwg.mxu0
    %2288 = vmatpush.msra.mxu0 0.0
    %2289 = vmatpush.msra.mxu0 0.0
    %2290 = vmatpush.msra.mxu0 0.0
    %2291 = vmatpush.msra.mxu0 0.0
    %2292 = vmatpush.msra.mxu0 0.0
    %2293 = vmatpush.msra.mxu0 0.0
    %2294 = vmatpush.msra.mxu0 0.0
    %2295 = vmatpush.msra.mxu0 0.0
    %2296 = vmatpush.msra.mxu0 0.0
    %2297 = vmatpush.msra.mxu0 0.0
    %2298 = vmatpush.msra.mxu0 0.0
    %2299 = vmatpush.msra.mxu0 0.0
    %2300 = vmatpush.msra.mxu0 %v2178
    %2301 = vmatpush.msra.mxu0 %v2177
    %2302 = vmatpush.msra.mxu0 %v2176
    %2303 = vmatpush.msra.mxu0 %v2175
    %2304 = vmatmul.f32.gmra.mxu0 %v1771
    %v2305 = vpop.f32.mrf.mxu0
    %v2306 = vadd.f32 %v2215, %v2305
    %2307 = vdwg.mxu0
    %2308 = vmatpush.msra.mxu0 0.0
    %2309 = vmatpush.msra.mxu0 0.0
    %2310 = vmatpush.msra.mxu0 0.0
    %2311 = vmatpush.msra.mxu0 0.0
    %2312 = vmatpush.msra.mxu0 0.0
    %2313 = vmatpush.msra.mxu0 0.0
    %2314 = vmatpush.msra.mxu0 0.0
    %2315 = vmatpush.msra.mxu0 0.0
    %2316 = vmatpush.msra.mxu0 0.0
    %2317 = vmatpush.msra.mxu0 0.0
    %2318 = vmatpush.msra.mxu0 0.0
    %2319 = vmatpush.msra.mxu0 0.0
    %2320 = vmatpush.msra.mxu0 %v2182
    %2321 = vmatpush.msra.mxu0 %v2181
    %2322 = vmatpush.msra.mxu0 %v2180
    %2323 = vmatpush.msra.mxu0 %v2179
    %2324 = vmatmul.f32.gmra.mxu0 %v1854
    %v2325 = vpop.f32.mrf.mxu0
    %v2326 = vadd.f32 %v2216, %v2325
    %2327 = vdwg.mxu0
    %2328 = vmatpush.msra.mxu0 0.0
    %2329 = vmatpush.msra.mxu0 0.0
    %2330 = vmatpush.msra.mxu0 0.0
    %2331 = vmatpush.msra.mxu0 0.0
    %2332 = vmatpush.msra.mxu0 0.0
    %2333 = vmatpush.msra.mxu0 0.0
    %2334 = vmatpush.msra.mxu0 0.0
    %2335 = vmatpush.msra.mxu0 0.0
    %2336 = vmatpush.msra.mxu0 0.0
    %2337 = vmatpush.msra.mxu0 0.0
    %2338 = vmatpush.msra.mxu0 0.0
    %2339 = vmatpush.msra.mxu0 0.0
    %2340 = vmatpush.msra.mxu0 %v2186
    %2341 = vmatpush.msra.mxu0 %v2185
    %2342 = vmatpush.msra.mxu0 %v2184
    %2343 = vmatpush.msra.mxu0 %v2183
    %2344 = vmatmul.f32.gmra.mxu0 %v1854
    %v2345 = vpop.f32.mrf.mxu0
    %v2346 = vadd.f32 %v2217, %v2345
    %2347 = vdwg.mxu0
    %2348 = vmatpush.msra.mxu0 0.0
    %2349 = vmatpush.msra.mxu0 0.0
    %2350 = vmatpush.msra.mxu0 0.0
    %2351 = vmatpush.msra.mxu0 0.0
    %2352 = vmatpush.msra.mxu0 0.0
    %2353 = vmatpush.msra.mxu0 0.0
    %2354 = vmatpush.msra.mxu0 0.0
    %2355 = vmatpush.msra.mxu0 0.0
    %2356 = vmatpush.msra.mxu0 0.0
    %2357 = vmatpush.msra.mxu0 0.0
    %2358 = vmatpush.msra.mxu0 0.0
    %2359 = vmatpush.msra.mxu0 0.0
    %2360 = vmatpush.msra.mxu0 %v2190
    %2361 = vmatpush.msra.mxu0 %v2189
    %2362 = vmatpush.msra.mxu0 %v2188
    %2363 = vmatpush.msra.mxu0 %v2187
    %2364 = vmatmul.f32.gmra.mxu0 %v1854
    %v2365 = vpop.f32.mrf.mxu0
    %v2366 = vadd.f32 %v2218, %v2365
    %2367 = vdwg.mxu0
    %2368 = vmatpush.msra.mxu0 0.0
    %2369 = vmatpush.msra.mxu0 0.0
    %2370 = vmatpush.msra.mxu0 0.0
    %2371 = vmatpush.msra.mxu0 0.0
    %2372 = vmatpush.msra.mxu0 0.0
    %2373 = vmatpush.msra.mxu0 0.0
    %2374 = vmatpush.msra.mxu0 0.0
    %2375 = vmatpush.msra.mxu0 0.0
    %2376 = vmatpush.msra.mxu0 0.0
    %2377 = vmatpush.msra.mxu0 0.0
    %2378 = vmatpush.msra.mxu0 0.0
    %2379 = vmatpush.msra.mxu0 0.0
    %2380 = vmatpush.msra.mxu0 %v2194
    %2381 = vmatpush.msra.mxu0 %v2193
    %2382 = vmatpush.msra.mxu0 %v2192
    %2383 = vmatpush.msra.mxu0 %v2191
    %2384 = vmatmul.f32.gmra.mxu0 %v1854
    %v2385 = vpop.f32.mrf.mxu0
    %v2386 = vadd.f32 %v2219, %v2385
    %2387 = vdwg.mxu0
    %v2389 = vsel %vm818, %v1791, 0
    %v2392 = vsel %vm818, %v2020, 0
    %2394 = vmatpush.xpose.msra.mxu0 0.0
    %2395 = vmatpush.xpose.msra.mxu0 0.0
    %2396 = vmatpush.xpose.msra.mxu0 0.0
    %2397 = vmatpush.xpose.msra.mxu0 0.0
    %2398 = vmatpush.xpose.msra.mxu0 0.0
    %2399 = vmatpush.xpose.msra.mxu0 0.0
    %2400 = vmatpush.xpose.msra.mxu0 0.0
    %2401 = vmatpush.xpose.msra.mxu0 0.0
    %2402 = vmatpush.xpose.msra.mxu0 0.0
    %2403 = vmatpush.xpose.msra.mxu0 0.0
    %2404 = vmatpush.xpose.msra.mxu0 0.0
    %2405 = vmatpush.xpose.msra.mxu0 0.0
    %2406 = vmatpush.xpose.msra.mxu0 0.0
    %2407 = vmatpush.xpose.msra.mxu0 0.0
    %2408 = vmatpush.xpose.msra.mxu0 0.0
    %2409 = vmatpush.xpose.msra.mxu0 %v2392
    %2410 = vmatmul.f32.gmra.mxu0 %v2389
    %v2411 = vpop.f32.mrf.mxu0
    %v2412 = vadd.f32 %v68, %v2411
    %2413 = vdwg.mxu0
    %v2415 = vsel %vm818, %v1811, 0
    %v2418 = vsel %vm818, %v2040, 0
    %2420 = vmatpush.xpose.msra.mxu0 0.0
    %2421 = vmatpush.xpose.msra.mxu0 0.0
    %2422 = vmatpush.xpose.msra.mxu0 0.0
    %2423 = vmatpush.xpose.msra.mxu0 0.0
    %2424 = vmatpush.xpose.msra.mxu0 0.0
    %2425 = vmatpush.xpose.msra.mxu0 0.0
    %2426 = vmatpush.xpose.msra.mxu0 0.0
    %2427 = vmatpush.xpose.msra.mxu0 0.0
    %2428 = vmatpush.xpose.msra.mxu0 0.0
    %2429 = vmatpush.xpose.msra.mxu0 0.0
    %2430 = vmatpush.xpose.msra.mxu0 0.0
    %2431 = vmatpush.xpose.msra.mxu0 0.0
    %2432 = vmatpush.xpose.msra.mxu0 0.0
    %2433 = vmatpush.xpose.msra.mxu0 0.0
    %2434 = vmatpush.xpose.msra.mxu0 0.0
    %2435 = vmatpush.xpose.msra.mxu0 %v2418
    %2436 = vmatmul.f32.gmra.mxu0 %v2415
    %v2437 = vpop.f32.mrf.mxu0
    %v2438 = vadd.f32 %v69, %v2437
    %2439 = vdwg.mxu0
    %v2441 = vsel %vm818, %v1831, 0
    %v2444 = vsel %vm818, %v2060, 0
    %2446 = vmatpush.xpose.msra.mxu0 0.0
    %2447 = vmatpush.xpose.msra.mxu0 0.0
    %2448 = vmatpush.xpose.msra.mxu0 0.0
    %2449 = vmatpush.xpose.msra.mxu0 0.0
    %2450 = vmatpush.xpose.msra.mxu0 0.0
    %2451 = vmatpush.xpose.msra.mxu0 0.0
    %2452 = vmatpush.xpose.msra.mxu0 0.0
    %2453 = vmatpush.xpose.msra.mxu0 0.0
    %2454 = vmatpush.xpose.msra.mxu0 0.0
    %2455 = vmatpush.xpose.msra.mxu0 0.0
    %2456 = vmatpush.xpose.msra.mxu0 0.0
    %2457 = vmatpush.xpose.msra.mxu0 0.0
    %2458 = vmatpush.xpose.msra.mxu0 0.0
    %2459 = vmatpush.xpose.msra.mxu0 0.0
    %2460 = vmatpush.xpose.msra.mxu0 0.0
    %2461 = vmatpush.xpose.msra.mxu0 %v2444
    %2462 = vmatmul.f32.gmra.mxu0 %v2441
    %v2463 = vpop.f32.mrf.mxu0
    %v2464 = vadd.f32 %v70, %v2463
    %2465 = vdwg.mxu0
    %v2467 = vsel %vm818, %v1851, 0
    %v2470 = vsel %vm818, %v2080, 0
    %2472 = vmatpush.xpose.msra.mxu0 0.0
    %2473 = vmatpush.xpose.msra.mxu0 0.0
    %2474 = vmatpush.xpose.msra.mxu0 0.0
    %2475 = vmatpush.xpose.msra.mxu0 0.0
    %2476 = vmatpush.xpose.msra.mxu0 0.0
    %2477 = vmatpush.xpose.msra.mxu0 0.0
    %2478 = vmatpush.xpose.msra.mxu0 0.0
    %2479 = vmatpush.xpose.msra.mxu0 0.0
    %2480 = vmatpush.xpose.msra.mxu0 0.0
    %2481 = vmatpush.xpose.msra.mxu0 0.0
    %2482 = vmatpush.xpose.msra.mxu0 0.0
    %2483 = vmatpush.xpose.msra.mxu0 0.0
    %2484 = vmatpush.xpose.msra.mxu0 0.0
    %2485 = vmatpush.xpose.msra.mxu0 0.0
    %2486 = vmatpush.xpose.msra.mxu0 0.0
    %2487 = vmatpush.xpose.msra.mxu0 %v2470
    %2488 = vmatmul.f32.gmra.mxu0 %v2467
    %v2489 = vpop.f32.mrf.mxu0
    %v2490 = vadd.f32 %v71, %v2489
    %2491 = vdwg.mxu0
    %v2493 = vsel %vm818, %v1874, 0
    %v2496 = vsel %vm818, %v2100, 0
    %2498 = vmatpush.xpose.msra.mxu0 0.0
    %2499 = vmatpush.xpose.msra.mxu0 0.0
    %2500 = vmatpush.xpose.msra.mxu0 0.0
    %2501 = vmatpush.xpose.msra.mxu0 0.0
    %2502 = vmatpush.xpose.msra.mxu0 0.0
    %2503 = vmatpush.xpose.msra.mxu0 0.0
    %2504 = vmatpush.xpose.msra.mxu0 0.0
    %2505 = vmatpush.xpose.msra.mxu0 0.0
    %2506 = vmatpush.xpose.msra.mxu0 0.0
    %2507 = vmatpush.xpose.msra.mxu0 0.0
    %2508 = vmatpush.xpose.msra.mxu0 0.0
    %2509 = vmatpush.xpose.msra.mxu0 0.0
    %2510 = vmatpush.xpose.msra.mxu0 0.0
    %2511 = vmatpush.xpose.msra.mxu0 0.0
    %2512 = vmatpush.xpose.msra.mxu0 0.0
    %2513 = vmatpush.xpose.msra.mxu0 %v2496
    %2514 = vmatmul.f32.gmra.mxu0 %v2493
    %v2515 = vpop.f32.mrf.mxu0
    %v2516 = vadd.f32 %v72, %v2515
    %2517 = vdwg.mxu0
    %v2519 = vsel %vm818, %v1894, 0
    %v2522 = vsel %vm818, %v2120, 0
    %2524 = vmatpush.xpose.msra.mxu0 0.0
    %2525 = vmatpush.xpose.msra.mxu0 0.0
    %2526 = vmatpush.xpose.msra.mxu0 0.0
    %2527 = vmatpush.xpose.msra.mxu0 0.0
    %2528 = vmatpush.xpose.msra.mxu0 0.0
    %2529 = vmatpush.xpose.msra.mxu0 0.0
    %2530 = vmatpush.xpose.msra.mxu0 0.0
    %2531 = vmatpush.xpose.msra.mxu0 0.0
    %2532 = vmatpush.xpose.msra.mxu0 0.0
    %2533 = vmatpush.xpose.msra.mxu0 0.0
    %2534 = vmatpush.xpose.msra.mxu0 0.0
    %2535 = vmatpush.xpose.msra.mxu0 0.0
    %2536 = vmatpush.xpose.msra.mxu0 0.0
    %2537 = vmatpush.xpose.msra.mxu0 0.0
    %2538 = vmatpush.xpose.msra.mxu0 0.0
    %2539 = vmatpush.xpose.msra.mxu0 %v2522
    %2540 = vmatmul.f32.gmra.mxu0 %v2519
    %v2541 = vpop.f32.mrf.mxu0
    %v2542 = vadd.f32 %v73, %v2541
    %2543 = vdwg.mxu0
    %v2545 = vsel %vm818, %v1914, 0
    %v2548 = vsel %vm818, %v2140, 0
    %2550 = vmatpush.xpose.msra.mxu0 0.0
    %2551 = vmatpush.xpose.msra.mxu0 0.0
    %2552 = vmatpush.xpose.msra.mxu0 0.0
    %2553 = vmatpush.xpose.msra.mxu0 0.0
    %2554 = vmatpush.xpose.msra.mxu0 0.0
    %2555 = vmatpush.xpose.msra.mxu0 0.0
    %2556 = vmatpush.xpose.msra.mxu0 0.0
    %2557 = vmatpush.xpose.msra.mxu0 0.0
    %2558 = vmatpush.xpose.msra.mxu0 0.0
    %2559 = vmatpush.xpose.msra.mxu0 0.0
    %2560 = vmatpush.xpose.msra.mxu0 0.0
    %2561 = vmatpush.xpose.msra.mxu0 0.0
    %2562 = vmatpush.xpose.msra.mxu0 0.0
    %2563 = vmatpush.xpose.msra.mxu0 0.0
    %2564 = vmatpush.xpose.msra.mxu0 0.0
    %2565 = vmatpush.xpose.msra.mxu0 %v2548
    %2566 = vmatmul.f32.gmra.mxu0 %v2545
    %v2567 = vpop.f32.mrf.mxu0
    %v2568 = vadd.f32 %v74, %v2567
    %2569 = vdwg.mxu0
    %v2571 = vsel %vm818, %v1934, 0
    %v2574 = vsel %vm818, %v2160, 0
    %2576 = vmatpush.xpose.msra.mxu0 0.0
    %2577 = vmatpush.xpose.msra.mxu0 0.0
    %2578 = vmatpush.xpose.msra.mxu0 0.0
    %2579 = vmatpush.xpose.msra.mxu0 0.0
    %2580 = vmatpush.xpose.msra.mxu0 0.0
    %2581 = vmatpush.xpose.msra.mxu0 0.0
    %2582 = vmatpush.xpose.msra.mxu0 0.0
    %2583 = vmatpush.xpose.msra.mxu0 0.0
    %2584 = vmatpush.xpose.msra.mxu0 0.0
    %2585 = vmatpush.xpose.msra.mxu0 0.0
    %2586 = vmatpush.xpose.msra.mxu0 0.0
    %2587 = vmatpush.xpose.msra.mxu0 0.0
    %2588 = vmatpush.xpose.msra.mxu0 0.0
    %2589 = vmatpush.xpose.msra.mxu0 0.0
    %2590 = vmatpush.xpose.msra.mxu0 0.0
    %2591 = vmatpush.xpose.msra.mxu0 %v2574
    %2592 = vmatmul.f32.gmra.mxu0 %v2571
    %v2593 = vpop.f32.mrf.mxu0
    %v2594 = vadd.f32 %v75, %v2593
    %2595 = vdwg.mxu0
    %v2596 = vsel %vm818, %v2412, -inf
    %2597 = vmax.xlane.f32.xlu0 %v2596
    %v2598 = vpop.xlane.xlu0 %2597
    %v2599 = vsel %vm818, %v2438, -inf
    %2600 = vmax.xlane.f32.xlu0 %v2599
    %v2601 = vpop.xlane.xlu0 %2600
    %v2602 = vsel %vm818, %v2464, -inf
    %2603 = vmax.xlane.f32.xlu0 %v2602
    %v2604 = vpop.xlane.xlu0 %2603
    %v2605 = vsel %vm818, %v2490, -inf
    %2606 = vmax.xlane.f32.xlu0 %v2605
    %v2607 = vpop.xlane.xlu0 %2606
    %v2608 = vsel %vm818, %v2516, -inf
    %2609 = vmax.xlane.f32.xlu0 %v2608
    %v2610 = vpop.xlane.xlu0 %2609
    %v2611 = vsel %vm818, %v2542, -inf
    %2612 = vmax.xlane.f32.xlu0 %v2611
    %v2613 = vpop.xlane.xlu0 %2612
    %v2614 = vsel %vm818, %v2568, -inf
    %2615 = vmax.xlane.f32.xlu0 %v2614
    %v2616 = vpop.xlane.xlu0 %2615
    %v2617 = vsel %vm818, %v2594, -inf
    %2618 = vmax.xlane.f32.xlu0 %v2617
    %v2619 = vpop.xlane.xlu0 %2618
    %v2620 = vsub.f32 %v2412, %v2598
    %v2621 = vsub.f32 %v2438, %v2601
    %v2622 = vsub.f32 %v2464, %v2604
    %v2623 = vsub.f32 %v2490, %v2607
    %v2624 = vsub.f32 %v2516, %v2610
    %v2625 = vsub.f32 %v2542, %v2613
    %v2626 = vsub.f32 %v2568, %v2616
    %v2627 = vsub.f32 %v2594, %v2619
    %v2628 = vmul.f32 %v2620, 1.442695
    %v2629 = vpow.pop %v2628
    %v2630 = vmul.f32 %v2621, 1.442695
    %v2631 = vpow.pop %v2630
    %v2632 = vmul.f32 %v2622, 1.442695
    %v2633 = vpow.pop %v2632
    %v2634 = vmul.f32 %v2623, 1.442695
    %v2635 = vpow.pop %v2634
    %v2636 = vmul.f32 %v2624, 1.442695
    %v2637 = vpow.pop %v2636
    %v2638 = vmul.f32 %v2625, 1.442695
    %v2639 = vpow.pop %v2638
    %v2640 = vmul.f32 %v2626, 1.442695
    %v2641 = vpow.pop %v2640
    %v2642 = vmul.f32 %v2627, 1.442695
    %v2643 = vpow.pop %v2642
    %v2644 = vsel %vm818, %v2629, 0.0
    %2645 = vadd.xlane.f32.xlu0 %v2644
    %v2646 = vpop.xlane.xlu0 %2645
    %v2647 = vsel %vm818, %v2631, 0.0
    %2648 = vadd.xlane.f32.xlu0 %v2647
    %v2649 = vpop.xlane.xlu0 %2648
    %v2650 = vsel %vm818, %v2633, 0.0
    %2651 = vadd.xlane.f32.xlu0 %v2650
    %v2652 = vpop.xlane.xlu0 %2651
    %v2653 = vsel %vm818, %v2635, 0.0
    %2654 = vadd.xlane.f32.xlu0 %v2653
    %v2655 = vpop.xlane.xlu0 %2654
    %v2656 = vsel %vm818, %v2637, 0.0
    %2657 = vadd.xlane.f32.xlu0 %v2656
    %v2658 = vpop.xlane.xlu0 %2657
    %v2659 = vsel %vm818, %v2639, 0.0
    %2660 = vadd.xlane.f32.xlu0 %v2659
    %v2661 = vpop.xlane.xlu0 %2660
    %v2662 = vsel %vm818, %v2641, 0.0
    %2663 = vadd.xlane.f32.xlu0 %v2662
    %v2664 = vpop.xlane.xlu0 %2663
    %v2665 = vsel %vm818, %v2643, 0.0
    %2666 = vadd.xlane.f32.xlu0 %v2665
    %v2667 = vpop.xlane.xlu0 %2666
    %v2668 = vrcp.pop %v2646
    %v2669 = vrcp.pop %v2649
    %v2670 = vrcp.pop %v2652
    %v2671 = vrcp.pop %v2655
    %v2672 = vrcp.pop %v2658
    %v2673 = vrcp.pop %v2661
    %v2674 = vrcp.pop %v2664
    %v2675 = vrcp.pop %v2667
    %v2676 = vmul.f32 %v2629, %v2668
    %v2677 = vmul.f32 %v2631, %v2669
    %v2678 = vmul.f32 %v2633, %v2670
    %v2679 = vmul.f32 %v2635, %v2671
    %v2680 = vmul.f32 %v2637, %v2672
    %v2681 = vmul.f32 %v2639, %v2673
    %v2682 = vmul.f32 %v2641, %v2674
    %v2683 = vmul.f32 %v2643, %v2675
    %v2685 = vsel %vm818, %v2676, 0
    %2687 = vmatpush.msra.mxu0 0.0
    %2688 = vmatpush.msra.mxu0 0.0
    %2689 = vmatpush.msra.mxu0 0.0
    %2690 = vmatpush.msra.mxu0 0.0
    %2691 = vmatpush.msra.mxu0 0.0
    %2692 = vmatpush.msra.mxu0 0.0
    %2693 = vmatpush.msra.mxu0 0.0
    %2694 = vmatpush.msra.mxu0 0.0
    %2695 = vmatpush.msra.mxu0 0.0
    %2696 = vmatpush.msra.mxu0 0.0
    %2697 = vmatpush.msra.mxu0 0.0
    %2698 = vmatpush.msra.mxu0 0.0
    %2699 = vmatpush.msra.mxu0 0.0
    %2700 = vmatpush.msra.mxu0 0.0
    %2701 = vmatpush.msra.mxu0 0.0
    %2702 = vmatpush.msra.mxu0 %v2246
    %2703 = vmatmul.f32.gmra.mxu0 %v2685
    %v2704 = vpop.f32.mrf.mxu0
    %v2705 = vadd.f32 0.0, %v2704
    %2706 = vdwg.mxu0
    %v2708 = vsel %vm818, %v2677, 0
    %2710 = vmatpush.msra.mxu0 0.0
    %2711 = vmatpush.msra.mxu0 0.0
    %2712 = vmatpush.msra.mxu0 0.0
    %2713 = vmatpush.msra.mxu0 0.0
    %2714 = vmatpush.msra.mxu0 0.0
    %2715 = vmatpush.msra.mxu0 0.0
    %2716 = vmatpush.msra.mxu0 0.0
    %2717 = vmatpush.msra.mxu0 0.0
    %2718 = vmatpush.msra.mxu0 0.0
    %2719 = vmatpush.msra.mxu0 0.0
    %2720 = vmatpush.msra.mxu0 0.0
    %2721 = vmatpush.msra.mxu0 0.0
    %2722 = vmatpush.msra.mxu0 0.0
    %2723 = vmatpush.msra.mxu0 0.0
    %2724 = vmatpush.msra.mxu0 0.0
    %2725 = vmatpush.msra.mxu0 %v2266
    %2726 = vmatmul.f32.gmra.mxu0 %v2708
    %v2727 = vpop.f32.mrf.mxu0
    %v2728 = vadd.f32 0.0, %v2727
    %2729 = vdwg.mxu0
    %v2731 = vsel %vm818, %v2678, 0
    %2733 = vmatpush.msra.mxu0 0.0
    %2734 = vmatpush.msra.mxu0 0.0
    %2735 = vmatpush.msra.mxu0 0.0
    %2736 = vmatpush.msra.mxu0 0.0
    %2737 = vmatpush.msra.mxu0 0.0
    %2738 = vmatpush.msra.mxu0 0.0
    %2739 = vmatpush.msra.mxu0 0.0
    %2740 = vmatpush.msra.mxu0 0.0
    %2741 = vmatpush.msra.mxu0 0.0
    %2742 = vmatpush.msra.mxu0 0.0
    %2743 = vmatpush.msra.mxu0 0.0
    %2744 = vmatpush.msra.mxu0 0.0
    %2745 = vmatpush.msra.mxu0 0.0
    %2746 = vmatpush.msra.mxu0 0.0
    %2747 = vmatpush.msra.mxu0 0.0
    %2748 = vmatpush.msra.mxu0 %v2286
    %2749 = vmatmul.f32.gmra.mxu0 %v2731
    %v2750 = vpop.f32.mrf.mxu0
    %v2751 = vadd.f32 0.0, %v2750
    %2752 = vdwg.mxu0
    %v2754 = vsel %vm818, %v2679, 0
    %2756 = vmatpush.msra.mxu0 0.0
    %2757 = vmatpush.msra.mxu0 0.0
    %2758 = vmatpush.msra.mxu0 0.0
    %2759 = vmatpush.msra.mxu0 0.0
    %2760 = vmatpush.msra.mxu0 0.0
    %2761 = vmatpush.msra.mxu0 0.0
    %2762 = vmatpush.msra.mxu0 0.0
    %2763 = vmatpush.msra.mxu0 0.0
    %2764 = vmatpush.msra.mxu0 0.0
    %2765 = vmatpush.msra.mxu0 0.0
    %2766 = vmatpush.msra.mxu0 0.0
    %2767 = vmatpush.msra.mxu0 0.0
    %2768 = vmatpush.msra.mxu0 0.0
    %2769 = vmatpush.msra.mxu0 0.0
    %2770 = vmatpush.msra.mxu0 0.0
    %2771 = vmatpush.msra.mxu0 %v2306
    %2772 = vmatmul.f32.gmra.mxu0 %v2754
    %v2773 = vpop.f32.mrf.mxu0
    %v2774 = vadd.f32 0.0, %v2773
    %2775 = vdwg.mxu0
    %v2777 = vsel %vm818, %v2680, 0
    %2779 = vmatpush.msra.mxu0 0.0
    %2780 = vmatpush.msra.mxu0 0.0
    %2781 = vmatpush.msra.mxu0 0.0
    %2782 = vmatpush.msra.mxu0 0.0
    %2783 = vmatpush.msra.mxu0 0.0
    %2784 = vmatpush.msra.mxu0 0.0
    %2785 = vmatpush.msra.mxu0 0.0
    %2786 = vmatpush.msra.mxu0 0.0
    %2787 = vmatpush.msra.mxu0 0.0
    %2788 = vmatpush.msra.mxu0 0.0
    %2789 = vmatpush.msra.mxu0 0.0
    %2790 = vmatpush.msra.mxu0 0.0
    %2791 = vmatpush.msra.mxu0 0.0
    %2792 = vmatpush.msra.mxu0 0.0
    %2793 = vmatpush.msra.mxu0 0.0
    %2794 = vmatpush.msra.mxu0 %v2326
    %2795 = vmatmul.f32.gmra.mxu0 %v2777
    %v2796 = vpop.f32.mrf.mxu0
    %v2797 = vadd.f32 0.0, %v2796
    %2798 = vdwg.mxu0
    %v2800 = vsel %vm818, %v2681, 0
    %2802 = vmatpush.msra.mxu0 0.0
    %2803 = vmatpush.msra.mxu0 0.0
    %2804 = vmatpush.msra.mxu0 0.0
    %2805 = vmatpush.msra.mxu0 0.0
    %2806 = vmatpush.msra.mxu0 0.0
    %2807 = vmatpush.msra.mxu0 0.0
    %2808 = vmatpush.msra.mxu0 0.0
    %2809 = vmatpush.msra.mxu0 0.0
    %2810 = vmatpush.msra.mxu0 0.0
    %2811 = vmatpush.msra.mxu0 0.0
    %2812 = vmatpush.msra.mxu0 0.0
    %2813 = vmatpush.msra.mxu0 0.0
    %2814 = vmatpush.msra.mxu0 0.0
    %2815 = vmatpush.msra.mxu0 0.0
    %2816 = vmatpush.msra.mxu0 0.0
    %2817 = vmatpush.msra.mxu0 %v2346
    %2818 = vmatmul.f32.gmra.mxu0 %v2800
    %v2819 = vpop.f32.mrf.mxu0
    %v2820 = vadd.f32 0.0, %v2819
    %2821 = vdwg.mxu0
    %v2823 = vsel %vm818, %v2682, 0
    %2825 = vmatpush.msra.mxu0 0.0
    %2826 = vmatpush.msra.mxu0 0.0
    %2827 = vmatpush.msra.mxu0 0.0
    %2828 = vmatpush.msra.mxu0 0.0
    %2829 = vmatpush.msra.mxu0 0.0
    %2830 = vmatpush.msra.mxu0 0.0
    %2831 = vmatpush.msra.mxu0 0.0
    %2832 = vmatpush.msra.mxu0 0.0
    %2833 = vmatpush.msra.mxu0 0.0
    %2834 = vmatpush.msra.mxu0 0.0
    %2835 = vmatpush.msra.mxu0 0.0
    %2836 = vmatpush.msra.mxu0 0.0
    %2837 = vmatpush.msra.mxu0 0.0
    %2838 = vmatpush.msra.mxu0 0.0
    %2839 = vmatpush.msra.mxu0 0.0
    %2840 = vmatpush.msra.mxu0 %v2366
    %2841 = vmatmul.f32.gmra.mxu0 %v2823
    %v2842 = vpop.f32.mrf.mxu0
    %v2843 = vadd.f32 0.0, %v2842
    %2844 = vdwg.mxu0
    %v2846 = vsel %vm818, %v2683, 0
    %2848 = vmatpush.msra.mxu0 0.0
    %2849 = vmatpush.msra.mxu0 0.0
    %2850 = vmatpush.msra.mxu0 0.0
    %2851 = vmatpush.msra.mxu0 0.0
    %2852 = vmatpush.msra.mxu0 0.0
    %2853 = vmatpush.msra.mxu0 0.0
    %2854 = vmatpush.msra.mxu0 0.0
    %2855 = vmatpush.msra.mxu0 0.0
    %2856 = vmatpush.msra.mxu0 0.0
    %2857 = vmatpush.msra.mxu0 0.0
    %2858 = vmatpush.msra.mxu0 0.0
    %2859 = vmatpush.msra.mxu0 0.0
    %2860 = vmatpush.msra.mxu0 0.0
    %2861 = vmatpush.msra.mxu0 0.0
    %2862 = vmatpush.msra.mxu0 0.0
    %2863 = vmatpush.msra.mxu0 %v2386
    %2864 = vmatmul.f32.gmra.mxu0 %v2846
    %v2865 = vpop.f32.mrf.mxu0
    %v2866 = vadd.f32 0.0, %v2865
    %2867 = vdwg.mxu0
    %s2868 = scalar_lea.vmem %s10, 64
    %v2869 = vld [vmem:[%s2868] sm:$0xff]
    %v2870 = vld [vmem:[%s2868 + $0x8] sm:$0xff]
    %v2871 = vld [vmem:[%s2868 + $0x10] sm:$0xff]
    %v2872 = vld [vmem:[%s2868 + $0x18] sm:$0xff]
    %v2873 = vld [vmem:[%s2868 + $0x20] sm:$0xff]
    %v2874 = vld [vmem:[%s2868 + $0x28] sm:$0xff]
    %v2875 = vld [vmem:[%s2868 + $0x30] sm:$0xff]
    %v2876 = vld [vmem:[%s2868 + $0x38] sm:$0xff]
    %v2878 = vsel %vm818, %v2705, 0
    %2880 = vmatpush.msra.mxu0 0.0
    %2881 = vmatpush.msra.mxu0 0.0
    %2882 = vmatpush.msra.mxu0 0.0
    %2883 = vmatpush.msra.mxu0 0.0
    %2884 = vmatpush.msra.mxu0 0.0
    %2885 = vmatpush.msra.mxu0 0.0
    %2886 = vmatpush.msra.mxu0 0.0
    %2887 = vmatpush.msra.mxu0 0.0
    %2888 = vmatpush.msra.mxu0 0.0
    %2889 = vmatpush.msra.mxu0 0.0
    %2890 = vmatpush.msra.mxu0 0.0
    %2891 = vmatpush.msra.mxu0 0.0
    %2892 = vmatpush.msra.mxu0 0.0
    %2893 = vmatpush.msra.mxu0 0.0
    %2894 = vmatpush.msra.mxu0 0.0
    %2895 = vmatpush.msra.mxu0 %v2869
    %2896 = vmatmul.f32.gmra.mxu0 %v2878
    %v2897 = vpop.f32.mrf.mxu0
    %v2898 = vadd.f32 0.0, %v2897
    %2899 = vdwg.mxu0
    %v2901 = vsel %vm818, %v2728, 0
    %2903 = vmatpush.msra.mxu0 0.0
    %2904 = vmatpush.msra.mxu0 0.0
    %2905 = vmatpush.msra.mxu0 0.0
    %2906 = vmatpush.msra.mxu0 0.0
    %2907 = vmatpush.msra.mxu0 0.0
    %2908 = vmatpush.msra.mxu0 0.0
    %2909 = vmatpush.msra.mxu0 0.0
    %2910 = vmatpush.msra.mxu0 0.0
    %2911 = vmatpush.msra.mxu0 0.0
    %2912 = vmatpush.msra.mxu0 0.0
    %2913 = vmatpush.msra.mxu0 0.0
    %2914 = vmatpush.msra.mxu0 0.0
    %2915 = vmatpush.msra.mxu0 0.0
    %2916 = vmatpush.msra.mxu0 0.0
    %2917 = vmatpush.msra.mxu0 0.0
    %2918 = vmatpush.msra.mxu0 %v2870
    %2919 = vmatmul.f32.gmra.mxu0 %v2901
    %v2920 = vpop.f32.mrf.mxu0
    %v2921 = vadd.f32 0.0, %v2920
    %2922 = vdwg.mxu0
    %v2924 = vsel %vm818, %v2751, 0
    %2926 = vmatpush.msra.mxu0 0.0
    %2927 = vmatpush.msra.mxu0 0.0
    %2928 = vmatpush.msra.mxu0 0.0
    %2929 = vmatpush.msra.mxu0 0.0
    %2930 = vmatpush.msra.mxu0 0.0
    %2931 = vmatpush.msra.mxu0 0.0
    %2932 = vmatpush.msra.mxu0 0.0
    %2933 = vmatpush.msra.mxu0 0.0
    %2934 = vmatpush.msra.mxu0 0.0
    %2935 = vmatpush.msra.mxu0 0.0
    %2936 = vmatpush.msra.mxu0 0.0
    %2937 = vmatpush.msra.mxu0 0.0
    %2938 = vmatpush.msra.mxu0 0.0
    %2939 = vmatpush.msra.mxu0 0.0
    %2940 = vmatpush.msra.mxu0 0.0
    %2941 = vmatpush.msra.mxu0 %v2871
    %2942 = vmatmul.f32.gmra.mxu0 %v2924
    %v2943 = vpop.f32.mrf.mxu0
    %v2944 = vadd.f32 0.0, %v2943
    %2945 = vdwg.mxu0
    %v2947 = vsel %vm818, %v2774, 0
    %2949 = vmatpush.msra.mxu0 0.0
    %2950 = vmatpush.msra.mxu0 0.0
    %2951 = vmatpush.msra.mxu0 0.0
    %2952 = vmatpush.msra.mxu0 0.0
    %2953 = vmatpush.msra.mxu0 0.0
    %2954 = vmatpush.msra.mxu0 0.0
    %2955 = vmatpush.msra.mxu0 0.0
    %2956 = vmatpush.msra.mxu0 0.0
    %2957 = vmatpush.msra.mxu0 0.0
    %2958 = vmatpush.msra.mxu0 0.0
    %2959 = vmatpush.msra.mxu0 0.0
    %2960 = vmatpush.msra.mxu0 0.0
    %2961 = vmatpush.msra.mxu0 0.0
    %2962 = vmatpush.msra.mxu0 0.0
    %2963 = vmatpush.msra.mxu0 0.0
    %2964 = vmatpush.msra.mxu0 %v2872
    %2965 = vmatmul.f32.gmra.mxu0 %v2947
    %v2966 = vpop.f32.mrf.mxu0
    %v2967 = vadd.f32 0.0, %v2966
    %2968 = vdwg.mxu0
    %v2970 = vsel %vm818, %v2797, 0
    %2972 = vmatpush.msra.mxu0 0.0
    %2973 = vmatpush.msra.mxu0 0.0
    %2974 = vmatpush.msra.mxu0 0.0
    %2975 = vmatpush.msra.mxu0 0.0
    %2976 = vmatpush.msra.mxu0 0.0
    %2977 = vmatpush.msra.mxu0 0.0
    %2978 = vmatpush.msra.mxu0 0.0
    %2979 = vmatpush.msra.mxu0 0.0
    %2980 = vmatpush.msra.mxu0 0.0
    %2981 = vmatpush.msra.mxu0 0.0
    %2982 = vmatpush.msra.mxu0 0.0
    %2983 = vmatpush.msra.mxu0 0.0
    %2984 = vmatpush.msra.mxu0 0.0
    %2985 = vmatpush.msra.mxu0 0.0
    %2986 = vmatpush.msra.mxu0 0.0
    %2987 = vmatpush.msra.mxu0 %v2873
    %2988 = vmatmul.f32.gmra.mxu0 %v2970
    %v2989 = vpop.f32.mrf.mxu0
    %v2990 = vadd.f32 0.0, %v2989
    %2991 = vdwg.mxu0
    %v2993 = vsel %vm818, %v2820, 0
    %2995 = vmatpush.msra.mxu0 0.0
    %2996 = vmatpush.msra.mxu0 0.0
    %2997 = vmatpush.msra.mxu0 0.0
    %2998 = vmatpush.msra.mxu0 0.0
    %2999 = vmatpush.msra.mxu0 0.0
    %3000 = vmatpush.msra.mxu0 0.0
    %3001 = vmatpush.msra.mxu0 0.0
    %3002 = vmatpush.msra.mxu0 0.0
    %3003 = vmatpush.msra.mxu0 0.0
    %3004 = vmatpush.msra.mxu0 0.0
    %3005 = vmatpush.msra.mxu0 0.0
    %3006 = vmatpush.msra.mxu0 0.0
    %3007 = vmatpush.msra.mxu0 0.0
    %3008 = vmatpush.msra.mxu0 0.0
    %3009 = vmatpush.msra.mxu0 0.0
    %3010 = vmatpush.msra.mxu0 %v2874
    %3011 = vmatmul.f32.gmra.mxu0 %v2993
    %v3012 = vpop.f32.mrf.mxu0
    %v3013 = vadd.f32 0.0, %v3012
    %3014 = vdwg.mxu0
    %v3016 = vsel %vm818, %v2843, 0
    %3018 = vmatpush.msra.mxu0 0.0
    %3019 = vmatpush.msra.mxu0 0.0
    %3020 = vmatpush.msra.mxu0 0.0
    %3021 = vmatpush.msra.mxu0 0.0
    %3022 = vmatpush.msra.mxu0 0.0
    %3023 = vmatpush.msra.mxu0 0.0
    %3024 = vmatpush.msra.mxu0 0.0
    %3025 = vmatpush.msra.mxu0 0.0
    %3026 = vmatpush.msra.mxu0 0.0
    %3027 = vmatpush.msra.mxu0 0.0
    %3028 = vmatpush.msra.mxu0 0.0
    %3029 = vmatpush.msra.mxu0 0.0
    %3030 = vmatpush.msra.mxu0 0.0
    %3031 = vmatpush.msra.mxu0 0.0
    %3032 = vmatpush.msra.mxu0 0.0
    %3033 = vmatpush.msra.mxu0 %v2875
    %3034 = vmatmul.f32.gmra.mxu0 %v3016
    %v3035 = vpop.f32.mrf.mxu0
    %v3036 = vadd.f32 0.0, %v3035
    %3037 = vdwg.mxu0
    %v3039 = vsel %vm818, %v2866, 0
    %3041 = vmatpush.msra.mxu0 0.0
    %3042 = vmatpush.msra.mxu0 0.0
    %3043 = vmatpush.msra.mxu0 0.0
    %3044 = vmatpush.msra.mxu0 0.0
    %3045 = vmatpush.msra.mxu0 0.0
    %3046 = vmatpush.msra.mxu0 0.0
    %3047 = vmatpush.msra.mxu0 0.0
    %3048 = vmatpush.msra.mxu0 0.0
    %3049 = vmatpush.msra.mxu0 0.0
    %3050 = vmatpush.msra.mxu0 0.0
    %3051 = vmatpush.msra.mxu0 0.0
    %3052 = vmatpush.msra.mxu0 0.0
    %3053 = vmatpush.msra.mxu0 0.0
    %3054 = vmatpush.msra.mxu0 0.0
    %3055 = vmatpush.msra.mxu0 0.0
    %3056 = vmatpush.msra.mxu0 %v2876
    %3057 = vmatmul.f32.gmra.mxu0 %v3039
    %v3058 = vpop.f32.mrf.mxu0
    %v3059 = vadd.f32 0.0, %v3058
    %3060 = vdwg.mxu0
    %v3061 = vadd.f32 %v2898, %v2921
    %v3062 = vadd.f32 %v2990, %v3013
    %v3063 = vadd.f32 %v3061, %v2944
    %v3064 = vadd.f32 %v3062, %v3036
    %v3065 = vadd.f32 %v3063, %v2967
    %v3066 = vadd.f32 %v3064, %v3059
    %v3067 = vadd.f32 %v1644, %v3065
    %v3068 = vadd.f32 %v1645, %v3066
    %s3069 = scalar_lea.vmem %s11, 1
    %v3070 = vld [vmem:[%s3069] sm:$0x1]
    %v3072 = vperm.slane %v3070, 0
    %v3074 = vadd.f32 %v3067, %v3072
    %v3075 = vadd.f32 %v3068, %v3072
    %s3076 = scalar_lea.vmem %s12, 1
    %v3077 = vld [vmem:[%s3076] sm:$0x1]
    %s3078 = scalar_lea.vmem %s13, 1
    %v3079 = vld [vmem:[%s3078] sm:$0x1]
    %v3080 = vsel %vm78, %v3074, 0.0
    %3081 = vadd.xlane.f32.xlu0 %v3080
    %v3082 = vpop.xlane.xlu0 %3081
    %v3083 = vsel %vm78, %v3075, 0.0
    %3084 = vadd.xlane.f32.xlu0 %v3083
    %v3085 = vpop.xlane.xlu0 %3084
    %v3086 = vmul.f32 %v3082, %v91
    %v3087 = vmul.f32 %v3085, %v91
    %v3088 = vsub.f32 %v3074, %v3086
    %v3089 = vsub.f32 %v3075, %v3087
    %v3090 = vmul.f32 %v3088, %v3088
    %v3091 = vmul.f32 %v3089, %v3089
    %v3092 = vsel %vm78, %v3090, 0.0
    %3093 = vadd.xlane.f32.xlu0 %v3092
    %v3094 = vpop.xlane.xlu0 %3093
    %v3095 = vsel %vm78, %v3091, 0.0
    %3096 = vadd.xlane.f32.xlu0 %v3095
    %v3097 = vpop.xlane.xlu0 %3096
    %v3098 = vmul.f32 %v3094, %v91
    %v3099 = vmul.f32 %v3097, %v91
    %v3100 = vadd.f32 %v3098, 1e-05
    %v3101 = vadd.f32 %v3099, 1e-05
    %v3102 = vrsqrt.pop %v3100
    %v3103 = vmul.f32 %v3102, %v3100
    %v3104 = vmul.f32 %v3103, %v3102
    %v3105 = vmul.f32 0.5, %v3104
    %v3106 = vsub.f32 1.5, %v3105
    %v3107 = vmul.f32 %v3102, %v3106
    %vm3108 = vweird.f32 %v3100
    %vm3109 = vweird.f32 %v3102
    %vm3110 = vmor %vm3108, %vm3109
    %v3111 = vsel %vm3110, %v3102, %v3107
    %v3112 = vrsqrt.pop %v3101
    %v3113 = vmul.f32 %v3112, %v3101
    %v3114 = vmul.f32 %v3113, %v3112
    %v3115 = vmul.f32 0.5, %v3114
    %v3116 = vsub.f32 1.5, %v3115
    %v3117 = vmul.f32 %v3112, %v3116
    %vm3118 = vweird.f32 %v3101
    %vm3119 = vweird.f32 %v3112
    %vm3120 = vmor %vm3118, %vm3119
    %v3121 = vsel %vm3120, %v3112, %v3117
    %v3122 = vmul.f32 %v3088, %v3111
    %v3123 = vmul.f32 %v3089, %v3121
    %v3125 = vperm.slane %v3077, 0
    %v3127 = vmul.f32 %v3122, %v3125
    %v3128 = vmul.f32 %v3123, %v3125
    %v3130 = vperm.slane %v3079, 0
    %v3132 = vadd.f32 %v3127, %v3130
    %v3133 = vadd.f32 %v3128, %v3130
    %s3134 = scalar_lea.vmem %s14, 32
    %v3135 = vld [vmem:[%s3134] sm:$0xff]
    %v3136 = vld [vmem:[%s3134 + $0x8] sm:$0xff]
    %v3137 = vld [vmem:[%s3134 + $0x10] sm:$0xff]
    %v3138 = vld [vmem:[%s3134 + $0x18] sm:$0xff]
    %s3139 = scalar_lea.vmem %s15, 1
    %v3140 = vld [vmem:[%s3139] sm:$0x1]
    %v3142 = vperm.slane %v3140, 0
    %v3145 = vsel %vm78, %v3132, 0
    %v3148 = vsel %vm78, %v3133, 0
    %3150 = vmatpush.msra.mxu0 0.0
    %3151 = vmatpush.msra.mxu0 0.0
    %3152 = vmatpush.msra.mxu0 0.0
    %3153 = vmatpush.msra.mxu0 0.0
    %3154 = vmatpush.msra.mxu0 0.0
    %3155 = vmatpush.msra.mxu0 0.0
    %3156 = vmatpush.msra.mxu0 0.0
    %3157 = vmatpush.msra.mxu0 0.0
    %3158 = vmatpush.msra.mxu0 0.0
    %3159 = vmatpush.msra.mxu0 0.0
    %3160 = vmatpush.msra.mxu0 0.0
    %3161 = vmatpush.msra.mxu0 0.0
    %3162 = vmatpush.msra.mxu0 %v3138
    %3163 = vmatpush.msra.mxu0 %v3137
    %3164 = vmatpush.msra.mxu0 %v3136
    %3165 = vmatpush.msra.mxu0 %v3135
    %3166 = vmatmul.f32.gmra.mxu0 %v3145
    %v3167 = vpop.f32.mrf.mxu0
    %v3168 = vadd.f32 %v3142, %v3167
    %3169 = vmatmul.f32.gmra.mxu0 %v3148
    %v3170 = vpop.f32.mrf.mxu0
    %v3171 = vadd.f32 %v3142, %v3170
    %3172 = vdwg.mxu0
    %v3173 = vmax.f32 %v3168, 0.0
    %v3174 = vmax.f32 %v3171, 0.0
    %s3175 = scalar_lea.vmem %s16, 64
    %v3176 = vld [vmem:[%s3175] sm:$0xff]
    %v3177 = vld [vmem:[%s3175 + $0x8] sm:$0xff]
    %v3178 = vld [vmem:[%s3175 + $0x10] sm:$0xff]
    %v3179 = vld [vmem:[%s3175 + $0x18] sm:$0xff]
    %v3180 = vld [vmem:[%s3175 + $0x20] sm:$0xff]
    %v3181 = vld [vmem:[%s3175 + $0x28] sm:$0xff]
    %v3182 = vld [vmem:[%s3175 + $0x30] sm:$0xff]
    %v3183 = vld [vmem:[%s3175 + $0x38] sm:$0xff]
    %v3185 = vsel %vm1608, %v3173, 0
    %v3188 = vsel %vm1608, %v3174, 0
    %3190 = vmatpush.msra.mxu0 0.0
    %3191 = vmatpush.msra.mxu0 0.0
    %3192 = vmatpush.msra.mxu0 0.0
    %3193 = vmatpush.msra.mxu0 0.0
    %3194 = vmatpush.msra.mxu0 0.0
    %3195 = vmatpush.msra.mxu0 0.0
    %3196 = vmatpush.msra.mxu0 0.0
    %3197 = vmatpush.msra.mxu0 0.0
    %3198 = vmatpush.msra.mxu0 %v3183
    %3199 = vmatpush.msra.mxu0 %v3182
    %3200 = vmatpush.msra.mxu0 %v3181
    %3201 = vmatpush.msra.mxu0 %v3180
    %3202 = vmatpush.msra.mxu0 %v3179
    %3203 = vmatpush.msra.mxu0 %v3178
    %3204 = vmatpush.msra.mxu0 %v3177
    %3205 = vmatpush.msra.mxu0 %v3176
    %3206 = vmatmul.f32.gmra.mxu0 %v3185
    %v3207 = vpop.f32.mrf.mxu0
    %v3208 = vadd.f32 0.0, %v3207
    %3209 = vmatmul.f32.gmra.mxu0 %v3188
    %v3210 = vpop.f32.mrf.mxu0
    %v3211 = vadd.f32 0.0, %v3210
    %3212 = vdwg.mxu0
    %v3213 = vadd.f32 %v3074, %v3208
    %v3214 = vadd.f32 %v3075, %v3211
    %s3215 = scalar_lea.vmem %s17, 1
    %v3216 = vld [vmem:[%s3215] sm:$0x1]
    %v3218 = vperm.slane %v3216, 0
    %v3220 = vadd.f32 %v3213, %v3218
    %v3221 = vadd.f32 %v3214, %v3218
    %v3222 = vld [vmem:[%s18] sm:$0x1]
    %v3223 = vld [vmem:[%s19] sm:$0x1]
    %v3224 = vsel %vm78, %v3220, 0.0
    %3225 = vadd.xlane.f32.xlu0 %v3224
    %v3226 = vpop.xlane.xlu0 %3225
    %v3227 = vsel %vm78, %v3221, 0.0
    %3228 = vadd.xlane.f32.xlu0 %v3227
    %v3229 = vpop.xlane.xlu0 %3228
    %v3230 = vmul.f32 %v3226, %v91
    %v3231 = vmul.f32 %v3229, %v91
    %v3232 = vsub.f32 %v3220, %v3230
    %v3233 = vsub.f32 %v3221, %v3231
    %v3234 = vmul.f32 %v3232, %v3232
    %v3235 = vmul.f32 %v3233, %v3233
    %v3236 = vsel %vm78, %v3234, 0.0
    %3237 = vadd.xlane.f32.xlu0 %v3236
    %v3238 = vpop.xlane.xlu0 %3237
    %v3239 = vsel %vm78, %v3235, 0.0
    %3240 = vadd.xlane.f32.xlu0 %v3239
    %v3241 = vpop.xlane.xlu0 %3240
    %v3242 = vmul.f32 %v3238, %v91
    %v3243 = vmul.f32 %v3241, %v91
    %v3244 = vadd.f32 %v3242, 1e-05
    %v3245 = vadd.f32 %v3243, 1e-05
    %v3246 = vrsqrt.pop %v3244
    %v3247 = vmul.f32 %v3246, %v3244
    %v3248 = vmul.f32 %v3247, %v3246
    %v3249 = vmul.f32 0.5, %v3248
    %v3250 = vsub.f32 1.5, %v3249
    %v3251 = vmul.f32 %v3246, %v3250
    %vm3252 = vweird.f32 %v3244
    %vm3253 = vweird.f32 %v3246
    %vm3254 = vmor %vm3252, %vm3253
    %v3255 = vsel %vm3254, %v3246, %v3251
    %v3256 = vrsqrt.pop %v3245
    %v3257 = vmul.f32 %v3256, %v3245
    %v3258 = vmul.f32 %v3257, %v3256
    %v3259 = vmul.f32 0.5, %v3258
    %v3260 = vsub.f32 1.5, %v3259
    %v3261 = vmul.f32 %v3256, %v3260
    %vm3262 = vweird.f32 %v3245
    %vm3263 = vweird.f32 %v3256
    %vm3264 = vmor %vm3262, %vm3263
    %v3265 = vsel %vm3264, %v3256, %v3261
    %v3266 = vmul.f32 %v3232, %v3255
    %v3267 = vmul.f32 %v3233, %v3265
    %v3269 = vperm.slane %v3222, 0
    %v3271 = vmul.f32 %v3266, %v3269
    %v3272 = vmul.f32 %v3267, %v3269
    %v3274 = vperm.slane %v3223, 0
    %v3276 = vadd.f32 %v3271, %v3274
    %v3277 = vadd.f32 %v3272, %v3274
    %3278 = vst.msk [vmem:[#allocation2] sm:$0xff] %vm78, %v3276
    %3279 = vst.msk [vmem:[#allocation2 + $0x8] sm:$0xff] %vm78, %v3277
    // Predicated region
    $region82: #{encoder_forward.1} parent=1 // pred_check
      _
    $region83: #{encoder_forward.1} parent=1 // pred_check_branch
      %3281 = sbr.rel (0) target = $region85
    $region84: #{encoder_forward.1} parent=1 // pred_region
      %3283 = vsyncadd [#allocation3], 0
      %s3284 = sshll.u32 [#allocation2], 4
      %s3285 = int_to_ptr.vmem [resolvable:$true] %s3284
      %s3286 = sshll.u32 %s20, 4
      %s3287 = int_to_ptr.hbm [resolvable:$true] %s3286
      %3292 = dma.vmem_to_hbm [thread:$0]  %s3285, 256, %s3287, [#allocation3], 128, 128, 8
    $region85: #{encoder_forward.1} parent=1 // pred_fallthru
      _
    // Predicated region
    $region86: #{encoder_forward.1} parent=1 // pred_check
      _
    $region87: #{encoder_forward.1} parent=1 // pred_check_branch
      %3294 = sbr.rel (0) target = $region89
    $region88: #{encoder_forward.1} parent=1 // pred_region
      %3296 = dma.done [#allocation3], 256
    $region89: #{encoder_forward.1} parent=1 // pred_fallthru
      _
    %3297 = vsyncpa [#allocation3], 1

</llo_original>
